<compile_context>
chip_gen: v7x
topology: tpu7x:2x2x1
jax: 0.10.0
libtpu: 0.0.40
codegen_flags: <defaults>
</compile_context>

<pallas_src>
import functools

import jax
import jax.numpy as jnp
from jax import lax
from jax.experimental import pallas as pl
from jax.experimental.pallas import tpu as pltpu


# ---------------------------------------------------------------------------
# Fused kernel
# ---------------------------------------------------------------------------
def _fused_cnn_kernel(p1_ref, w1_ref, b1_ref, w2_ref, b2_ref,
                      wf1_ref, bf1_ref, wf2_ref, bf2_ref,
                      out_ref, feat_ref, *, NB, H, W, C1, C2):
    """One batch chunk per grid step.

    p1_ref : (NB, H*W, 9*Cin)  conv1 im2col patches (built in the wrapper)
    w1_ref : (9*Cin, C1)       conv1 weight, (ky,kx,cin) flattened
    b1_ref : (1, C1)
    w2_ref : (9*C1, C2)        conv2 weight, (ky,kx,cin) flattened
    b2_ref : (1, C2)
    wf1_ref: (2, H, W, C2)     fc1 weight on the pre-pool grid; non-zero only at
                               even (h, w) anchors (2x2 max-pool folded in)
    bf1_ref: (1, 1, 1, 2)
    wf2_ref: (2, 1, 1, 10)     fc2 weight (row j = weights for feature j)
    bf2_ref: (1, 1, 1, 10)
    out_ref : (NB, 1, 1, 10)
    feat_ref: (NB, 1, 1, 2)
    """
    HW = H * W

    # ---- conv1: single 2D MXU matmul -------------------------------------
    p1 = p1_ref[...].reshape(NB * HW, p1_ref.shape[-1])            # (NB*HW, 9*Cin)
    y1 = jnp.dot(p1, w1_ref[...], preferred_element_type=jnp.float32)
    y1 = jnp.maximum(y1 + b1_ref[...], 0.0)                        # (NB*HW, C1)
    y1 = y1.reshape(NB, H, W, C1)

    # ---- zero-pad y1 by 1 fully inside VMEM (no XLA pad / HBM round-trip) -
    zc = jnp.zeros((NB, H, 1, C1), jnp.float32)
    zr = jnp.zeros((NB, 1, W + 2, C1), jnp.float32)
    y1p = jnp.concatenate([zc, y1, zc], axis=2)                    # (NB, H, W+2, C1)
    y1p = jnp.concatenate([zr, y1p, zr], axis=1)                   # (NB, H+2, W+2, C1)

    # ---- conv2: im2col (9 shifted slices, lane-concat) + single matmul ----
    taps = [y1p[:, ky:ky + H, kx:kx + W, :]
            for ky in range(3) for kx in range(3)]
    p2 = jnp.concatenate(taps, axis=-1).reshape(NB * HW, 9 * C1)   # (NB*HW, 9*C1)
    y2 = jnp.dot(p2, w2_ref[...], preferred_element_type=jnp.float32)
    y2 = jnp.maximum(y2 + b2_ref[...], 0.0).reshape(NB, H, W, C2)  # (NB, H, W, C2)

    # ---- 2x2 max pool, folded into fc1 ------------------------------------
    # m[n, y, x, c] = max over the 2x2 window anchored at (y, x).  Only even
    # (y, x) anchors carry non-zero fc1 weight, so border/odd garbage is inert.
    ysw = jnp.concatenate([y2[:, :, 1:, :], y2[:, :, W - 1:W, :]], axis=2)   # x+1
    ysh = jnp.concatenate([y2[:, 1:, :, :], y2[:, H - 1:H, :, :]], axis=1)   # y+1
    yshw = jnp.concatenate([ysw[:, 1:, :, :], ysw[:, H - 1:H, :, :]], axis=1)
    m = jnp.maximum(jnp.maximum(y2, ysw), jnp.maximum(ysh, yshw))  # (NB, H, W, C2)

    # ---- fc1 (2 outputs): VPU multiply + chained reductions ---------------
    wf1 = wf1_ref[...]                                             # (2, H, W, C2)

    def _contract(wj):                                             # wj: (1, H, W, C2)
        s = jnp.sum(m * wj, axis=3, keepdims=True)                 # lanes
        s = jnp.sum(s, axis=2, keepdims=True)                      # sublanes
        return jnp.sum(s, axis=1, keepdims=True)                   # (NB, 1, 1, 1)

    f0 = _contract(wf1[0:1])
    f1 = _contract(wf1[1:2])
    feat = jnp.concatenate([f0, f1], axis=-1) + bf1_ref[...]       # (NB, 1, 1, 2)

    # ---- fc2 (10 outputs): tiny VPU broadcast-multiply-add ----------------
    wf2 = wf2_ref[...]                                             # (2, 1, 1, 10)
    out = (feat[..., 0:1] * wf2[0:1] + feat[..., 1:2] * wf2[1:2]
           + bf2_ref[...])                                         # (NB, 1, 1, 10)

    feat_ref[...] = feat.astype(feat_ref.dtype)
    out_ref[...] = out.astype(out_ref.dtype)


# ---------------------------------------------------------------------------
# Wrapper: im2col plumbing + single pallas_call
# ---------------------------------------------------------------------------
def simple_cnn_pallas(x_nchw, kp, *, batch_block=None):
    N, Cin, H, W = x_nchw.shape
    assert H % 2 == 0 and W % 2 == 0, "pool assumes even spatial dims"
    C1 = kp["w1"].shape[1]
    C2 = kp["w2"].shape[1]
    NB = batch_block or (N if N <= 8 else 8)
    assert N % NB == 0
    HW = H * W

    # NCHW -> NHWC and conv1 im2col in the wrapper (layout plumbing only):
    # removes the lane-width-1 shift/concat relayout work from the kernel.
    x = jnp.transpose(x_nchw, (0, 2, 3, 1))
    xp = jnp.pad(x, ((0, 0), (1, 1), (1, 1), (0, 0)))
    taps = [xp[:, ky:ky + H, kx:kx + W, :] for ky in range(3) for kx in range(3)]
    patches1 = jnp.concatenate(taps, axis=-1).reshape(N, HW, 9 * Cin)

    kernel = functools.partial(_fused_cnn_kernel, NB=NB, H=H, W=W, C1=C1, C2=C2)
    out4, feat4 = pl.pallas_call(
        kernel,
        out_shape=(jax.ShapeDtypeStruct((N, 1, 1, 10), jnp.float32),
                   jax.ShapeDtypeStruct((N, 1, 1, 2), jnp.float32)),
        grid=(N // NB,),
        in_specs=[
            pl.BlockSpec((NB, HW, 9 * Cin), lambda i: (i, 0, 0)),
            pl.BlockSpec((9 * Cin, C1), lambda i: (0, 0)),
            pl.BlockSpec((1, C1), lambda i: (0, 0)),
            pl.BlockSpec((9 * C1, C2), lambda i: (0, 0)),
            pl.BlockSpec((1, C2), lambda i: (0, 0)),
            pl.BlockSpec((2, H, W, C2), lambda i: (0, 0, 0, 0)),
            pl.BlockSpec((1, 1, 1, 2), lambda i: (0, 0, 0, 0)),
            pl.BlockSpec((2, 1, 1, 10), lambda i: (0, 0, 0, 0)),
            pl.BlockSpec((1, 1, 1, 10), lambda i: (0, 0, 0, 0)),
        ],
        out_specs=(pl.BlockSpec((NB, 1, 1, 10), lambda i: (i, 0, 0, 0)),
                   pl.BlockSpec((NB, 1, 1, 2), lambda i: (i, 0, 0, 0))),
        compiler_params=pltpu.CompilerParams(
            dimension_semantics=("parallel",)),
    )(patches1, kp["w1"], kp["b1"], kp["w2"], kp["b2"],
      kp["wfc1"], kp["bfc1"], kp["wfc2"], kp["bfc2"])

    return out4.reshape(N, 10), feat4.reshape(N, 2)


# ---------------------------------------------------------------------------
# Parameter packing (torch layout -> kernel layout)
# ---------------------------------------------------------------------------
def pack_params(p_torch, *, H=16, W=16):
    Cin = p_torch["w1"].shape[1]
    C1 = p_torch["w1"].shape[0]
    C2 = p_torch["w2"].shape[0]
    kp = {}
    # conv weights: OIHW -> (ky, kx, cin, cout) -> (9*cin, cout)
    kp["w1"] = jnp.transpose(p_torch["w1"], (2, 3, 1, 0)).reshape(9 * Cin, C1)
    kp["b1"] = p_torch["b1"].reshape(1, C1)
    kp["w2"] = jnp.transpose(p_torch["w2"], (2, 3, 1, 0)).reshape(9 * C1, C2)
    kp["b2"] = p_torch["b2"].reshape(1, C2)
    # fc1: torch flattens pooled CHW.  The kernel contracts against a weight on
    # the PRE-pool (H, W) grid with the 2x2 max-pool folded in: only even (h, w)
    # anchors are non-zero.
    Hp, Wp = H // 2, W // 2
    wb = p_torch["wfc1"].reshape(2, C2, Hp, Wp)          # (j, c, h, w)
    wb = jnp.transpose(wb, (0, 2, 3, 1))                 # (j, h, w, c)
    wfull = jnp.zeros((2, H, W, C2), jnp.float32)
    wfull = wfull.at[:, ::2, ::2, :].set(wb)
    kp["wfc1"] = wfull
    kp["bfc1"] = p_torch["bfc1"].reshape(1, 1, 1, 2)
    kp["wfc2"] = p_torch["wfc2"].T.reshape(2, 1, 1, 10)  # (j, 1, 1, k)
    kp["bfc2"] = p_torch["bfc2"].reshape(1, 1, 1, 10)
    return kp


@jax.jit
def simple_cnn_forward(x_nchw, kp):
    """Returns (out, features), matching SimpleCNN.forward."""
    return simple_cnn_pallas(x_nchw, kp)


# ---------------------------------------------------------------------------
# Pure-JAX reference (torch semantics, NCHW) for validation
# ---------------------------------------------------------------------------
def torch_reference(x, p):
    def conv(inp, w, b):
        y = lax.conv_general_dilated(inp, w, (1, 1), "SAME",
                                     dimension_numbers=("NCHW", "OIHW", "NCHW"))
        return y + b[None, :, None, None]

    y = jax.nn.relu(conv(x, p["w1"], p["b1"]))
    y = jax.nn.relu(conv(y, p["w2"], p["b2"]))
    y = lax.reduce_window(y, -jnp.inf, lax.max, (1, 1, 2, 2), (1, 1, 2, 2), "VALID")
    flat = y.reshape(y.shape[0], -1)                     # CHW flatten
    feat = flat @ p["wfc1"].T + p["bfc1"]
    out = feat @ p["wfc2"].T + p["bfc2"]
    return out, feat


if __name__ == "__main__":
    key = jax.random.PRNGKey(0)
    ks = jax.random.split(key, 9)

    N, Cin, H, W = 2, 1, 16, 16
    x = jax.random.normal(ks[0], (N, Cin, H, W), jnp.float32)

    # Deterministic synthetic parameters in torch layout.
    p_torch = {
        "w1": 0.20 * jax.random.normal(ks[1], (16, Cin, 3, 3), jnp.float32),
        "b1": 0.10 * jax.random.normal(ks[2], (16,), jnp.float32),
        "w2": 0.05 * jax.random.normal(ks[3], (32, 16, 3, 3), jnp.float32),
        "b2": 0.10 * jax.random.normal(ks[4], (32,), jnp.float32),
        "wfc1": 0.02 * jax.random.normal(ks[5], (2, 32 * (H // 2) * (W // 2)), jnp.float32),
        "bfc1": 0.10 * jax.random.normal(ks[6], (2,), jnp.float32),
        "wfc2": 0.50 * jax.random.normal(ks[7], (10, 2), jnp.float32),
        "bfc2": 0.10 * jax.random.normal(ks[8], (10,), jnp.float32),
    }
    kp = pack_params(p_torch, H=H, W=W)

    out, feat = simple_cnn_forward(x, kp)
    jax.block_until_ready((out, feat))

    assert out.shape == (N, 10) and feat.shape == (N, 2)

    out_ref, feat_ref = torch_reference(x, p_torch)
    assert jnp.allclose(out, out_ref, atol=1e-3, rtol=1e-3), "out mismatch"
    assert jnp.allclose(feat, feat_ref, atol=1e-3, rtol=1e-3), "features mismatch"

    print("KERNEL_OK")
</pallas_src>

<mosaic_0001>
module attributes {stable_mosaic.version = 11 : i64} {
  func.func @_fused_cnn_kernel(%arg0: i32, %arg1: memref<2x256x9xf32, #tpu.memory_space<vmem>>, %arg2: memref<9x16xf32, #tpu.memory_space<vmem>>, %arg3: memref<1x16xf32, #tpu.memory_space<vmem>>, %arg4: memref<144x32xf32, #tpu.memory_space<vmem>>, %arg5: memref<1x32xf32, #tpu.memory_space<vmem>>, %arg6: memref<2x16x16x32xf32, #tpu.memory_space<vmem>>, %arg7: memref<1x1x1x2xf32, #tpu.memory_space<vmem>>, %arg8: memref<2x1x1x10xf32, #tpu.memory_space<vmem>>, %arg9: memref<1x1x1x10xf32, #tpu.memory_space<vmem>>, %arg10: memref<2x1x1x10xf32, #tpu.memory_space<vmem>>, %arg11: memref<2x1x1x2xf32, #tpu.memory_space<vmem>>) attributes {dimension_semantics = [#tpu.dimension_semantics<parallel>], iteration_bounds = array<i64: 1>, scalar_prefetch = 0 : i64, scratch_operands = 0 : i64, tpu.core_type = #tpu.core_type<tc>, window_params = [{transform_indices = @transform_0, window_bounds = array<i64: 2, 256, 9>}, {pipeline_mode = #tpu.pipeline_mode<synchronous>, transform_indices = @transform_1, window_bounds = array<i64: 9, 16>}, {pipeline_mode = #tpu.pipeline_mode<synchronous>, transform_indices = @transform_2, window_bounds = array<i64: 1, 16>}, {pipeline_mode = #tpu.pipeline_mode<synchronous>, transform_indices = @transform_3, window_bounds = array<i64: 144, 32>}, {pipeline_mode = #tpu.pipeline_mode<synchronous>, transform_indices = @transform_4, window_bounds = array<i64: 1, 32>}, {pipeline_mode = #tpu.pipeline_mode<synchronous>, transform_indices = @transform_5, window_bounds = array<i64: 2, 16, 16, 32>}, {pipeline_mode = #tpu.pipeline_mode<synchronous>, transform_indices = @transform_6, window_bounds = array<i64: 1, 1, 1, 2>}, {pipeline_mode = #tpu.pipeline_mode<synchronous>, transform_indices = @transform_7, window_bounds = array<i64: 2, 1, 1, 10>}, {pipeline_mode = #tpu.pipeline_mode<synchronous>, transform_indices = @transform_8, window_bounds = array<i64: 1, 1, 1, 10>}, {transform_indices = @transform_9, window_bounds = array<i64: 2, 1, 1, 10>}, {transform_indices = @transform_10, window_bounds = array<i64: 2, 1, 1, 2>}]} {
    %c0 = arith.constant 0 : index
    %c0_0 = arith.constant 0 : index
    %c0_1 = arith.constant 0 : index
    %0 = vector.load %arg1[%c0, %c0_0, %c0_1] : memref<2x256x9xf32, #tpu.memory_space<vmem>>, vector<2x256x9xf32>
    %1 = vector.shape_cast %0 : vector<2x256x9xf32> to vector<512x9xf32>
    %c0_2 = arith.constant 0 : index
    %c0_3 = arith.constant 0 : index
    %2 = vector.load %arg2[%c0_2, %c0_3] : memref<9x16xf32, #tpu.memory_space<vmem>>, vector<9x16xf32>
    %cst = arith.constant dense<0.000000e+00> : vector<512x16xf32>
    %3 = tpu.matmul %1, %2, %cst {dimension_numbers = #tpu.dot_dimension_numbers<[1], [0], [0], [1], [0, 0, 1, 1], [], []>} : vector<512x9xf32>, vector<9x16xf32>, vector<512x16xf32> -> vector<512x16xf32>
    %c0_4 = arith.constant 0 : index
    %c0_5 = arith.constant 0 : index
    %4 = vector.load %arg3[%c0_4, %c0_5] : memref<1x16xf32, #tpu.memory_space<vmem>>, vector<1x16xf32>
    %5 = vector.broadcast %4 : vector<1x16xf32> to vector<512x16xf32>
    %6 = arith.addf %3, %5 : vector<512x16xf32>
    %cst_6 = arith.constant 0.000000e+00 : f32
    %7 = vector.broadcast %cst_6 : f32 to vector<512x16xf32>
    %8 = arith.maximumf %6, %7 : vector<512x16xf32>
    %9 = vector.shape_cast %8 : vector<512x16xf32> to vector<2x16x16x16xf32>
    %cst_7 = arith.constant 0.000000e+00 : f32
    %10 = vector.broadcast %cst_7 : f32 to vector<2x16x1x16xf32>
    %cst_8 = arith.constant 0.000000e+00 : f32
    %11 = vector.broadcast %cst_8 : f32 to vector<2x1x18x16xf32>
    %12 = tpu.concatenate %10, %9, %10 in 2 : vector<2x16x1x16xf32>, vector<2x16x16x16xf32>, vector<2x16x1x16xf32> -> vector<2x16x18x16xf32>
    %13 = tpu.concatenate %11, %12, %11 in 1 : vector<2x1x18x16xf32>, vector<2x16x18x16xf32>, vector<2x1x18x16xf32> -> vector<2x18x18x16xf32>
    %14 = vector.extract_strided_slice %13 {offsets = [0, 0, 0, 0], sizes = [2, 16, 16, 16], strides = [1, 1, 1, 1]} : vector<2x18x18x16xf32> to vector<2x16x16x16xf32>
    %15 = vector.extract_strided_slice %13 {offsets = [0, 0, 1, 0], sizes = [2, 16, 16, 16], strides = [1, 1, 1, 1]} : vector<2x18x18x16xf32> to vector<2x16x16x16xf32>
    %16 = vector.extract_strided_slice %13 {offsets = [0, 0, 2, 0], sizes = [2, 16, 16, 16], strides = [1, 1, 1, 1]} : vector<2x18x18x16xf32> to vector<2x16x16x16xf32>
    %17 = vector.extract_strided_slice %13 {offsets = [0, 1, 0, 0], sizes = [2, 16, 16, 16], strides = [1, 1, 1, 1]} : vector<2x18x18x16xf32> to vector<2x16x16x16xf32>
    %18 = vector.extract_strided_slice %13 {offsets = [0, 1, 1, 0], sizes = [2, 16, 16, 16], strides = [1, 1, 1, 1]} : vector<2x18x18x16xf32> to vector<2x16x16x16xf32>
    %19 = vector.extract_strided_slice %13 {offsets = [0, 1, 2, 0], sizes = [2, 16, 16, 16], strides = [1, 1, 1, 1]} : vector<2x18x18x16xf32> to vector<2x16x16x16xf32>
    %20 = vector.extract_strided_slice %13 {offsets = [0, 2, 0, 0], sizes = [2, 16, 16, 16], strides = [1, 1, 1, 1]} : vector<2x18x18x16xf32> to vector<2x16x16x16xf32>
    %21 = vector.extract_strided_slice %13 {offsets = [0, 2, 1, 0], sizes = [2, 16, 16, 16], strides = [1, 1, 1, 1]} : vector<2x18x18x16xf32> to vector<2x16x16x16xf32>
    %22 = vector.extract_strided_slice %13 {offsets = [0, 2, 2, 0], sizes = [2, 16, 16, 16], strides = [1, 1, 1, 1]} : vector<2x18x18x16xf32> to vector<2x16x16x16xf32>
    %23 = tpu.concatenate %14, %15, %16, %17, %18, %19, %20, %21, %22 in 3 : vector<2x16x16x16xf32>, vector<2x16x16x16xf32>, vector<2x16x16x16xf32>, vector<2x16x16x16xf32>, vector<2x16x16x16xf32>, vector<2x16x16x16xf32>, vector<2x16x16x16xf32>, vector<2x16x16x16xf32>, vector<2x16x16x16xf32> -> vector<2x16x16x144xf32>
    %24 = vector.shape_cast %23 : vector<2x16x16x144xf32> to vector<512x144xf32>
    %c0_9 = arith.constant 0 : index
    %c0_10 = arith.constant 0 : index
    %25 = vector.load %arg4[%c0_9, %c0_10] : memref<144x32xf32, #tpu.memory_space<vmem>>, vector<144x32xf32>
    %cst_11 = arith.constant dense<0.000000e+00> : vector<512x32xf32>
    %26 = tpu.matmul %24, %25, %cst_11 {dimension_numbers = #tpu.dot_dimension_numbers<[1], [0], [0], [1], [0, 0, 1, 1], [], []>} : vector<512x144xf32>, vector<144x32xf32>, vector<512x32xf32> -> vector<512x32xf32>
    %c0_12 = arith.constant 0 : index
    %c0_13 = arith.constant 0 : index
    %27 = vector.load %arg5[%c0_12, %c0_13] : memref<1x32xf32, #tpu.memory_space<vmem>>, vector<1x32xf32>
    %28 = vector.broadcast %27 : vector<1x32xf32> to vector<512x32xf32>
    %29 = arith.addf %26, %28 : vector<512x32xf32>
    %cst_14 = arith.constant 0.000000e+00 : f32
    %30 = vector.broadcast %cst_14 : f32 to vector<512x32xf32>
    %31 = arith.maximumf %29, %30 : vector<512x32xf32>
    %32 = vector.shape_cast %31 : vector<512x32xf32> to vector<2x16x16x32xf32>
    %33 = vector.extract_strided_slice %32 {offsets = [0, 0, 1, 0], sizes = [2, 16, 15, 32], strides = [1, 1, 1, 1]} : vector<2x16x16x32xf32> to vector<2x16x15x32xf32>
    %34 = vector.extract_strided_slice %32 {offsets = [0, 0, 15, 0], sizes = [2, 16, 1, 32], strides = [1, 1, 1, 1]} : vector<2x16x16x32xf32> to vector<2x16x1x32xf32>
    %35 = tpu.concatenate %33, %34 in 2 : vector<2x16x15x32xf32>, vector<2x16x1x32xf32> -> vector<2x16x16x32xf32>
    %36 = vector.extract_strided_slice %32 {offsets = [0, 1, 0, 0], sizes = [2, 15, 16, 32], strides = [1, 1, 1, 1]} : vector<2x16x16x32xf32> to vector<2x15x16x32xf32>
    %37 = vector.extract_strided_slice %32 {offsets = [0, 15, 0, 0], sizes = [2, 1, 16, 32], strides = [1, 1, 1, 1]} : vector<2x16x16x32xf32> to vector<2x1x16x32xf32>
    %38 = tpu.concatenate %36, %37 in 1 : vector<2x15x16x32xf32>, vector<2x1x16x32xf32> -> vector<2x16x16x32xf32>
    %39 = vector.extract_strided_slice %35 {offsets = [0, 1, 0, 0], sizes = [2, 15, 16, 32], strides = [1, 1, 1, 1]} : vector<2x16x16x32xf32> to vector<2x15x16x32xf32>
    %40 = vector.extract_strided_slice %35 {offsets = [0, 15, 0, 0], sizes = [2, 1, 16, 32], strides = [1, 1, 1, 1]} : vector<2x16x16x32xf32> to vector<2x1x16x32xf32>
    %41 = tpu.concatenate %39, %40 in 1 : vector<2x15x16x32xf32>, vector<2x1x16x32xf32> -> vector<2x16x16x32xf32>
    %42 = arith.maximumf %32, %35 : vector<2x16x16x32xf32>
    %43 = arith.maximumf %38, %41 : vector<2x16x16x32xf32>
    %44 = arith.maximumf %42, %43 : vector<2x16x16x32xf32>
    %c0_15 = arith.constant 0 : index
    %c0_16 = arith.constant 0 : index
    %c0_17 = arith.constant 0 : index
    %c0_18 = arith.constant 0 : index
    %45 = vector.load %arg6[%c0_15, %c0_16, %c0_17, %c0_18] : memref<2x16x16x32xf32, #tpu.memory_space<vmem>>, vector<2x16x16x32xf32>
    %46 = vector.extract_strided_slice %45 {offsets = [0, 0, 0, 0], sizes = [1, 16, 16, 32], strides = [1, 1, 1, 1]} : vector<2x16x16x32xf32> to vector<1x16x16x32xf32>
    %47 = vector.broadcast %46 : vector<1x16x16x32xf32> to vector<2x16x16x32xf32>
    %48 = arith.mulf %44, %47 : vector<2x16x16x32xf32>
    %cst_19 = arith.constant dense<0.000000e+00> : vector<2x16x16xf32>
    %49 = vector.multi_reduction <add>, %48, %cst_19 [3] : vector<2x16x16x32xf32> to vector<2x16x16xf32>
    %50 = vector.shape_cast %49 : vector<2x16x16xf32> to vector<2x16x16x1xf32>
    %cst_20 = arith.constant dense<0.000000e+00> : vector<2x16x1xf32>
    %51 = vector.multi_reduction <add>, %50, %cst_20 [2] : vector<2x16x16x1xf32> to vector<2x16x1xf32>
    %52 = vector.shape_cast %51 : vector<2x16x1xf32> to vector<2x16x1x1xf32>
    %cst_21 = arith.constant dense<0.000000e+00> : vector<2x1x1xf32>
    %53 = vector.multi_reduction <add>, %52, %cst_21 [1] : vector<2x16x1x1xf32> to vector<2x1x1xf32>
    %54 = vector.shape_cast %53 : vector<2x1x1xf32> to vector<2x1x1x1xf32>
    %55 = vector.extract_strided_slice %45 {offsets = [1, 0, 0, 0], sizes = [1, 16, 16, 32], strides = [1, 1, 1, 1]} : vector<2x16x16x32xf32> to vector<1x16x16x32xf32>
    %56 = vector.broadcast %55 : vector<1x16x16x32xf32> to vector<2x16x16x32xf32>
    %57 = arith.mulf %44, %56 : vector<2x16x16x32xf32>
    %cst_22 = arith.constant dense<0.000000e+00> : vector<2x16x16xf32>
    %58 = vector.multi_reduction <add>, %57, %cst_22 [3] : vector<2x16x16x32xf32> to vector<2x16x16xf32>
    %59 = vector.shape_cast %58 : vector<2x16x16xf32> to vector<2x16x16x1xf32>
    %cst_23 = arith.constant dense<0.000000e+00> : vector<2x16x1xf32>
    %60 = vector.multi_reduction <add>, %59, %cst_23 [2] : vector<2x16x16x1xf32> to vector<2x16x1xf32>
    %61 = vector.shape_cast %60 : vector<2x16x1xf32> to vector<2x16x1x1xf32>
    %cst_24 = arith.constant dense<0.000000e+00> : vector<2x1x1xf32>
    %62 = vector.multi_reduction <add>, %61, %cst_24 [1] : vector<2x16x1x1xf32> to vector<2x1x1xf32>
    %63 = vector.shape_cast %62 : vector<2x1x1xf32> to vector<2x1x1x1xf32>
    %64 = tpu.concatenate %54, %63 in 3 : vector<2x1x1x1xf32>, vector<2x1x1x1xf32> -> vector<2x1x1x2xf32>
    %c0_25 = arith.constant 0 : index
    %c0_26 = arith.constant 0 : index
    %c0_27 = arith.constant 0 : index
    %c0_28 = arith.constant 0 : index
    %65 = vector.load %arg7[%c0_25, %c0_26, %c0_27, %c0_28] : memref<1x1x1x2xf32, #tpu.memory_space<vmem>>, vector<1x1x1x2xf32>
    %66 = vector.broadcast %65 : vector<1x1x1x2xf32> to vector<2x1x1x2xf32>
    %67 = arith.addf %64, %66 : vector<2x1x1x2xf32>
    %c0_29 = arith.constant 0 : index
    %c0_30 = arith.constant 0 : index
    %c0_31 = arith.constant 0 : index
    %c0_32 = arith.constant 0 : index
    %68 = vector.load %arg8[%c0_29, %c0_30, %c0_31, %c0_32] : memref<2x1x1x10xf32, #tpu.memory_space<vmem>>, vector<2x1x1x10xf32>
    %69 = vector.extract_strided_slice %67 {offsets = [0, 0, 0, 0], sizes = [2, 1, 1, 1], strides = [1, 1, 1, 1]} : vector<2x1x1x2xf32> to vector<2x1x1x1xf32>
    %70 = vector.extract_strided_slice %68 {offsets = [0, 0, 0, 0], sizes = [1, 1, 1, 10], strides = [1, 1, 1, 1]} : vector<2x1x1x10xf32> to vector<1x1x1x10xf32>
    %71 = vector.broadcast %69 : vector<2x1x1x1xf32> to vector<2x1x1x10xf32>
    %72 = vector.broadcast %70 : vector<1x1x1x10xf32> to vector<2x1x1x10xf32>
    %73 = arith.mulf %71, %72 : vector<2x1x1x10xf32>
    %74 = vector.extract_strided_slice %67 {offsets = [0, 0, 0, 1], sizes = [2, 1, 1, 1], strides = [1, 1, 1, 1]} : vector<2x1x1x2xf32> to vector<2x1x1x1xf32>
    %75 = vector.extract_strided_slice %68 {offsets = [1, 0, 0, 0], sizes = [1, 1, 1, 10], strides = [1, 1, 1, 1]} : vector<2x1x1x10xf32> to vector<1x1x1x10xf32>
    %76 = vector.broadcast %74 : vector<2x1x1x1xf32> to vector<2x1x1x10xf32>
    %77 = vector.broadcast %75 : vector<1x1x1x10xf32> to vector<2x1x1x10xf32>
    %78 = arith.mulf %76, %77 : vector<2x1x1x10xf32>
    %79 = arith.addf %73, %78 : vector<2x1x1x10xf32>
    %c0_33 = arith.constant 0 : index
    %c0_34 = arith.constant 0 : index
    %c0_35 = arith.constant 0 : index
    %c0_36 = arith.constant 0 : index
    %80 = vector.load %arg9[%c0_33, %c0_34, %c0_35, %c0_36] : memref<1x1x1x10xf32, #tpu.memory_space<vmem>>, vector<1x1x1x10xf32>
    %81 = vector.broadcast %80 : vector<1x1x1x10xf32> to vector<2x1x1x10xf32>
    %82 = arith.addf %79, %81 : vector<2x1x1x10xf32>
    %c0_37 = arith.constant 0 : index
    %c0_38 = arith.constant 0 : index
    %c0_39 = arith.constant 0 : index
    %c0_40 = arith.constant 0 : index
    %83 = vector.load %arg11[%c0_37, %c0_38, %c0_39, %c0_40] : memref<2x1x1x2xf32, #tpu.memory_space<vmem>>, vector<2x1x1x2xf32>
    tpu.vector_store %arg11[%c0_37, %c0_38, %c0_39, %c0_40], %67 {strides = array<i32>} : memref<2x1x1x2xf32, #tpu.memory_space<vmem>>, vector<2x1x1x2xf32>,
    %c0_41 = arith.constant 0 : index
    %c0_42 = arith.constant 0 : index
    %c0_43 = arith.constant 0 : index
    %c0_44 = arith.constant 0 : index
    %84 = vector.load %arg10[%c0_41, %c0_42, %c0_43, %c0_44] : memref<2x1x1x10xf32, #tpu.memory_space<vmem>>, vector<2x1x1x10xf32>
    tpu.vector_store %arg10[%c0_41, %c0_42, %c0_43, %c0_44], %82 {strides = array<i32>} : memref<2x1x1x10xf32, #tpu.memory_space<vmem>>, vector<2x1x1x10xf32>,
    return
  }
  func.func @transform_0(%arg0: i32) -> (i32, i32, i32) {
    %c0_i32 = arith.constant 0 : i32
    %c0_i32_0 = arith.constant 0 : i32
    %c0_i32_1 = arith.constant 0 : i32
    return %arg0, %c0_i32, %c0_i32_0 : i32, i32, i32
  }
  func.func @transform_1(%arg0: i32) -> (i32, i32) {
    %c0_i32 = arith.constant 0 : i32
    %c0_i32_0 = arith.constant 0 : i32
    %c0_i32_1 = arith.constant 0 : i32
    return %c0_i32, %c0_i32_0 : i32, i32
  }
  func.func @transform_2(%arg0: i32) -> (i32, i32) {
    %c0_i32 = arith.constant 0 : i32
    %c0_i32_0 = arith.constant 0 : i32
    %c0_i32_1 = arith.constant 0 : i32
    return %c0_i32, %c0_i32_0 : i32, i32
  }
  func.func @transform_3(%arg0: i32) -> (i32, i32) {
    %c0_i32 = arith.constant 0 : i32
    %c0_i32_0 = arith.constant 0 : i32
    %c0_i32_1 = arith.constant 0 : i32
    return %c0_i32, %c0_i32_0 : i32, i32
  }
  func.func @transform_4(%arg0: i32) -> (i32, i32) {
    %c0_i32 = arith.constant 0 : i32
    %c0_i32_0 = arith.constant 0 : i32
    %c0_i32_1 = arith.constant 0 : i32
    return %c0_i32, %c0_i32_0 : i32, i32
  }
  func.func @transform_5(%arg0: i32) -> (i32, i32, i32, i32) {
    %c0_i32 = arith.constant 0 : i32
    %c0_i32_0 = arith.constant 0 : i32
    %c0_i32_1 = arith.constant 0 : i32
    %c0_i32_2 = arith.constant 0 : i32
    %c0_i32_3 = arith.constant 0 : i32
    return %c0_i32, %c0_i32_0, %c0_i32_1, %c0_i32_2 : i32, i32, i32, i32
  }
  func.func @transform_6(%arg0: i32) -> (i32, i32, i32, i32) {
    %c0_i32 = arith.constant 0 : i32
    %c0_i32_0 = arith.constant 0 : i32
    %c0_i32_1 = arith.constant 0 : i32
    %c0_i32_2 = arith.constant 0 : i32
    %c0_i32_3 = arith.constant 0 : i32
    return %c0_i32, %c0_i32_0, %c0_i32_1, %c0_i32_2 : i32, i32, i32, i32
  }
  func.func @transform_7(%arg0: i32) -> (i32, i32, i32, i32) {
    %c0_i32 = arith.constant 0 : i32
    %c0_i32_0 = arith.constant 0 : i32
    %c0_i32_1 = arith.constant 0 : i32
    %c0_i32_2 = arith.constant 0 : i32
    %c0_i32_3 = arith.constant 0 : i32
    return %c0_i32, %c0_i32_0, %c0_i32_1, %c0_i32_2 : i32, i32, i32, i32
  }
  func.func @transform_8(%arg0: i32) -> (i32, i32, i32, i32) {
    %c0_i32 = arith.constant 0 : i32
    %c0_i32_0 = arith.constant 0 : i32
    %c0_i32_1 = arith.constant 0 : i32
    %c0_i32_2 = arith.constant 0 : i32
    %c0_i32_3 = arith.constant 0 : i32
    return %c0_i32, %c0_i32_0, %c0_i32_1, %c0_i32_2 : i32, i32, i32, i32
  }
  func.func @transform_9(%arg0: i32) -> (i32, i32, i32, i32) {
    %c0_i32 = arith.constant 0 : i32
    %c0_i32_0 = arith.constant 0 : i32
    %c0_i32_1 = arith.constant 0 : i32
    %c0_i32_2 = arith.constant 0 : i32
    return %arg0, %c0_i32, %c0_i32_0, %c0_i32_1 : i32, i32, i32, i32
  }
  func.func @transform_10(%arg0: i32) -> (i32, i32, i32, i32) {
    %c0_i32 = arith.constant 0 : i32
    %c0_i32_0 = arith.constant 0 : i32
    %c0_i32_1 = arith.constant 0 : i32
    %c0_i32_2 = arith.constant 0 : i32
    return %arg0, %c0_i32, %c0_i32_0, %c0_i32_1 : i32, i32, i32, i32
  }
}

</mosaic_0001>

<llo_original>
// kernel: simple_cnn_forward.1
$region0: #{simple_cnn_forward.1}
  #allocation0 [shape = 'u32[]', space=smem, size = 0x4, offset = 0x4, fixed_abs, tag = 'smem constant byte address 0x4 - core index']
  #allocation1 [shape = 'u32[144,128]{1,0:T(1,128)}', space=vmem, size = 0x12000, scoped, tag = 'internal scratch']
  %s0 = inlined_call_operand.vmem [shape: f32[2,256,9], index: 0, kind: input, shape index: {}]
  %s1 = inlined_call_operand.vmem [shape: f32[9,16], index: 1, kind: input, shape index: {}]
  %s2 = inlined_call_operand.vmem [shape: f32[1,16], index: 2, kind: input, shape index: {}]
  %s3 = inlined_call_operand.vmem [shape: f32[144,32], index: 3, kind: input, shape index: {}]
  %s4 = inlined_call_operand.vmem [shape: f32[1,32], index: 4, kind: input, shape index: {}]
  %s5 = inlined_call_operand.vmem [shape: f32[2,16,16,32], index: 5, kind: input, shape index: {}]
  %s6 = inlined_call_operand.vmem [shape: f32[1,1,1,2], index: 6, kind: input, shape index: {}]
  %s7 = inlined_call_operand.vmem [shape: f32[2,1,1,10], index: 7, kind: input, shape index: {}]
  %s8 = inlined_call_operand.vmem [shape: f32[1,1,1,10], index: 8, kind: input, shape index: {}]
  %s9 = inlined_call_operand.hbm [shape: f32[2,1,1,10], index: 9, kind: output, shape index: {0}]
  %s10 = inlined_call_operand.hbm [shape: f32[2,1,1,2], index: 10, kind: output, shape index: {1}]
  %11 = xla_tuple %s9, %s10
  %s12 = sld [smem:[#allocation0]]
  $region54: #{simple_cnn_forward.1} parent=0
    _
  %s14 = ssub.s32 1, %s12
  %s15 = scalar_select 0, %s14, %s12
  $region1: #{simple_cnn_forward.1} parent=0
    #allocation2 [shape = 'u8[1024]{0}', space=vmem, size = 0x400, scoped, tag = 'output window, operand 0, single buffered']
    #allocation3 [shape = 's32[1]{0}', space=sflag, size = 0x4, scoped, tag = 'scoped memory for simple_cnn_forward.1']
    #allocation4 [shape = 'u8[1024]{0}', space=vmem, size = 0x400, scoped, tag = 'output window, operand 1, single buffered']
    #allocation5 [shape = 's32[1]{0}', space=sflag, size = 0x4, scoped, tag = 'scoped memory for simple_cnn_forward.1']
    %16 = vsyncpa [#allocation3], 0
    %17 = vsyncpa [#allocation5], 0
    // Predicated region
    $region2: #{simple_cnn_forward.1} parent=1 // pred_check
      _
    $region3: #{simple_cnn_forward.1} parent=1 // pred_check_branch
      %19 = sbr.rel (0) target = $region5
    $region4: #{simple_cnn_forward.1} parent=1 // pred_region
      _
    $region5: #{simple_cnn_forward.1} parent=1 // pred_fallthru
      _
    // Predicated region
    $region6: #{simple_cnn_forward.1} parent=1 // pred_check
      _
    $region7: #{simple_cnn_forward.1} parent=1 // pred_check_branch
      %21 = sbr.rel (0) target = $region9
    $region8: #{simple_cnn_forward.1} parent=1 // pred_region
      _
    $region9: #{simple_cnn_forward.1} parent=1 // pred_fallthru
      _
    // Predicated region
    $region10: #{simple_cnn_forward.1} parent=1 // pred_check
      _
    $region11: #{simple_cnn_forward.1} parent=1 // pred_check_branch
      %23 = sbr.rel (0) target = $region13
    $region12: #{simple_cnn_forward.1} parent=1 // pred_region
      _
    $region13: #{simple_cnn_forward.1} parent=1 // pred_fallthru
      _
    // Predicated region
    $region14: #{simple_cnn_forward.1} parent=1 // pred_check
      _
    $region15: #{simple_cnn_forward.1} parent=1 // pred_check_branch
      %25 = sbr.rel (0) target = $region17
    $region16: #{simple_cnn_forward.1} parent=1 // pred_region
      _
    $region17: #{simple_cnn_forward.1} parent=1 // pred_fallthru
      _
    // Predicated region
    $region18: #{simple_cnn_forward.1} parent=1 // pred_check
      _
    $region19: #{simple_cnn_forward.1} parent=1 // pred_check_branch
      %27 = sbr.rel (0) target = $region21
    $region20: #{simple_cnn_forward.1} parent=1 // pred_region
      _
    $region21: #{simple_cnn_forward.1} parent=1 // pred_fallthru
      _
    // Predicated region
    $region22: #{simple_cnn_forward.1} parent=1 // pred_check
      _
    $region23: #{simple_cnn_forward.1} parent=1 // pred_check_branch
      %29 = sbr.rel (0) target = $region25
    $region24: #{simple_cnn_forward.1} parent=1 // pred_region
      _
    $region25: #{simple_cnn_forward.1} parent=1 // pred_fallthru
      _
    // Predicated region
    $region26: #{simple_cnn_forward.1} parent=1 // pred_check
      _
    $region27: #{simple_cnn_forward.1} parent=1 // pred_check_branch
      %31 = sbr.rel (0) target = $region29
    $region28: #{simple_cnn_forward.1} parent=1 // pred_region
      _
    $region29: #{simple_cnn_forward.1} parent=1 // pred_fallthru
      _
    // Predicated region
    $region30: #{simple_cnn_forward.1} parent=1 // pred_check
      _
    $region31: #{simple_cnn_forward.1} parent=1 // pred_check_branch
      %33 = sbr.rel (0) target = $region33
    $region32: #{simple_cnn_forward.1} parent=1 // pred_region
      _
    $region33: #{simple_cnn_forward.1} parent=1 // pred_fallthru
      _
    // Predicated region
    $region34: #{simple_cnn_forward.1} parent=1 // pred_check
      _
    $region35: #{simple_cnn_forward.1} parent=1 // pred_check_branch
      %35 = sbr.rel (0) target = $region37
    $region36: #{simple_cnn_forward.1} parent=1 // pred_region
      _
    $region37: #{simple_cnn_forward.1} parent=1 // pred_fallthru
      _
    %v36 = vld [vmem:[%s0] sm:$0xff]
    %v37 = vld [vmem:[%s0 + $0x8] sm:$0xff]
    %v38 = vld [vmem:[%s0 + $0x10] sm:$0xff]
    %v39 = vld [vmem:[%s0 + $0x18] sm:$0xff]
    %v40 = vld [vmem:[%s0 + $0x20] sm:$0xff]
    %v41 = vld [vmem:[%s0 + $0x28] sm:$0xff]
    %v42 = vld [vmem:[%s0 + $0x30] sm:$0xff]
    %v43 = vld [vmem:[%s0 + $0x38] sm:$0xff]
    %v44 = vld [vmem:[%s0 + $0x40] sm:$0xff]
    %v45 = vld [vmem:[%s0 + $0x48] sm:$0xff]
    %v46 = vld [vmem:[%s0 + $0x50] sm:$0xff]
    %v47 = vld [vmem:[%s0 + $0x58] sm:$0xff]
    %v48 = vld [vmem:[%s0 + $0x60] sm:$0xff]
    %v49 = vld [vmem:[%s0 + $0x68] sm:$0xff]
    %v50 = vld [vmem:[%s0 + $0x70] sm:$0xff]
    %v51 = vld [vmem:[%s0 + $0x78] sm:$0xff]
    %v52 = vld [vmem:[%s0 + $0x80] sm:$0xff]
    %v53 = vld [vmem:[%s0 + $0x88] sm:$0xff]
    %v54 = vld [vmem:[%s0 + $0x90] sm:$0xff]
    %v55 = vld [vmem:[%s0 + $0x98] sm:$0xff]
    %v56 = vld [vmem:[%s0 + $0xa0] sm:$0xff]
    %v57 = vld [vmem:[%s0 + $0xa8] sm:$0xff]
    %v58 = vld [vmem:[%s0 + $0xb0] sm:$0xff]
    %v59 = vld [vmem:[%s0 + $0xb8] sm:$0xff]
    %v60 = vld [vmem:[%s0 + $0xc0] sm:$0xff]
    %v61 = vld [vmem:[%s0 + $0xc8] sm:$0xff]
    %v62 = vld [vmem:[%s0 + $0xd0] sm:$0xff]
    %v63 = vld [vmem:[%s0 + $0xd8] sm:$0xff]
    %v64 = vld [vmem:[%s0 + $0xe0] sm:$0xff]
    %v65 = vld [vmem:[%s0 + $0xe8] sm:$0xff]
    %v66 = vld [vmem:[%s0 + $0xf0] sm:$0xff]
    %v67 = vld [vmem:[%s0 + $0xf8] sm:$0xff]
    %v68 = vld [vmem:[%s0 + $0x100] sm:$0xff]
    %v69 = vld [vmem:[%s0 + $0x108] sm:$0xff]
    %v70 = vld [vmem:[%s0 + $0x110] sm:$0xff]
    %v71 = vld [vmem:[%s0 + $0x118] sm:$0xff]
    %v72 = vld [vmem:[%s0 + $0x120] sm:$0xff]
    %v73 = vld [vmem:[%s0 + $0x128] sm:$0xff]
    %v74 = vld [vmem:[%s0 + $0x130] sm:$0xff]
    %v75 = vld [vmem:[%s0 + $0x138] sm:$0xff]
    %v76 = vld [vmem:[%s0 + $0x140] sm:$0xff]
    %v77 = vld [vmem:[%s0 + $0x148] sm:$0xff]
    %v78 = vld [vmem:[%s0 + $0x150] sm:$0xff]
    %v79 = vld [vmem:[%s0 + $0x158] sm:$0xff]
    %v80 = vld [vmem:[%s0 + $0x160] sm:$0xff]
    %v81 = vld [vmem:[%s0 + $0x168] sm:$0xff]
    %v82 = vld [vmem:[%s0 + $0x170] sm:$0xff]
    %v83 = vld [vmem:[%s0 + $0x178] sm:$0xff]
    %v84 = vld [vmem:[%s0 + $0x180] sm:$0xff]
    %v85 = vld [vmem:[%s0 + $0x188] sm:$0xff]
    %v86 = vld [vmem:[%s0 + $0x190] sm:$0xff]
    %v87 = vld [vmem:[%s0 + $0x198] sm:$0xff]
    %v88 = vld [vmem:[%s0 + $0x1a0] sm:$0xff]
    %v89 = vld [vmem:[%s0 + $0x1a8] sm:$0xff]
    %v90 = vld [vmem:[%s0 + $0x1b0] sm:$0xff]
    %v91 = vld [vmem:[%s0 + $0x1b8] sm:$0xff]
    %v92 = vld [vmem:[%s0 + $0x1c0] sm:$0xff]
    %v93 = vld [vmem:[%s0 + $0x1c8] sm:$0xff]
    %v94 = vld [vmem:[%s0 + $0x1d0] sm:$0xff]
    %v95 = vld [vmem:[%s0 + $0x1d8] sm:$0xff]
    %v96 = vld [vmem:[%s0 + $0x1e0] sm:$0xff]
    %v97 = vld [vmem:[%s0 + $0x1e8] sm:$0xff]
    %v98 = vld [vmem:[%s0 + $0x1f0] sm:$0xff]
    %v99 = vld [vmem:[%s0 + $0x1f8] sm:$0xff]
    %v100 = vld [vmem:[%s1] sm:$0xff]
    %v101 = vld [vmem:[%s1 + $0x8] sm:$0x1]
    %v102 = vld [vmem:[%s2] sm:$0x1]
    %v104 = vlaneseq
    %v105 = vshrl.u32 %v104, 7
    %v106 = vsub.s32 0, %v105
    %v107 = vrot.slane %v102, %v106
    %vm109 = vcmask 72704
    %v111 = vsel %vm109, %v36, 0
    %v114 = vsel %vm109, %v37, 0
    %v117 = vsel %vm109, %v38, 0
    %v120 = vsel %vm109, %v39, 0
    %v123 = vsel %vm109, %v40, 0
    %v126 = vsel %vm109, %v41, 0
    %v129 = vsel %vm109, %v42, 0
    %v132 = vsel %vm109, %v43, 0
    %v135 = vsel %vm109, %v44, 0
    %v138 = vsel %vm109, %v45, 0
    %v141 = vsel %vm109, %v46, 0
    %v144 = vsel %vm109, %v47, 0
    %v147 = vsel %vm109, %v48, 0
    %v150 = vsel %vm109, %v49, 0
    %v153 = vsel %vm109, %v50, 0
    %v156 = vsel %vm109, %v51, 0
    %v159 = vsel %vm109, %v52, 0
    %v162 = vsel %vm109, %v53, 0
    %v165 = vsel %vm109, %v54, 0
    %v168 = vsel %vm109, %v55, 0
    %v171 = vsel %vm109, %v56, 0
    %v174 = vsel %vm109, %v57, 0
    %v177 = vsel %vm109, %v58, 0
    %v180 = vsel %vm109, %v59, 0
    %v183 = vsel %vm109, %v60, 0
    %v186 = vsel %vm109, %v61, 0
    %v189 = vsel %vm109, %v62, 0
    %v192 = vsel %vm109, %v63, 0
    %v195 = vsel %vm109, %v64, 0
    %v198 = vsel %vm109, %v65, 0
    %v201 = vsel %vm109, %v66, 0
    %v204 = vsel %vm109, %v67, 0
    %v207 = vsel %vm109, %v68, 0
    %v210 = vsel %vm109, %v69, 0
    %v213 = vsel %vm109, %v70, 0
    %v216 = vsel %vm109, %v71, 0
    %v219 = vsel %vm109, %v72, 0
    %v222 = vsel %vm109, %v73, 0
    %v225 = vsel %vm109, %v74, 0
    %v228 = vsel %vm109, %v75, 0
    %v231 = vsel %vm109, %v76, 0
    %v234 = vsel %vm109, %v77, 0
    %v237 = vsel %vm109, %v78, 0
    %v240 = vsel %vm109, %v79, 0
    %v243 = vsel %vm109, %v80, 0
    %v246 = vsel %vm109, %v81, 0
    %v249 = vsel %vm109, %v82, 0
    %v252 = vsel %vm109, %v83, 0
    %v255 = vsel %vm109, %v84, 0
    %v258 = vsel %vm109, %v85, 0
    %v261 = vsel %vm109, %v86, 0
    %v264 = vsel %vm109, %v87, 0
    %v267 = vsel %vm109, %v88, 0
    %v270 = vsel %vm109, %v89, 0
    %v273 = vsel %vm109, %v90, 0
    %v276 = vsel %vm109, %v91, 0
    %v279 = vsel %vm109, %v92, 0
    %v282 = vsel %vm109, %v93, 0
    %v285 = vsel %vm109, %v94, 0
    %v288 = vsel %vm109, %v95, 0
    %v291 = vsel %vm109, %v96, 0
    %v294 = vsel %vm109, %v97, 0
    %v297 = vsel %vm109, %v98, 0
    %v300 = vsel %vm109, %v99, 0
    %vm302 = vcmask 1040384
    %v304 = vsel %vm302, %v101, 0
    %306 = vmatprep.subr.mxu0 0.0
    %307 = vmatpush1.msra.mxu0 %v100
    %308 = vmatprep.subr.mxu0 0.0
    %309 = vmatpush1.msra.mxu0 %v304
    %310 = vmatprep.subr.mxu0 0.0
    %311 = vmatpush1.msra.mxu0 0.0
    %312 = vmatprep.subr.mxu0 0.0
    %313 = vmatpush1.msra.mxu0 0.0
    %314 = vmatprep.subr.mxu0 0.0
    %315 = vmatpush1.msra.mxu0 0.0
    %316 = vmatprep.subr.mxu0 0.0
    %317 = vmatpush1.msra.mxu0 0.0
    %318 = vmatprep.subr.mxu0 0.0
    %319 = vmatpush1.msra.mxu0 0.0
    %320 = vmatprep.subr.mxu0 0.0
    %321 = vmatpush1.msra.mxu0 0.0
    %322 = vmatprep.subr.mxu0 0.0
    %323 = vmatpush1.msra.mxu0 0.0
    %324 = vmatprep.subr.mxu0 0.0
    %325 = vmatpush1.msra.mxu0 0.0
    %326 = vmatprep.subr.mxu0 0.0
    %327 = vmatpush1.msra.mxu0 0.0
    %328 = vmatprep.subr.mxu0 0.0
    %329 = vmatpush1.msra.mxu0 0.0
    %330 = vmatprep.subr.mxu0 0.0
    %331 = vmatpush1.msra.mxu0 0.0
    %332 = vmatprep.subr.mxu0 0.0
    %333 = vmatpush1.msra.mxu0 0.0
    %334 = vmatprep.subr.mxu0 0.0
    %335 = vmatpush1.msra.mxu0 0.0
    %336 = vmatprep.subr.mxu0 0.0
    %337 = vmatpush1.msra.mxu0 0.0
    %338 = vmatprep.subr.mxu0 0.0
    %339 = vmatpush1.msra.mxu0 0.0
    %340 = vmatprep.subr.mxu0 0.0
    %341 = vmatpush1.msra.mxu0 0.0
    %342 = vmatprep.subr.mxu0 0.0
    %343 = vmatpush1.msra.mxu0 0.0
    %344 = vmatprep.subr.mxu0 0.0
    %345 = vmatpush1.msra.mxu0 0.0
    %346 = vmatprep.subr.mxu0 0.0
    %347 = vmatpush1.msra.mxu0 0.0
    %348 = vmatprep.subr.mxu0 0.0
    %349 = vmatpush1.msra.mxu0 0.0
    %350 = vmatprep.subr.mxu0 0.0
    %351 = vmatpush1.msra.mxu0 0.0
    %352 = vmatprep.subr.mxu0 0.0
    %353 = vmatpush1.msra.mxu0 0.0
    %354 = vmatprep.subr.mxu0 0.0
    %355 = vmatpush1.msra.mxu0 0.0
    %356 = vmatprep.subr.mxu0 0.0
    %357 = vmatpush1.msra.mxu0 0.0
    %358 = vmatprep.subr.mxu0 0.0
    %359 = vmatpush1.msra.mxu0 0.0
    %360 = vmatprep.subr.mxu0 0.0
    %361 = vmatpush1.msra.mxu0 0.0
    %362 = vmatprep.subr.mxu0 0.0
    %363 = vmatpush1.msra.mxu0 0.0
    %364 = vmatprep.subr.mxu0 0.0
    %365 = vmatpush1.msra.mxu0 0.0
    %366 = vmatprep.subr.mxu0 0.0
    %367 = vmatpush1.msra.mxu0 0.0
    %368 = vmatprep.subr.mxu0 0.0
    %369 = vmatpush1.msra.mxu0 0.0
    %370 = vmatprep.mubr.f32.mxu0 0.0
    %371 = vmatmul.mubr.f32.gmra.mrb[0].mxu0 %v111
    %v372 = vpop.f32.mrb[0].mxu0
    %v373 = vadd.f32 %v107, %v372
    %v374 = vpop.f32.mrb[0].mxu0
    %375 = vmatprep.mubr.f32.mxu0 0.0
    %376 = vmatmul.mubr.f32.gmra.mrb[0].mxu0 %v114
    %v377 = vpop.f32.mrb[0].mxu0
    %v378 = vadd.f32 %v107, %v377
    %v379 = vpop.f32.mrb[0].mxu0
    %380 = vmatprep.mubr.f32.mxu0 0.0
    %381 = vmatmul.mubr.f32.gmra.mrb[0].mxu0 %v117
    %v382 = vpop.f32.mrb[0].mxu0
    %v383 = vadd.f32 %v107, %v382
    %v384 = vpop.f32.mrb[0].mxu0
    %385 = vmatprep.mubr.f32.mxu0 0.0
    %386 = vmatmul.mubr.f32.gmra.mrb[0].mxu0 %v120
    %v387 = vpop.f32.mrb[0].mxu0
    %v388 = vadd.f32 %v107, %v387
    %v389 = vpop.f32.mrb[0].mxu0
    %390 = vmatprep.mubr.f32.mxu0 0.0
    %391 = vmatmul.mubr.f32.gmra.mrb[0].mxu0 %v123
    %v392 = vpop.f32.mrb[0].mxu0
    %v393 = vadd.f32 %v107, %v392
    %v394 = vpop.f32.mrb[0].mxu0
    %395 = vmatprep.mubr.f32.mxu0 0.0
    %396 = vmatmul.mubr.f32.gmra.mrb[0].mxu0 %v126
    %v397 = vpop.f32.mrb[0].mxu0
    %v398 = vadd.f32 %v107, %v397
    %v399 = vpop.f32.mrb[0].mxu0
    %400 = vmatprep.mubr.f32.mxu0 0.0
    %401 = vmatmul.mubr.f32.gmra.mrb[0].mxu0 %v129
    %v402 = vpop.f32.mrb[0].mxu0
    %v403 = vadd.f32 %v107, %v402
    %v404 = vpop.f32.mrb[0].mxu0
    %405 = vmatprep.mubr.f32.mxu0 0.0
    %406 = vmatmul.mubr.f32.gmra.mrb[0].mxu0 %v132
    %v407 = vpop.f32.mrb[0].mxu0
    %v408 = vadd.f32 %v107, %v407
    %v409 = vpop.f32.mrb[0].mxu0
    %410 = vmatprep.mubr.f32.mxu0 0.0
    %411 = vmatmul.mubr.f32.gmra.mrb[0].mxu0 %v135
    %v412 = vpop.f32.mrb[0].mxu0
    %v413 = vadd.f32 %v107, %v412
    %v414 = vpop.f32.mrb[0].mxu0
    %415 = vmatprep.mubr.f32.mxu0 0.0
    %416 = vmatmul.mubr.f32.gmra.mrb[0].mxu0 %v138
    %v417 = vpop.f32.mrb[0].mxu0
    %v418 = vadd.f32 %v107, %v417
    %v419 = vpop.f32.mrb[0].mxu0
    %420 = vmatprep.mubr.f32.mxu0 0.0
    %421 = vmatmul.mubr.f32.gmra.mrb[0].mxu0 %v141
    %v422 = vpop.f32.mrb[0].mxu0
    %v423 = vadd.f32 %v107, %v422
    %v424 = vpop.f32.mrb[0].mxu0
    %425 = vmatprep.mubr.f32.mxu0 0.0
    %426 = vmatmul.mubr.f32.gmra.mrb[0].mxu0 %v144
    %v427 = vpop.f32.mrb[0].mxu0
    %v428 = vadd.f32 %v107, %v427
    %v429 = vpop.f32.mrb[0].mxu0
    %430 = vmatprep.mubr.f32.mxu0 0.0
    %431 = vmatmul.mubr.f32.gmra.mrb[0].mxu0 %v147
    %v432 = vpop.f32.mrb[0].mxu0
    %v433 = vadd.f32 %v107, %v432
    %v434 = vpop.f32.mrb[0].mxu0
    %435 = vmatprep.mubr.f32.mxu0 0.0
    %436 = vmatmul.mubr.f32.gmra.mrb[0].mxu0 %v150
    %v437 = vpop.f32.mrb[0].mxu0
    %v438 = vadd.f32 %v107, %v437
    %v439 = vpop.f32.mrb[0].mxu0
    %440 = vmatprep.mubr.f32.mxu0 0.0
    %441 = vmatmul.mubr.f32.gmra.mrb[0].mxu0 %v153
    %v442 = vpop.f32.mrb[0].mxu0
    %v443 = vadd.f32 %v107, %v442
    %v444 = vpop.f32.mrb[0].mxu0
    %445 = vmatprep.mubr.f32.mxu0 0.0
    %446 = vmatmul.mubr.f32.gmra.mrb[0].mxu0 %v156
    %v447 = vpop.f32.mrb[0].mxu0
    %v448 = vadd.f32 %v107, %v447
    %v449 = vpop.f32.mrb[0].mxu0
    %450 = vmatprep.mubr.f32.mxu0 0.0
    %451 = vmatmul.mubr.f32.gmra.mrb[0].mxu0 %v159
    %v452 = vpop.f32.mrb[0].mxu0
    %v453 = vadd.f32 %v107, %v452
    %v454 = vpop.f32.mrb[0].mxu0
    %455 = vmatprep.mubr.f32.mxu0 0.0
    %456 = vmatmul.mubr.f32.gmra.mrb[0].mxu0 %v162
    %v457 = vpop.f32.mrb[0].mxu0
    %v458 = vadd.f32 %v107, %v457
    %v459 = vpop.f32.mrb[0].mxu0
    %460 = vmatprep.mubr.f32.mxu0 0.0
    %461 = vmatmul.mubr.f32.gmra.mrb[0].mxu0 %v165
    %v462 = vpop.f32.mrb[0].mxu0
    %v463 = vadd.f32 %v107, %v462
    %v464 = vpop.f32.mrb[0].mxu0
    %465 = vmatprep.mubr.f32.mxu0 0.0
    %466 = vmatmul.mubr.f32.gmra.mrb[0].mxu0 %v168
    %v467 = vpop.f32.mrb[0].mxu0
    %v468 = vadd.f32 %v107, %v467
    %v469 = vpop.f32.mrb[0].mxu0
    %470 = vmatprep.mubr.f32.mxu0 0.0
    %471 = vmatmul.mubr.f32.gmra.mrb[0].mxu0 %v171
    %v472 = vpop.f32.mrb[0].mxu0
    %v473 = vadd.f32 %v107, %v472
    %v474 = vpop.f32.mrb[0].mxu0
    %475 = vmatprep.mubr.f32.mxu0 0.0
    %476 = vmatmul.mubr.f32.gmra.mrb[0].mxu0 %v174
    %v477 = vpop.f32.mrb[0].mxu0
    %v478 = vadd.f32 %v107, %v477
    %v479 = vpop.f32.mrb[0].mxu0
    %480 = vmatprep.mubr.f32.mxu0 0.0
    %481 = vmatmul.mubr.f32.gmra.mrb[0].mxu0 %v177
    %v482 = vpop.f32.mrb[0].mxu0
    %v483 = vadd.f32 %v107, %v482
    %v484 = vpop.f32.mrb[0].mxu0
    %485 = vmatprep.mubr.f32.mxu0 0.0
    %486 = vmatmul.mubr.f32.gmra.mrb[0].mxu0 %v180
    %v487 = vpop.f32.mrb[0].mxu0
    %v488 = vadd.f32 %v107, %v487
    %v489 = vpop.f32.mrb[0].mxu0
    %490 = vmatprep.mubr.f32.mxu0 0.0
    %491 = vmatmul.mubr.f32.gmra.mrb[0].mxu0 %v183
    %v492 = vpop.f32.mrb[0].mxu0
    %v493 = vadd.f32 %v107, %v492
    %v494 = vpop.f32.mrb[0].mxu0
    %495 = vmatprep.mubr.f32.mxu0 0.0
    %496 = vmatmul.mubr.f32.gmra.mrb[0].mxu0 %v186
    %v497 = vpop.f32.mrb[0].mxu0
    %v498 = vadd.f32 %v107, %v497
    %v499 = vpop.f32.mrb[0].mxu0
    %500 = vmatprep.mubr.f32.mxu0 0.0
    %501 = vmatmul.mubr.f32.gmra.mrb[0].mxu0 %v189
    %v502 = vpop.f32.mrb[0].mxu0
    %v503 = vadd.f32 %v107, %v502
    %v504 = vpop.f32.mrb[0].mxu0
    %505 = vmatprep.mubr.f32.mxu0 0.0
    %506 = vmatmul.mubr.f32.gmra.mrb[0].mxu0 %v192
    %v507 = vpop.f32.mrb[0].mxu0
    %v508 = vadd.f32 %v107, %v507
    %v509 = vpop.f32.mrb[0].mxu0
    %510 = vmatprep.mubr.f32.mxu0 0.0
    %511 = vmatmul.mubr.f32.gmra.mrb[0].mxu0 %v195
    %v512 = vpop.f32.mrb[0].mxu0
    %v513 = vadd.f32 %v107, %v512
    %v514 = vpop.f32.mrb[0].mxu0
    %515 = vmatprep.mubr.f32.mxu0 0.0
    %516 = vmatmul.mubr.f32.gmra.mrb[0].mxu0 %v198
    %v517 = vpop.f32.mrb[0].mxu0
    %v518 = vadd.f32 %v107, %v517
    %v519 = vpop.f32.mrb[0].mxu0
    %520 = vmatprep.mubr.f32.mxu0 0.0
    %521 = vmatmul.mubr.f32.gmra.mrb[0].mxu0 %v201
    %v522 = vpop.f32.mrb[0].mxu0
    %v523 = vadd.f32 %v107, %v522
    %v524 = vpop.f32.mrb[0].mxu0
    %525 = vmatprep.mubr.f32.mxu0 0.0
    %526 = vmatmul.mubr.f32.gmra.mrb[0].mxu0 %v204
    %v527 = vpop.f32.mrb[0].mxu0
    %v528 = vadd.f32 %v107, %v527
    %v529 = vpop.f32.mrb[0].mxu0
    %530 = vmatprep.mubr.f32.mxu0 0.0
    %531 = vmatmul.mubr.f32.gmra.mrb[0].mxu0 %v207
    %v532 = vpop.f32.mrb[0].mxu0
    %v533 = vadd.f32 %v107, %v532
    %v534 = vpop.f32.mrb[0].mxu0
    %535 = vmatprep.mubr.f32.mxu0 0.0
    %536 = vmatmul.mubr.f32.gmra.mrb[0].mxu0 %v210
    %v537 = vpop.f32.mrb[0].mxu0
    %v538 = vadd.f32 %v107, %v537
    %v539 = vpop.f32.mrb[0].mxu0
    %540 = vmatprep.mubr.f32.mxu0 0.0
    %541 = vmatmul.mubr.f32.gmra.mrb[0].mxu0 %v213
    %v542 = vpop.f32.mrb[0].mxu0
    %v543 = vadd.f32 %v107, %v542
    %v544 = vpop.f32.mrb[0].mxu0
    %545 = vmatprep.mubr.f32.mxu0 0.0
    %546 = vmatmul.mubr.f32.gmra.mrb[0].mxu0 %v216
    %v547 = vpop.f32.mrb[0].mxu0
    %v548 = vadd.f32 %v107, %v547
    %v549 = vpop.f32.mrb[0].mxu0
    %550 = vmatprep.mubr.f32.mxu0 0.0
    %551 = vmatmul.mubr.f32.gmra.mrb[0].mxu0 %v219
    %v552 = vpop.f32.mrb[0].mxu0
    %v553 = vadd.f32 %v107, %v552
    %v554 = vpop.f32.mrb[0].mxu0
    %555 = vmatprep.mubr.f32.mxu0 0.0
    %556 = vmatmul.mubr.f32.gmra.mrb[0].mxu0 %v222
    %v557 = vpop.f32.mrb[0].mxu0
    %v558 = vadd.f32 %v107, %v557
    %v559 = vpop.f32.mrb[0].mxu0
    %560 = vmatprep.mubr.f32.mxu0 0.0
    %561 = vmatmul.mubr.f32.gmra.mrb[0].mxu0 %v225
    %v562 = vpop.f32.mrb[0].mxu0
    %v563 = vadd.f32 %v107, %v562
    %v564 = vpop.f32.mrb[0].mxu0
    %565 = vmatprep.mubr.f32.mxu0 0.0
    %566 = vmatmul.mubr.f32.gmra.mrb[0].mxu0 %v228
    %v567 = vpop.f32.mrb[0].mxu0
    %v568 = vadd.f32 %v107, %v567
    %v569 = vpop.f32.mrb[0].mxu0
    %570 = vmatprep.mubr.f32.mxu0 0.0
    %571 = vmatmul.mubr.f32.gmra.mrb[0].mxu0 %v231
    %v572 = vpop.f32.mrb[0].mxu0
    %v573 = vadd.f32 %v107, %v572
    %v574 = vpop.f32.mrb[0].mxu0
    %575 = vmatprep.mubr.f32.mxu0 0.0
    %576 = vmatmul.mubr.f32.gmra.mrb[0].mxu0 %v234
    %v577 = vpop.f32.mrb[0].mxu0
    %v578 = vadd.f32 %v107, %v577
    %v579 = vpop.f32.mrb[0].mxu0
    %580 = vmatprep.mubr.f32.mxu0 0.0
    %581 = vmatmul.mubr.f32.gmra.mrb[0].mxu0 %v237
    %v582 = vpop.f32.mrb[0].mxu0
    %v583 = vadd.f32 %v107, %v582
    %v584 = vpop.f32.mrb[0].mxu0
    %585 = vmatprep.mubr.f32.mxu0 0.0
    %586 = vmatmul.mubr.f32.gmra.mrb[0].mxu0 %v240
    %v587 = vpop.f32.mrb[0].mxu0
    %v588 = vadd.f32 %v107, %v587
    %v589 = vpop.f32.mrb[0].mxu0
    %590 = vmatprep.mubr.f32.mxu0 0.0
    %591 = vmatmul.mubr.f32.gmra.mrb[0].mxu0 %v243
    %v592 = vpop.f32.mrb[0].mxu0
    %v593 = vadd.f32 %v107, %v592
    %v594 = vpop.f32.mrb[0].mxu0
    %595 = vmatprep.mubr.f32.mxu0 0.0
    %596 = vmatmul.mubr.f32.gmra.mrb[0].mxu0 %v246
    %v597 = vpop.f32.mrb[0].mxu0
    %v598 = vadd.f32 %v107, %v597
    %v599 = vpop.f32.mrb[0].mxu0
    %600 = vmatprep.mubr.f32.mxu0 0.0
    %601 = vmatmul.mubr.f32.gmra.mrb[0].mxu0 %v249
    %v602 = vpop.f32.mrb[0].mxu0
    %v603 = vadd.f32 %v107, %v602
    %v604 = vpop.f32.mrb[0].mxu0
    %605 = vmatprep.mubr.f32.mxu0 0.0
    %606 = vmatmul.mubr.f32.gmra.mrb[0].mxu0 %v252
    %v607 = vpop.f32.mrb[0].mxu0
    %v608 = vadd.f32 %v107, %v607
    %v609 = vpop.f32.mrb[0].mxu0
    %610 = vmatprep.mubr.f32.mxu0 0.0
    %611 = vmatmul.mubr.f32.gmra.mrb[0].mxu0 %v255
    %v612 = vpop.f32.mrb[0].mxu0
    %v613 = vadd.f32 %v107, %v612
    %v614 = vpop.f32.mrb[0].mxu0
    %615 = vmatprep.mubr.f32.mxu0 0.0
    %616 = vmatmul.mubr.f32.gmra.mrb[0].mxu0 %v258
    %v617 = vpop.f32.mrb[0].mxu0
    %v618 = vadd.f32 %v107, %v617
    %v619 = vpop.f32.mrb[0].mxu0
    %620 = vmatprep.mubr.f32.mxu0 0.0
    %621 = vmatmul.mubr.f32.gmra.mrb[0].mxu0 %v261
    %v622 = vpop.f32.mrb[0].mxu0
    %v623 = vadd.f32 %v107, %v622
    %v624 = vpop.f32.mrb[0].mxu0
    %625 = vmatprep.mubr.f32.mxu0 0.0
    %626 = vmatmul.mubr.f32.gmra.mrb[0].mxu0 %v264
    %v627 = vpop.f32.mrb[0].mxu0
    %v628 = vadd.f32 %v107, %v627
    %v629 = vpop.f32.mrb[0].mxu0
    %630 = vmatprep.mubr.f32.mxu0 0.0
    %631 = vmatmul.mubr.f32.gmra.mrb[0].mxu0 %v267
    %v632 = vpop.f32.mrb[0].mxu0
    %v633 = vadd.f32 %v107, %v632
    %v634 = vpop.f32.mrb[0].mxu0
    %635 = vmatprep.mubr.f32.mxu0 0.0
    %636 = vmatmul.mubr.f32.gmra.mrb[0].mxu0 %v270
    %v637 = vpop.f32.mrb[0].mxu0
    %v638 = vadd.f32 %v107, %v637
    %v639 = vpop.f32.mrb[0].mxu0
    %640 = vmatprep.mubr.f32.mxu0 0.0
    %641 = vmatmul.mubr.f32.gmra.mrb[0].mxu0 %v273
    %v642 = vpop.f32.mrb[0].mxu0
    %v643 = vadd.f32 %v107, %v642
    %v644 = vpop.f32.mrb[0].mxu0
    %645 = vmatprep.mubr.f32.mxu0 0.0
    %646 = vmatmul.mubr.f32.gmra.mrb[0].mxu0 %v276
    %v647 = vpop.f32.mrb[0].mxu0
    %v648 = vadd.f32 %v107, %v647
    %v649 = vpop.f32.mrb[0].mxu0
    %650 = vmatprep.mubr.f32.mxu0 0.0
    %651 = vmatmul.mubr.f32.gmra.mrb[0].mxu0 %v279
    %v652 = vpop.f32.mrb[0].mxu0
    %v653 = vadd.f32 %v107, %v652
    %v654 = vpop.f32.mrb[0].mxu0
    %655 = vmatprep.mubr.f32.mxu0 0.0
    %656 = vmatmul.mubr.f32.gmra.mrb[0].mxu0 %v282
    %v657 = vpop.f32.mrb[0].mxu0
    %v658 = vadd.f32 %v107, %v657
    %v659 = vpop.f32.mrb[0].mxu0
    %660 = vmatprep.mubr.f32.mxu0 0.0
    %661 = vmatmul.mubr.f32.gmra.mrb[0].mxu0 %v285
    %v662 = vpop.f32.mrb[0].mxu0
    %v663 = vadd.f32 %v107, %v662
    %v664 = vpop.f32.mrb[0].mxu0
    %665 = vmatprep.mubr.f32.mxu0 0.0
    %666 = vmatmul.mubr.f32.gmra.mrb[0].mxu0 %v288
    %v667 = vpop.f32.mrb[0].mxu0
    %v668 = vadd.f32 %v107, %v667
    %v669 = vpop.f32.mrb[0].mxu0
    %670 = vmatprep.mubr.f32.mxu0 0.0
    %671 = vmatmul.mubr.f32.gmra.mrb[0].mxu0 %v291
    %v672 = vpop.f32.mrb[0].mxu0
    %v673 = vadd.f32 %v107, %v672
    %v674 = vpop.f32.mrb[0].mxu0
    %675 = vmatprep.mubr.f32.mxu0 0.0
    %676 = vmatmul.mubr.f32.gmra.mrb[0].mxu0 %v294
    %v677 = vpop.f32.mrb[0].mxu0
    %v678 = vadd.f32 %v107, %v677
    %v679 = vpop.f32.mrb[0].mxu0
    %680 = vmatprep.mubr.f32.mxu0 0.0
    %681 = vmatmul.mubr.f32.gmra.mrb[0].mxu0 %v297
    %v682 = vpop.f32.mrb[0].mxu0
    %v683 = vadd.f32 %v107, %v682
    %v684 = vpop.f32.mrb[0].mxu0
    %685 = vmatprep.mubr.f32.mxu0 0.0
    %686 = vmatmul.mubr.f32.gmra.mrb[0].mxu0 %v300
    %v687 = vpop.f32.mrb[0].mxu0
    %v688 = vadd.f32 %v107, %v687
    %v689 = vpop.f32.mrb[0].mxu0
    %690 = vdwg.mxu0
    %v691 = vmax.f32 %v373, 0.0
    %v692 = vmax.f32 %v378, 0.0
    %v693 = vmax.f32 %v383, 0.0
    %v694 = vmax.f32 %v388, 0.0
    %v695 = vmax.f32 %v393, 0.0
    %v696 = vmax.f32 %v398, 0.0
    %v697 = vmax.f32 %v403, 0.0
    %v698 = vmax.f32 %v408, 0.0
    %v699 = vmax.f32 %v413, 0.0
    %v700 = vmax.f32 %v418, 0.0
    %v701 = vmax.f32 %v423, 0.0
    %v702 = vmax.f32 %v428, 0.0
    %v703 = vmax.f32 %v433, 0.0
    %v704 = vmax.f32 %v438, 0.0
    %v705 = vmax.f32 %v443, 0.0
    %v706 = vmax.f32 %v448, 0.0
    %v707 = vmax.f32 %v453, 0.0
    %v708 = vmax.f32 %v458, 0.0
    %v709 = vmax.f32 %v463, 0.0
    %v710 = vmax.f32 %v468, 0.0
    %v711 = vmax.f32 %v473, 0.0
    %v712 = vmax.f32 %v478, 0.0
    %v713 = vmax.f32 %v483, 0.0
    %v714 = vmax.f32 %v488, 0.0
    %v715 = vmax.f32 %v493, 0.0
    %v716 = vmax.f32 %v498, 0.0
    %v717 = vmax.f32 %v503, 0.0
    %v718 = vmax.f32 %v508, 0.0
    %v719 = vmax.f32 %v513, 0.0
    %v720 = vmax.f32 %v518, 0.0
    %v721 = vmax.f32 %v523, 0.0
    %v722 = vmax.f32 %v528, 0.0
    %v723 = vmax.f32 %v533, 0.0
    %v724 = vmax.f32 %v538, 0.0
    %v725 = vmax.f32 %v543, 0.0
    %v726 = vmax.f32 %v548, 0.0
    %v727 = vmax.f32 %v553, 0.0
    %v728 = vmax.f32 %v558, 0.0
    %v729 = vmax.f32 %v563, 0.0
    %v730 = vmax.f32 %v568, 0.0
    %v731 = vmax.f32 %v573, 0.0
    %v732 = vmax.f32 %v578, 0.0
    %v733 = vmax.f32 %v583, 0.0
    %v734 = vmax.f32 %v588, 0.0
    %v735 = vmax.f32 %v593, 0.0
    %v736 = vmax.f32 %v598, 0.0
    %v737 = vmax.f32 %v603, 0.0
    %v738 = vmax.f32 %v608, 0.0
    %v739 = vmax.f32 %v613, 0.0
    %v740 = vmax.f32 %v618, 0.0
    %v741 = vmax.f32 %v623, 0.0
    %v742 = vmax.f32 %v628, 0.0
    %v743 = vmax.f32 %v633, 0.0
    %v744 = vmax.f32 %v638, 0.0
    %v745 = vmax.f32 %v643, 0.0
    %v746 = vmax.f32 %v648, 0.0
    %v747 = vmax.f32 %v653, 0.0
    %v748 = vmax.f32 %v658, 0.0
    %v749 = vmax.f32 %v663, 0.0
    %v750 = vmax.f32 %v668, 0.0
    %v751 = vmax.f32 %v673, 0.0
    %v752 = vmax.f32 %v678, 0.0
    %v753 = vmax.f32 %v683, 0.0
    %v754 = vmax.f32 %v688, 0.0
    %v819 = vrot.slane %v691, 7
    %v820 = vrot.slane %v692, 7
    %v821 = vsel %vm302, %v819, %v820
    %v822 = vrot.slane %v693, 7
    %v823 = vrot.slane %v694, 7
    %v824 = vsel %vm302, %v822, %v823
    %v825 = vrot.slane %v695, 7
    %v826 = vrot.slane %v696, 7
    %v827 = vsel %vm302, %v825, %v826
    %v828 = vrot.slane %v697, 7
    %v829 = vrot.slane %v698, 7
    %v830 = vsel %vm302, %v828, %v829
    %v831 = vrot.slane %v699, 7
    %v832 = vrot.slane %v700, 7
    %v833 = vsel %vm302, %v831, %v832
    %v834 = vrot.slane %v701, 7
    %v835 = vrot.slane %v702, 7
    %v836 = vsel %vm302, %v834, %v835
    %v837 = vrot.slane %v703, 7
    %v838 = vrot.slane %v704, 7
    %v839 = vsel %vm302, %v837, %v838
    %v840 = vrot.slane %v705, 7
    %v841 = vrot.slane %v706, 7
    %v842 = vsel %vm302, %v840, %v841
    %v843 = vrot.slane %v707, 7
    %v844 = vrot.slane %v708, 7
    %v845 = vsel %vm302, %v843, %v844
    %v846 = vrot.slane %v709, 7
    %v847 = vrot.slane %v710, 7
    %v848 = vsel %vm302, %v846, %v847
    %v849 = vrot.slane %v711, 7
    %v850 = vrot.slane %v712, 7
    %v851 = vsel %vm302, %v849, %v850
    %v852 = vrot.slane %v713, 7
    %v853 = vrot.slane %v714, 7
    %v854 = vsel %vm302, %v852, %v853
    %v855 = vrot.slane %v715, 7
    %v856 = vrot.slane %v716, 7
    %v857 = vsel %vm302, %v855, %v856
    %v858 = vrot.slane %v717, 7
    %v859 = vrot.slane %v718, 7
    %v860 = vsel %vm302, %v858, %v859
    %v861 = vrot.slane %v719, 7
    %v862 = vrot.slane %v720, 7
    %v863 = vsel %vm302, %v861, %v862
    %v864 = vrot.slane %v721, 7
    %v865 = vrot.slane %v722, 7
    %v866 = vsel %vm302, %v864, %v865
    %v867 = vrot.slane %v723, 7
    %v868 = vrot.slane %v724, 7
    %v869 = vsel %vm302, %v867, %v868
    %v870 = vrot.slane %v725, 7
    %v871 = vrot.slane %v726, 7
    %v872 = vsel %vm302, %v870, %v871
    %v873 = vrot.slane %v727, 7
    %v874 = vrot.slane %v728, 7
    %v875 = vsel %vm302, %v873, %v874
    %v876 = vrot.slane %v729, 7
    %v877 = vrot.slane %v730, 7
    %v878 = vsel %vm302, %v876, %v877
    %v879 = vrot.slane %v731, 7
    %v880 = vrot.slane %v732, 7
    %v881 = vsel %vm302, %v879, %v880
    %v882 = vrot.slane %v733, 7
    %v883 = vrot.slane %v734, 7
    %v884 = vsel %vm302, %v882, %v883
    %v885 = vrot.slane %v735, 7
    %v886 = vrot.slane %v736, 7
    %v887 = vsel %vm302, %v885, %v886
    %v888 = vrot.slane %v737, 7
    %v889 = vrot.slane %v738, 7
    %v890 = vsel %vm302, %v888, %v889
    %v891 = vrot.slane %v739, 7
    %v892 = vrot.slane %v740, 7
    %v893 = vsel %vm302, %v891, %v892
    %v894 = vrot.slane %v741, 7
    %v895 = vrot.slane %v742, 7
    %v896 = vsel %vm302, %v894, %v895
    %v897 = vrot.slane %v743, 7
    %v898 = vrot.slane %v744, 7
    %v899 = vsel %vm302, %v897, %v898
    %v900 = vrot.slane %v745, 7
    %v901 = vrot.slane %v746, 7
    %v902 = vsel %vm302, %v900, %v901
    %v903 = vrot.slane %v747, 7
    %v904 = vrot.slane %v748, 7
    %v905 = vsel %vm302, %v903, %v904
    %v906 = vrot.slane %v749, 7
    %v907 = vrot.slane %v750, 7
    %v908 = vsel %vm302, %v906, %v907
    %v909 = vrot.slane %v751, 7
    %v910 = vrot.slane %v752, 7
    %v911 = vsel %vm302, %v909, %v910
    %v912 = vrot.slane %v753, 7
    %v913 = vrot.slane %v754, 7
    %v914 = vsel %vm302, %v912, %v913
    %v1009 = vsel %vm302, 0.0, %v819
    %v1010 = vsel %vm302, 0.0, %v822
    %v1011 = vsel %vm302, 0.0, %v825
    %v1012 = vsel %vm302, 0.0, %v828
    %v1013 = vsel %vm302, 0.0, %v831
    %v1014 = vsel %vm302, 0.0, %v834
    %v1015 = vsel %vm302, 0.0, %v837
    %v1016 = vsel %vm302, 0.0, %v840
    %v1017 = vsel %vm302, 0.0, %v843
    %v1018 = vsel %vm302, 0.0, %v846
    %v1019 = vsel %vm302, 0.0, %v849
    %v1020 = vsel %vm302, 0.0, %v852
    %v1021 = vsel %vm302, 0.0, %v855
    %v1022 = vsel %vm302, 0.0, %v858
    %v1023 = vsel %vm302, 0.0, %v861
    %v1024 = vsel %vm302, 0.0, %v864
    %v1025 = vsel %vm302, 0.0, %v867
    %v1026 = vsel %vm302, 0.0, %v870
    %v1027 = vsel %vm302, 0.0, %v873
    %v1028 = vsel %vm302, 0.0, %v876
    %v1029 = vsel %vm302, 0.0, %v879
    %v1030 = vsel %vm302, 0.0, %v882
    %v1031 = vsel %vm302, 0.0, %v885
    %v1032 = vsel %vm302, 0.0, %v888
    %v1033 = vsel %vm302, 0.0, %v891
    %v1034 = vsel %vm302, 0.0, %v894
    %v1035 = vsel %vm302, 0.0, %v897
    %v1036 = vsel %vm302, 0.0, %v900
    %v1037 = vsel %vm302, 0.0, %v903
    %v1038 = vsel %vm302, 0.0, %v906
    %v1039 = vsel %vm302, 0.0, %v909
    %v1040 = vsel %vm302, 0.0, %v912
    %v1041 = vsel %vm302, %v820, 0.0
    %v1042 = vsel %vm302, %v823, 0.0
    %v1043 = vsel %vm302, %v826, 0.0
    %v1044 = vsel %vm302, %v829, 0.0
    %v1045 = vsel %vm302, %v832, 0.0
    %v1046 = vsel %vm302, %v835, 0.0
    %v1047 = vsel %vm302, %v838, 0.0
    %v1048 = vsel %vm302, %v841, 0.0
    %v1049 = vsel %vm302, %v844, 0.0
    %v1050 = vsel %vm302, %v847, 0.0
    %v1051 = vsel %vm302, %v850, 0.0
    %v1052 = vsel %vm302, %v853, 0.0
    %v1053 = vsel %vm302, %v856, 0.0
    %v1054 = vsel %vm302, %v859, 0.0
    %v1055 = vsel %vm302, %v862, 0.0
    %v1056 = vsel %vm302, %v865, 0.0
    %v1057 = vsel %vm302, %v868, 0.0
    %v1058 = vsel %vm302, %v871, 0.0
    %v1059 = vsel %vm302, %v874, 0.0
    %v1060 = vsel %vm302, %v877, 0.0
    %v1061 = vsel %vm302, %v880, 0.0
    %v1062 = vsel %vm302, %v883, 0.0
    %v1063 = vsel %vm302, %v886, 0.0
    %v1064 = vsel %vm302, %v889, 0.0
    %v1065 = vsel %vm302, %v892, 0.0
    %v1066 = vsel %vm302, %v895, 0.0
    %v1067 = vsel %vm302, %v898, 0.0
    %v1068 = vsel %vm302, %v901, 0.0
    %v1069 = vsel %vm302, %v904, 0.0
    %v1070 = vsel %vm302, %v907, 0.0
    %v1071 = vsel %vm302, %v910, 0.0
    %v1072 = vsel %vm302, %v913, 0.0
    %vm1134 = vcmask 1046528
    %v1135 = vrot.slane 0.0, 1
    %v1136 = vsel %vm1134, %v1135, %v1135
    %v1137 = vrot.slane %v1009, 1
    %v1138 = vrot.slane %v821, 1
    %v1139 = vsel %vm1134, %v1137, %v1138
    %v1140 = vrot.slane %v1041, 1
    %v1141 = vsel %vm1134, %v1138, %v1140
    %v1142 = vrot.slane %v1010, 1
    %v1143 = vrot.slane %v824, 1
    %v1144 = vsel %vm1134, %v1142, %v1143
    %v1145 = vrot.slane %v1042, 1
    %v1146 = vsel %vm1134, %v1143, %v1145
    %v1147 = vrot.slane %v1011, 1
    %v1148 = vrot.slane %v827, 1
    %v1149 = vsel %vm1134, %v1147, %v1148
    %v1150 = vrot.slane %v1043, 1
    %v1151 = vsel %vm1134, %v1148, %v1150
    %v1152 = vrot.slane %v1012, 1
    %v1153 = vrot.slane %v830, 1
    %v1154 = vsel %vm1134, %v1152, %v1153
    %v1155 = vrot.slane %v1044, 1
    %v1156 = vsel %vm1134, %v1153, %v1155
    %v1157 = vrot.slane %v1013, 1
    %v1158 = vrot.slane %v833, 1
    %v1159 = vsel %vm1134, %v1157, %v1158
    %v1160 = vrot.slane %v1045, 1
    %v1161 = vsel %vm1134, %v1158, %v1160
    %v1162 = vrot.slane %v1014, 1
    %v1163 = vrot.slane %v836, 1
    %v1164 = vsel %vm1134, %v1162, %v1163
    %v1165 = vrot.slane %v1046, 1
    %v1166 = vsel %vm1134, %v1163, %v1165
    %v1167 = vrot.slane %v1015, 1
    %v1168 = vrot.slane %v839, 1
    %v1169 = vsel %vm1134, %v1167, %v1168
    %v1170 = vrot.slane %v1047, 1
    %v1171 = vsel %vm1134, %v1168, %v1170
    %v1172 = vrot.slane %v1016, 1
    %v1173 = vrot.slane %v842, 1
    %v1174 = vsel %vm1134, %v1172, %v1173
    %v1175 = vrot.slane %v1048, 1
    %v1176 = vsel %vm1134, %v1173, %v1175
    %v1177 = vrot.slane %v1017, 1
    %v1178 = vrot.slane %v845, 1
    %v1179 = vsel %vm1134, %v1177, %v1178
    %v1180 = vrot.slane %v1049, 1
    %v1181 = vsel %vm1134, %v1178, %v1180
    %v1182 = vrot.slane %v1018, 1
    %v1183 = vrot.slane %v848, 1
    %v1184 = vsel %vm1134, %v1182, %v1183
    %v1185 = vrot.slane %v1050, 1
    %v1186 = vsel %vm1134, %v1183, %v1185
    %v1187 = vrot.slane %v1019, 1
    %v1188 = vrot.slane %v851, 1
    %v1189 = vsel %vm1134, %v1187, %v1188
    %v1190 = vrot.slane %v1051, 1
    %v1191 = vsel %vm1134, %v1188, %v1190
    %v1192 = vrot.slane %v1020, 1
    %v1193 = vrot.slane %v854, 1
    %v1194 = vsel %vm1134, %v1192, %v1193
    %v1195 = vrot.slane %v1052, 1
    %v1196 = vsel %vm1134, %v1193, %v1195
    %v1197 = vrot.slane %v1021, 1
    %v1198 = vrot.slane %v857, 1
    %v1199 = vsel %vm1134, %v1197, %v1198
    %v1200 = vrot.slane %v1053, 1
    %v1201 = vsel %vm1134, %v1198, %v1200
    %v1202 = vrot.slane %v1022, 1
    %v1203 = vrot.slane %v860, 1
    %v1204 = vsel %vm1134, %v1202, %v1203
    %v1205 = vrot.slane %v1054, 1
    %v1206 = vsel %vm1134, %v1203, %v1205
    %v1207 = vrot.slane %v1023, 1
    %v1208 = vrot.slane %v863, 1
    %v1209 = vsel %vm1134, %v1207, %v1208
    %v1210 = vrot.slane %v1055, 1
    %v1211 = vsel %vm1134, %v1208, %v1210
    %v1212 = vrot.slane %v1025, 1
    %v1213 = vrot.slane %v869, 1
    %v1214 = vsel %vm1134, %v1212, %v1213
    %v1215 = vrot.slane %v1057, 1
    %v1216 = vsel %vm1134, %v1213, %v1215
    %v1217 = vrot.slane %v1026, 1
    %v1218 = vrot.slane %v872, 1
    %v1219 = vsel %vm1134, %v1217, %v1218
    %v1220 = vrot.slane %v1058, 1
    %v1221 = vsel %vm1134, %v1218, %v1220
    %v1222 = vrot.slane %v1027, 1
    %v1223 = vrot.slane %v875, 1
    %v1224 = vsel %vm1134, %v1222, %v1223
    %v1225 = vrot.slane %v1059, 1
    %v1226 = vsel %vm1134, %v1223, %v1225
    %v1227 = vrot.slane %v1028, 1
    %v1228 = vrot.slane %v878, 1
    %v1229 = vsel %vm1134, %v1227, %v1228
    %v1230 = vrot.slane %v1060, 1
    %v1231 = vsel %vm1134, %v1228, %v1230
    %v1232 = vrot.slane %v1029, 1
    %v1233 = vrot.slane %v881, 1
    %v1234 = vsel %vm1134, %v1232, %v1233
    %v1235 = vrot.slane %v1061, 1
    %v1236 = vsel %vm1134, %v1233, %v1235
    %v1237 = vrot.slane %v1030, 1
    %v1238 = vrot.slane %v884, 1
    %v1239 = vsel %vm1134, %v1237, %v1238
    %v1240 = vrot.slane %v1062, 1
    %v1241 = vsel %vm1134, %v1238, %v1240
    %v1242 = vrot.slane %v1031, 1
    %v1243 = vrot.slane %v887, 1
    %v1244 = vsel %vm1134, %v1242, %v1243
    %v1245 = vrot.slane %v1063, 1
    %v1246 = vsel %vm1134, %v1243, %v1245
    %v1247 = vrot.slane %v1032, 1
    %v1248 = vrot.slane %v890, 1
    %v1249 = vsel %vm1134, %v1247, %v1248
    %v1250 = vrot.slane %v1064, 1
    %v1251 = vsel %vm1134, %v1248, %v1250
    %v1252 = vrot.slane %v1033, 1
    %v1253 = vrot.slane %v893, 1
    %v1254 = vsel %vm1134, %v1252, %v1253
    %v1255 = vrot.slane %v1065, 1
    %v1256 = vsel %vm1134, %v1253, %v1255
    %v1257 = vrot.slane %v1034, 1
    %v1258 = vrot.slane %v896, 1
    %v1259 = vsel %vm1134, %v1257, %v1258
    %v1260 = vrot.slane %v1066, 1
    %v1261 = vsel %vm1134, %v1258, %v1260
    %v1262 = vrot.slane %v1035, 1
    %v1263 = vrot.slane %v899, 1
    %v1264 = vsel %vm1134, %v1262, %v1263
    %v1265 = vrot.slane %v1067, 1
    %v1266 = vsel %vm1134, %v1263, %v1265
    %v1267 = vrot.slane %v1036, 1
    %v1268 = vrot.slane %v902, 1
    %v1269 = vsel %vm1134, %v1267, %v1268
    %v1270 = vrot.slane %v1068, 1
    %v1271 = vsel %vm1134, %v1268, %v1270
    %v1272 = vrot.slane %v1037, 1
    %v1273 = vrot.slane %v905, 1
    %v1274 = vsel %vm1134, %v1272, %v1273
    %v1275 = vrot.slane %v1069, 1
    %v1276 = vsel %vm1134, %v1273, %v1275
    %v1277 = vrot.slane %v1038, 1
    %v1278 = vrot.slane %v908, 1
    %v1279 = vsel %vm1134, %v1277, %v1278
    %v1280 = vrot.slane %v1070, 1
    %v1281 = vsel %vm1134, %v1278, %v1280
    %v1282 = vrot.slane %v1039, 1
    %v1283 = vrot.slane %v911, 1
    %v1284 = vsel %vm1134, %v1282, %v1283
    %v1285 = vrot.slane %v1071, 1
    %v1286 = vsel %vm1134, %v1283, %v1285
    %1287 = vrot.lane.b32.xlu0 %v1136, 16
    %v1288 = vpop.permute.xlu0 %1287
    %1289 = vrot.lane.b32.xlu0 %v1139, 16
    %v1290 = vpop.permute.xlu0 %1289
    %1291 = vrot.lane.b32.xlu0 %v1141, 16
    %v1292 = vpop.permute.xlu0 %1291
    %1293 = vrot.lane.b32.xlu0 %v1144, 16
    %v1294 = vpop.permute.xlu0 %1293
    %1295 = vrot.lane.b32.xlu0 %v1146, 16
    %v1296 = vpop.permute.xlu0 %1295
    %1297 = vrot.lane.b32.xlu0 %v1149, 16
    %v1298 = vpop.permute.xlu0 %1297
    %1299 = vrot.lane.b32.xlu0 %v1151, 16
    %v1300 = vpop.permute.xlu0 %1299
    %1301 = vrot.lane.b32.xlu0 %v1154, 16
    %v1302 = vpop.permute.xlu0 %1301
    %1303 = vrot.lane.b32.xlu0 %v1156, 16
    %v1304 = vpop.permute.xlu0 %1303
    %1305 = vrot.lane.b32.xlu0 %v1159, 16
    %v1306 = vpop.permute.xlu0 %1305
    %1307 = vrot.lane.b32.xlu0 %v1161, 16
    %v1308 = vpop.permute.xlu0 %1307
    %1309 = vrot.lane.b32.xlu0 %v1164, 16
    %v1310 = vpop.permute.xlu0 %1309
    %1311 = vrot.lane.b32.xlu0 %v1166, 16
    %v1312 = vpop.permute.xlu0 %1311
    %1313 = vrot.lane.b32.xlu0 %v1169, 16
    %v1314 = vpop.permute.xlu0 %1313
    %1315 = vrot.lane.b32.xlu0 %v1171, 16
    %v1316 = vpop.permute.xlu0 %1315
    %1317 = vrot.lane.b32.xlu0 %v1174, 16
    %v1318 = vpop.permute.xlu0 %1317
    %1319 = vrot.lane.b32.xlu0 %v1176, 16
    %v1320 = vpop.permute.xlu0 %1319
    %1321 = vrot.lane.b32.xlu0 %v1179, 16
    %v1322 = vpop.permute.xlu0 %1321
    %1323 = vrot.lane.b32.xlu0 %v1181, 16
    %v1324 = vpop.permute.xlu0 %1323
    %1325 = vrot.lane.b32.xlu0 %v1184, 16
    %v1326 = vpop.permute.xlu0 %1325
    %1327 = vrot.lane.b32.xlu0 %v1186, 16
    %v1328 = vpop.permute.xlu0 %1327
    %1329 = vrot.lane.b32.xlu0 %v1189, 16
    %v1330 = vpop.permute.xlu0 %1329
    %1331 = vrot.lane.b32.xlu0 %v1191, 16
    %v1332 = vpop.permute.xlu0 %1331
    %1333 = vrot.lane.b32.xlu0 %v1194, 16
    %v1334 = vpop.permute.xlu0 %1333
    %1335 = vrot.lane.b32.xlu0 %v1196, 16
    %v1336 = vpop.permute.xlu0 %1335
    %1337 = vrot.lane.b32.xlu0 %v1199, 16
    %v1338 = vpop.permute.xlu0 %1337
    %1339 = vrot.lane.b32.xlu0 %v1201, 16
    %v1340 = vpop.permute.xlu0 %1339
    %1341 = vrot.lane.b32.xlu0 %v1204, 16
    %v1342 = vpop.permute.xlu0 %1341
    %1343 = vrot.lane.b32.xlu0 %v1206, 16
    %v1344 = vpop.permute.xlu0 %1343
    %1345 = vrot.lane.b32.xlu0 %v1209, 16
    %v1346 = vpop.permute.xlu0 %1345
    %1347 = vrot.lane.b32.xlu0 %v1211, 16
    %v1348 = vpop.permute.xlu0 %1347
    %1349 = vrot.lane.b32.xlu0 %v1214, 16
    %v1350 = vpop.permute.xlu0 %1349
    %1351 = vrot.lane.b32.xlu0 %v1216, 16
    %v1352 = vpop.permute.xlu0 %1351
    %1353 = vrot.lane.b32.xlu0 %v1219, 16
    %v1354 = vpop.permute.xlu0 %1353
    %1355 = vrot.lane.b32.xlu0 %v1221, 16
    %v1356 = vpop.permute.xlu0 %1355
    %1357 = vrot.lane.b32.xlu0 %v1224, 16
    %v1358 = vpop.permute.xlu0 %1357
    %1359 = vrot.lane.b32.xlu0 %v1226, 16
    %v1360 = vpop.permute.xlu0 %1359
    %1361 = vrot.lane.b32.xlu0 %v1229, 16
    %v1362 = vpop.permute.xlu0 %1361
    %1363 = vrot.lane.b32.xlu0 %v1231, 16
    %v1364 = vpop.permute.xlu0 %1363
    %1365 = vrot.lane.b32.xlu0 %v1234, 16
    %v1366 = vpop.permute.xlu0 %1365
    %1367 = vrot.lane.b32.xlu0 %v1236, 16
    %v1368 = vpop.permute.xlu0 %1367
    %1369 = vrot.lane.b32.xlu0 %v1239, 16
    %v1370 = vpop.permute.xlu0 %1369
    %1371 = vrot.lane.b32.xlu0 %v1241, 16
    %v1372 = vpop.permute.xlu0 %1371
    %1373 = vrot.lane.b32.xlu0 %v1244, 16
    %v1374 = vpop.permute.xlu0 %1373
    %1375 = vrot.lane.b32.xlu0 %v1246, 16
    %v1376 = vpop.permute.xlu0 %1375
    %1377 = vrot.lane.b32.xlu0 %v1249, 16
    %v1378 = vpop.permute.xlu0 %1377
    %1379 = vrot.lane.b32.xlu0 %v1251, 16
    %v1380 = vpop.permute.xlu0 %1379
    %1381 = vrot.lane.b32.xlu0 %v1254, 16
    %v1382 = vpop.permute.xlu0 %1381
    %1383 = vrot.lane.b32.xlu0 %v1256, 16
    %v1384 = vpop.permute.xlu0 %1383
    %1385 = vrot.lane.b32.xlu0 %v1259, 16
    %v1386 = vpop.permute.xlu0 %1385
    %1387 = vrot.lane.b32.xlu0 %v1261, 16
    %v1388 = vpop.permute.xlu0 %1387
    %1389 = vrot.lane.b32.xlu0 %v1264, 16
    %v1390 = vpop.permute.xlu0 %1389
    %1391 = vrot.lane.b32.xlu0 %v1266, 16
    %v1392 = vpop.permute.xlu0 %1391
    %1393 = vrot.lane.b32.xlu0 %v1269, 16
    %v1394 = vpop.permute.xlu0 %1393
    %1395 = vrot.lane.b32.xlu0 %v1271, 16
    %v1396 = vpop.permute.xlu0 %1395
    %1397 = vrot.lane.b32.xlu0 %v1274, 16
    %v1398 = vpop.permute.xlu0 %1397
    %1399 = vrot.lane.b32.xlu0 %v1276, 16
    %v1400 = vpop.permute.xlu0 %1399
    %1401 = vrot.lane.b32.xlu0 %v1279, 16
    %v1402 = vpop.permute.xlu0 %1401
    %1403 = vrot.lane.b32.xlu0 %v1281, 16
    %v1404 = vpop.permute.xlu0 %1403
    %1405 = vrot.lane.b32.xlu0 %v1284, 16
    %v1406 = vpop.permute.xlu0 %1405
    %1407 = vrot.lane.b32.xlu0 %v1286, 16
    %v1408 = vpop.permute.xlu0 %1407
    %vm1470 = vcmask 1045504
    %v1471 = vrot.slane 0.0, 2
    %v1472 = vsel %vm1470, %v1471, %v1471
    %v1473 = vrot.slane %v1009, 2
    %v1474 = vrot.slane %v821, 2
    %v1475 = vsel %vm1470, %v1473, %v1474
    %v1476 = vrot.slane %v1041, 2
    %v1477 = vsel %vm1470, %v1474, %v1476
    %v1478 = vrot.slane %v1010, 2
    %v1479 = vrot.slane %v824, 2
    %v1480 = vsel %vm1470, %v1478, %v1479
    %v1481 = vrot.slane %v1042, 2
    %v1482 = vsel %vm1470, %v1479, %v1481
    %v1483 = vrot.slane %v1011, 2
    %v1484 = vrot.slane %v827, 2
    %v1485 = vsel %vm1470, %v1483, %v1484
    %v1486 = vrot.slane %v1043, 2
    %v1487 = vsel %vm1470, %v1484, %v1486
    %v1488 = vrot.slane %v1012, 2
    %v1489 = vrot.slane %v830, 2
    %v1490 = vsel %vm1470, %v1488, %v1489
    %v1491 = vrot.slane %v1044, 2
    %v1492 = vsel %vm1470, %v1489, %v1491
    %v1493 = vrot.slane %v1013, 2
    %v1494 = vrot.slane %v833, 2
    %v1495 = vsel %vm1470, %v1493, %v1494
    %v1496 = vrot.slane %v1045, 2
    %v1497 = vsel %vm1470, %v1494, %v1496
    %v1498 = vrot.slane %v1014, 2
    %v1499 = vrot.slane %v836, 2
    %v1500 = vsel %vm1470, %v1498, %v1499
    %v1501 = vrot.slane %v1046, 2
    %v1502 = vsel %vm1470, %v1499, %v1501
    %v1503 = vrot.slane %v1015, 2
    %v1504 = vrot.slane %v839, 2
    %v1505 = vsel %vm1470, %v1503, %v1504
    %v1506 = vrot.slane %v1047, 2
    %v1507 = vsel %vm1470, %v1504, %v1506
    %v1508 = vrot.slane %v1016, 2
    %v1509 = vrot.slane %v842, 2
    %v1510 = vsel %vm1470, %v1508, %v1509
    %v1511 = vrot.slane %v1048, 2
    %v1512 = vsel %vm1470, %v1509, %v1511
    %v1513 = vrot.slane %v1017, 2
    %v1514 = vrot.slane %v845, 2
    %v1515 = vsel %vm1470, %v1513, %v1514
    %v1516 = vrot.slane %v1049, 2
    %v1517 = vsel %vm1470, %v1514, %v1516
    %v1518 = vrot.slane %v1018, 2
    %v1519 = vrot.slane %v848, 2
    %v1520 = vsel %vm1470, %v1518, %v1519
    %v1521 = vrot.slane %v1050, 2
    %v1522 = vsel %vm1470, %v1519, %v1521
    %v1523 = vrot.slane %v1019, 2
    %v1524 = vrot.slane %v851, 2
    %v1525 = vsel %vm1470, %v1523, %v1524
    %v1526 = vrot.slane %v1051, 2
    %v1527 = vsel %vm1470, %v1524, %v1526
    %v1528 = vrot.slane %v1020, 2
    %v1529 = vrot.slane %v854, 2
    %v1530 = vsel %vm1470, %v1528, %v1529
    %v1531 = vrot.slane %v1052, 2
    %v1532 = vsel %vm1470, %v1529, %v1531
    %v1533 = vrot.slane %v1021, 2
    %v1534 = vrot.slane %v857, 2
    %v1535 = vsel %vm1470, %v1533, %v1534
    %v1536 = vrot.slane %v1053, 2
    %v1537 = vsel %vm1470, %v1534, %v1536
    %v1538 = vrot.slane %v1022, 2
    %v1539 = vrot.slane %v860, 2
    %v1540 = vsel %vm1470, %v1538, %v1539
    %v1541 = vrot.slane %v1054, 2
    %v1542 = vsel %vm1470, %v1539, %v1541
    %v1543 = vrot.slane %v1023, 2
    %v1544 = vrot.slane %v863, 2
    %v1545 = vsel %vm1470, %v1543, %v1544
    %v1546 = vrot.slane %v1055, 2
    %v1547 = vsel %vm1470, %v1544, %v1546
    %v1548 = vrot.slane %v1025, 2
    %v1549 = vrot.slane %v869, 2
    %v1550 = vsel %vm1470, %v1548, %v1549
    %v1551 = vrot.slane %v1057, 2
    %v1552 = vsel %vm1470, %v1549, %v1551
    %v1553 = vrot.slane %v1026, 2
    %v1554 = vrot.slane %v872, 2
    %v1555 = vsel %vm1470, %v1553, %v1554
    %v1556 = vrot.slane %v1058, 2
    %v1557 = vsel %vm1470, %v1554, %v1556
    %v1558 = vrot.slane %v1027, 2
    %v1559 = vrot.slane %v875, 2
    %v1560 = vsel %vm1470, %v1558, %v1559
    %v1561 = vrot.slane %v1059, 2
    %v1562 = vsel %vm1470, %v1559, %v1561
    %v1563 = vrot.slane %v1028, 2
    %v1564 = vrot.slane %v878, 2
    %v1565 = vsel %vm1470, %v1563, %v1564
    %v1566 = vrot.slane %v1060, 2
    %v1567 = vsel %vm1470, %v1564, %v1566
    %v1568 = vrot.slane %v1029, 2
    %v1569 = vrot.slane %v881, 2
    %v1570 = vsel %vm1470, %v1568, %v1569
    %v1571 = vrot.slane %v1061, 2
    %v1572 = vsel %vm1470, %v1569, %v1571
    %v1573 = vrot.slane %v1030, 2
    %v1574 = vrot.slane %v884, 2
    %v1575 = vsel %vm1470, %v1573, %v1574
    %v1576 = vrot.slane %v1062, 2
    %v1577 = vsel %vm1470, %v1574, %v1576
    %v1578 = vrot.slane %v1031, 2
    %v1579 = vrot.slane %v887, 2
    %v1580 = vsel %vm1470, %v1578, %v1579
    %v1581 = vrot.slane %v1063, 2
    %v1582 = vsel %vm1470, %v1579, %v1581
    %v1583 = vrot.slane %v1032, 2
    %v1584 = vrot.slane %v890, 2
    %v1585 = vsel %vm1470, %v1583, %v1584
    %v1586 = vrot.slane %v1064, 2
    %v1587 = vsel %vm1470, %v1584, %v1586
    %v1588 = vrot.slane %v1033, 2
    %v1589 = vrot.slane %v893, 2
    %v1590 = vsel %vm1470, %v1588, %v1589
    %v1591 = vrot.slane %v1065, 2
    %v1592 = vsel %vm1470, %v1589, %v1591
    %v1593 = vrot.slane %v1034, 2
    %v1594 = vrot.slane %v896, 2
    %v1595 = vsel %vm1470, %v1593, %v1594
    %v1596 = vrot.slane %v1066, 2
    %v1597 = vsel %vm1470, %v1594, %v1596
    %v1598 = vrot.slane %v1035, 2
    %v1599 = vrot.slane %v899, 2
    %v1600 = vsel %vm1470, %v1598, %v1599
    %v1601 = vrot.slane %v1067, 2
    %v1602 = vsel %vm1470, %v1599, %v1601
    %v1603 = vrot.slane %v1036, 2
    %v1604 = vrot.slane %v902, 2
    %v1605 = vsel %vm1470, %v1603, %v1604
    %v1606 = vrot.slane %v1068, 2
    %v1607 = vsel %vm1470, %v1604, %v1606
    %v1608 = vrot.slane %v1037, 2
    %v1609 = vrot.slane %v905, 2
    %v1610 = vsel %vm1470, %v1608, %v1609
    %v1611 = vrot.slane %v1069, 2
    %v1612 = vsel %vm1470, %v1609, %v1611
    %v1613 = vrot.slane %v1038, 2
    %v1614 = vrot.slane %v908, 2
    %v1615 = vsel %vm1470, %v1613, %v1614
    %v1616 = vrot.slane %v1070, 2
    %v1617 = vsel %vm1470, %v1614, %v1616
    %v1618 = vrot.slane %v1039, 2
    %v1619 = vrot.slane %v911, 2
    %v1620 = vsel %vm1470, %v1618, %v1619
    %v1621 = vrot.slane %v1071, 2
    %v1622 = vsel %vm1470, %v1619, %v1621
    %1623 = vrot.lane.b32.xlu0 %v1472, 32
    %v1624 = vpop.permute.xlu0 %1623
    %1625 = vrot.lane.b32.xlu0 %v1475, 32
    %v1626 = vpop.permute.xlu0 %1625
    %1627 = vrot.lane.b32.xlu0 %v1477, 32
    %v1628 = vpop.permute.xlu0 %1627
    %1629 = vrot.lane.b32.xlu0 %v1480, 32
    %v1630 = vpop.permute.xlu0 %1629
    %1631 = vrot.lane.b32.xlu0 %v1482, 32
    %v1632 = vpop.permute.xlu0 %1631
    %1633 = vrot.lane.b32.xlu0 %v1485, 32
    %v1634 = vpop.permute.xlu0 %1633
    %1635 = vrot.lane.b32.xlu0 %v1487, 32
    %v1636 = vpop.permute.xlu0 %1635
    %1637 = vrot.lane.b32.xlu0 %v1490, 32
    %v1638 = vpop.permute.xlu0 %1637
    %1639 = vrot.lane.b32.xlu0 %v1492, 32
    %v1640 = vpop.permute.xlu0 %1639
    %1641 = vrot.lane.b32.xlu0 %v1495, 32
    %v1642 = vpop.permute.xlu0 %1641
    %1643 = vrot.lane.b32.xlu0 %v1497, 32
    %v1644 = vpop.permute.xlu0 %1643
    %1645 = vrot.lane.b32.xlu0 %v1500, 32
    %v1646 = vpop.permute.xlu0 %1645
    %1647 = vrot.lane.b32.xlu0 %v1502, 32
    %v1648 = vpop.permute.xlu0 %1647
    %1649 = vrot.lane.b32.xlu0 %v1505, 32
    %v1650 = vpop.permute.xlu0 %1649
    %1651 = vrot.lane.b32.xlu0 %v1507, 32
    %v1652 = vpop.permute.xlu0 %1651
    %1653 = vrot.lane.b32.xlu0 %v1510, 32
    %v1654 = vpop.permute.xlu0 %1653
    %1655 = vrot.lane.b32.xlu0 %v1512, 32
    %v1656 = vpop.permute.xlu0 %1655
    %1657 = vrot.lane.b32.xlu0 %v1515, 32
    %v1658 = vpop.permute.xlu0 %1657
    %1659 = vrot.lane.b32.xlu0 %v1517, 32
    %v1660 = vpop.permute.xlu0 %1659
    %1661 = vrot.lane.b32.xlu0 %v1520, 32
    %v1662 = vpop.permute.xlu0 %1661
    %1663 = vrot.lane.b32.xlu0 %v1522, 32
    %v1664 = vpop.permute.xlu0 %1663
    %1665 = vrot.lane.b32.xlu0 %v1525, 32
    %v1666 = vpop.permute.xlu0 %1665
    %1667 = vrot.lane.b32.xlu0 %v1527, 32
    %v1668 = vpop.permute.xlu0 %1667
    %1669 = vrot.lane.b32.xlu0 %v1530, 32
    %v1670 = vpop.permute.xlu0 %1669
    %1671 = vrot.lane.b32.xlu0 %v1532, 32
    %v1672 = vpop.permute.xlu0 %1671
    %1673 = vrot.lane.b32.xlu0 %v1535, 32
    %v1674 = vpop.permute.xlu0 %1673
    %1675 = vrot.lane.b32.xlu0 %v1537, 32
    %v1676 = vpop.permute.xlu0 %1675
    %1677 = vrot.lane.b32.xlu0 %v1540, 32
    %v1678 = vpop.permute.xlu0 %1677
    %1679 = vrot.lane.b32.xlu0 %v1542, 32
    %v1680 = vpop.permute.xlu0 %1679
    %1681 = vrot.lane.b32.xlu0 %v1545, 32
    %v1682 = vpop.permute.xlu0 %1681
    %1683 = vrot.lane.b32.xlu0 %v1547, 32
    %v1684 = vpop.permute.xlu0 %1683
    %1685 = vrot.lane.b32.xlu0 %v1550, 32
    %v1686 = vpop.permute.xlu0 %1685
    %1687 = vrot.lane.b32.xlu0 %v1552, 32
    %v1688 = vpop.permute.xlu0 %1687
    %1689 = vrot.lane.b32.xlu0 %v1555, 32
    %v1690 = vpop.permute.xlu0 %1689
    %1691 = vrot.lane.b32.xlu0 %v1557, 32
    %v1692 = vpop.permute.xlu0 %1691
    %1693 = vrot.lane.b32.xlu0 %v1560, 32
    %v1694 = vpop.permute.xlu0 %1693
    %1695 = vrot.lane.b32.xlu0 %v1562, 32
    %v1696 = vpop.permute.xlu0 %1695
    %1697 = vrot.lane.b32.xlu0 %v1565, 32
    %v1698 = vpop.permute.xlu0 %1697
    %1699 = vrot.lane.b32.xlu0 %v1567, 32
    %v1700 = vpop.permute.xlu0 %1699
    %1701 = vrot.lane.b32.xlu0 %v1570, 32
    %v1702 = vpop.permute.xlu0 %1701
    %1703 = vrot.lane.b32.xlu0 %v1572, 32
    %v1704 = vpop.permute.xlu0 %1703
    %1705 = vrot.lane.b32.xlu0 %v1575, 32
    %v1706 = vpop.permute.xlu0 %1705
    %1707 = vrot.lane.b32.xlu0 %v1577, 32
    %v1708 = vpop.permute.xlu0 %1707
    %1709 = vrot.lane.b32.xlu0 %v1580, 32
    %v1710 = vpop.permute.xlu0 %1709
    %1711 = vrot.lane.b32.xlu0 %v1582, 32
    %v1712 = vpop.permute.xlu0 %1711
    %1713 = vrot.lane.b32.xlu0 %v1585, 32
    %v1714 = vpop.permute.xlu0 %1713
    %1715 = vrot.lane.b32.xlu0 %v1587, 32
    %v1716 = vpop.permute.xlu0 %1715
    %1717 = vrot.lane.b32.xlu0 %v1590, 32
    %v1718 = vpop.permute.xlu0 %1717
    %1719 = vrot.lane.b32.xlu0 %v1592, 32
    %v1720 = vpop.permute.xlu0 %1719
    %1721 = vrot.lane.b32.xlu0 %v1595, 32
    %v1722 = vpop.permute.xlu0 %1721
    %1723 = vrot.lane.b32.xlu0 %v1597, 32
    %v1724 = vpop.permute.xlu0 %1723
    %1725 = vrot.lane.b32.xlu0 %v1600, 32
    %v1726 = vpop.permute.xlu0 %1725
    %1727 = vrot.lane.b32.xlu0 %v1602, 32
    %v1728 = vpop.permute.xlu0 %1727
    %1729 = vrot.lane.b32.xlu0 %v1605, 32
    %v1730 = vpop.permute.xlu0 %1729
    %1731 = vrot.lane.b32.xlu0 %v1607, 32
    %v1732 = vpop.permute.xlu0 %1731
    %1733 = vrot.lane.b32.xlu0 %v1610, 32
    %v1734 = vpop.permute.xlu0 %1733
    %1735 = vrot.lane.b32.xlu0 %v1612, 32
    %v1736 = vpop.permute.xlu0 %1735
    %1737 = vrot.lane.b32.xlu0 %v1615, 32
    %v1738 = vpop.permute.xlu0 %1737
    %1739 = vrot.lane.b32.xlu0 %v1617, 32
    %v1740 = vpop.permute.xlu0 %1739
    %1741 = vrot.lane.b32.xlu0 %v1620, 32
    %v1742 = vpop.permute.xlu0 %1741
    %1743 = vrot.lane.b32.xlu0 %v1622, 32
    %v1744 = vpop.permute.xlu0 %1743
    %1808 = vrot.lane.b32.xlu0 %v1009, 48
    %v1809 = vpop.permute.xlu0 %1808
    %1810 = vrot.lane.b32.xlu0 %v821, 48
    %v1811 = vpop.permute.xlu0 %1810
    %1812 = vrot.lane.b32.xlu0 %v1010, 48
    %v1813 = vpop.permute.xlu0 %1812
    %1814 = vrot.lane.b32.xlu0 %v824, 48
    %v1815 = vpop.permute.xlu0 %1814
    %1816 = vrot.lane.b32.xlu0 %v1011, 48
    %v1817 = vpop.permute.xlu0 %1816
    %1818 = vrot.lane.b32.xlu0 %v827, 48
    %v1819 = vpop.permute.xlu0 %1818
    %1820 = vrot.lane.b32.xlu0 %v1012, 48
    %v1821 = vpop.permute.xlu0 %1820
    %1822 = vrot.lane.b32.xlu0 %v830, 48
    %v1823 = vpop.permute.xlu0 %1822
    %1824 = vrot.lane.b32.xlu0 %v1013, 48
    %v1825 = vpop.permute.xlu0 %1824
    %1826 = vrot.lane.b32.xlu0 %v833, 48
    %v1827 = vpop.permute.xlu0 %1826
    %1828 = vrot.lane.b32.xlu0 %v1014, 48
    %v1829 = vpop.permute.xlu0 %1828
    %1830 = vrot.lane.b32.xlu0 %v836, 48
    %v1831 = vpop.permute.xlu0 %1830
    %1832 = vrot.lane.b32.xlu0 %v1015, 48
    %v1833 = vpop.permute.xlu0 %1832
    %1834 = vrot.lane.b32.xlu0 %v839, 48
    %v1835 = vpop.permute.xlu0 %1834
    %1836 = vrot.lane.b32.xlu0 %v1016, 48
    %v1837 = vpop.permute.xlu0 %1836
    %1838 = vrot.lane.b32.xlu0 %v842, 48
    %v1839 = vpop.permute.xlu0 %1838
    %1840 = vrot.lane.b32.xlu0 %v1017, 48
    %v1841 = vpop.permute.xlu0 %1840
    %1842 = vrot.lane.b32.xlu0 %v845, 48
    %v1843 = vpop.permute.xlu0 %1842
    %1844 = vrot.lane.b32.xlu0 %v1018, 48
    %v1845 = vpop.permute.xlu0 %1844
    %1846 = vrot.lane.b32.xlu0 %v848, 48
    %v1847 = vpop.permute.xlu0 %1846
    %1848 = vrot.lane.b32.xlu0 %v1019, 48
    %v1849 = vpop.permute.xlu0 %1848
    %1850 = vrot.lane.b32.xlu0 %v851, 48
    %v1851 = vpop.permute.xlu0 %1850
    %1852 = vrot.lane.b32.xlu0 %v1020, 48
    %v1853 = vpop.permute.xlu0 %1852
    %1854 = vrot.lane.b32.xlu0 %v854, 48
    %v1855 = vpop.permute.xlu0 %1854
    %1856 = vrot.lane.b32.xlu0 %v1021, 48
    %v1857 = vpop.permute.xlu0 %1856
    %1858 = vrot.lane.b32.xlu0 %v857, 48
    %v1859 = vpop.permute.xlu0 %1858
    %1860 = vrot.lane.b32.xlu0 %v1022, 48
    %v1861 = vpop.permute.xlu0 %1860
    %1862 = vrot.lane.b32.xlu0 %v860, 48
    %v1863 = vpop.permute.xlu0 %1862
    %1864 = vrot.lane.b32.xlu0 %v1023, 48
    %v1865 = vpop.permute.xlu0 %1864
    %1866 = vrot.lane.b32.xlu0 %v863, 48
    %v1867 = vpop.permute.xlu0 %1866
    %1868 = vrot.lane.b32.xlu0 %v1024, 48
    %v1869 = vpop.permute.xlu0 %1868
    %1870 = vrot.lane.b32.xlu0 %v866, 48
    %v1871 = vpop.permute.xlu0 %1870
    %1872 = vrot.lane.b32.xlu0 %v1025, 48
    %v1873 = vpop.permute.xlu0 %1872
    %1874 = vrot.lane.b32.xlu0 %v869, 48
    %v1875 = vpop.permute.xlu0 %1874
    %1876 = vrot.lane.b32.xlu0 %v1026, 48
    %v1877 = vpop.permute.xlu0 %1876
    %1878 = vrot.lane.b32.xlu0 %v872, 48
    %v1879 = vpop.permute.xlu0 %1878
    %1880 = vrot.lane.b32.xlu0 %v1027, 48
    %v1881 = vpop.permute.xlu0 %1880
    %1882 = vrot.lane.b32.xlu0 %v875, 48
    %v1883 = vpop.permute.xlu0 %1882
    %1884 = vrot.lane.b32.xlu0 %v1028, 48
    %v1885 = vpop.permute.xlu0 %1884
    %1886 = vrot.lane.b32.xlu0 %v878, 48
    %v1887 = vpop.permute.xlu0 %1886
    %1888 = vrot.lane.b32.xlu0 %v1029, 48
    %v1889 = vpop.permute.xlu0 %1888
    %1890 = vrot.lane.b32.xlu0 %v881, 48
    %v1891 = vpop.permute.xlu0 %1890
    %1892 = vrot.lane.b32.xlu0 %v1030, 48
    %v1893 = vpop.permute.xlu0 %1892
    %1894 = vrot.lane.b32.xlu0 %v884, 48
    %v1895 = vpop.permute.xlu0 %1894
    %1896 = vrot.lane.b32.xlu0 %v1031, 48
    %v1897 = vpop.permute.xlu0 %1896
    %1898 = vrot.lane.b32.xlu0 %v887, 48
    %v1899 = vpop.permute.xlu0 %1898
    %1900 = vrot.lane.b32.xlu0 %v1032, 48
    %v1901 = vpop.permute.xlu0 %1900
    %1902 = vrot.lane.b32.xlu0 %v890, 48
    %v1903 = vpop.permute.xlu0 %1902
    %1904 = vrot.lane.b32.xlu0 %v1033, 48
    %v1905 = vpop.permute.xlu0 %1904
    %1906 = vrot.lane.b32.xlu0 %v893, 48
    %v1907 = vpop.permute.xlu0 %1906
    %1908 = vrot.lane.b32.xlu0 %v1034, 48
    %v1909 = vpop.permute.xlu0 %1908
    %1910 = vrot.lane.b32.xlu0 %v896, 48
    %v1911 = vpop.permute.xlu0 %1910
    %1912 = vrot.lane.b32.xlu0 %v1035, 48
    %v1913 = vpop.permute.xlu0 %1912
    %1914 = vrot.lane.b32.xlu0 %v899, 48
    %v1915 = vpop.permute.xlu0 %1914
    %1916 = vrot.lane.b32.xlu0 %v1036, 48
    %v1917 = vpop.permute.xlu0 %1916
    %1918 = vrot.lane.b32.xlu0 %v902, 48
    %v1919 = vpop.permute.xlu0 %1918
    %1920 = vrot.lane.b32.xlu0 %v1037, 48
    %v1921 = vpop.permute.xlu0 %1920
    %1922 = vrot.lane.b32.xlu0 %v905, 48
    %v1923 = vpop.permute.xlu0 %1922
    %1924 = vrot.lane.b32.xlu0 %v1038, 48
    %v1925 = vpop.permute.xlu0 %1924
    %1926 = vrot.lane.b32.xlu0 %v908, 48
    %v1927 = vpop.permute.xlu0 %1926
    %1928 = vrot.lane.b32.xlu0 %v1039, 48
    %v1929 = vpop.permute.xlu0 %1928
    %1930 = vrot.lane.b32.xlu0 %v911, 48
    %v1931 = vpop.permute.xlu0 %1930
    %1932 = vrot.lane.b32.xlu0 %v1040, 48
    %v1933 = vpop.permute.xlu0 %1932
    %1934 = vrot.lane.b32.xlu0 %v914, 48
    %v1935 = vpop.permute.xlu0 %1934
    %v2002 = vrot.slane %v1024, 1
    %v2003 = vrot.slane %v866, 1
    %v2004 = vsel %vm1134, %v2002, %v2003
    %v2005 = vrot.slane %v1056, 1
    %v2006 = vsel %vm1134, %v2003, %v2005
    %v2007 = vrot.slane %v1040, 1
    %v2008 = vrot.slane %v914, 1
    %v2009 = vsel %vm1134, %v2007, %v2008
    %v2010 = vrot.slane %v1072, 1
    %v2011 = vsel %vm1134, %v2008, %v2010
    %2012 = vrot.lane.b32.xlu0 %v1139, 64
    %v2013 = vpop.permute.xlu0 %2012
    %2014 = vrot.lane.b32.xlu0 %v1141, 64
    %v2015 = vpop.permute.xlu0 %2014
    %2016 = vrot.lane.b32.xlu0 %v1144, 64
    %v2017 = vpop.permute.xlu0 %2016
    %2018 = vrot.lane.b32.xlu0 %v1146, 64
    %v2019 = vpop.permute.xlu0 %2018
    %2020 = vrot.lane.b32.xlu0 %v1149, 64
    %v2021 = vpop.permute.xlu0 %2020
    %2022 = vrot.lane.b32.xlu0 %v1151, 64
    %v2023 = vpop.permute.xlu0 %2022
    %2024 = vrot.lane.b32.xlu0 %v1154, 64
    %v2025 = vpop.permute.xlu0 %2024
    %2026 = vrot.lane.b32.xlu0 %v1156, 64
    %v2027 = vpop.permute.xlu0 %2026
    %2028 = vrot.lane.b32.xlu0 %v1159, 64
    %v2029 = vpop.permute.xlu0 %2028
    %2030 = vrot.lane.b32.xlu0 %v1161, 64
    %v2031 = vpop.permute.xlu0 %2030
    %2032 = vrot.lane.b32.xlu0 %v1164, 64
    %v2033 = vpop.permute.xlu0 %2032
    %2034 = vrot.lane.b32.xlu0 %v1166, 64
    %v2035 = vpop.permute.xlu0 %2034
    %2036 = vrot.lane.b32.xlu0 %v1169, 64
    %v2037 = vpop.permute.xlu0 %2036
    %2038 = vrot.lane.b32.xlu0 %v1171, 64
    %v2039 = vpop.permute.xlu0 %2038
    %2040 = vrot.lane.b32.xlu0 %v1174, 64
    %v2041 = vpop.permute.xlu0 %2040
    %2042 = vrot.lane.b32.xlu0 %v1176, 64
    %v2043 = vpop.permute.xlu0 %2042
    %2044 = vrot.lane.b32.xlu0 %v1179, 64
    %v2045 = vpop.permute.xlu0 %2044
    %2046 = vrot.lane.b32.xlu0 %v1181, 64
    %v2047 = vpop.permute.xlu0 %2046
    %2048 = vrot.lane.b32.xlu0 %v1184, 64
    %v2049 = vpop.permute.xlu0 %2048
    %2050 = vrot.lane.b32.xlu0 %v1186, 64
    %v2051 = vpop.permute.xlu0 %2050
    %2052 = vrot.lane.b32.xlu0 %v1189, 64
    %v2053 = vpop.permute.xlu0 %2052
    %2054 = vrot.lane.b32.xlu0 %v1191, 64
    %v2055 = vpop.permute.xlu0 %2054
    %2056 = vrot.lane.b32.xlu0 %v1194, 64
    %v2057 = vpop.permute.xlu0 %2056
    %2058 = vrot.lane.b32.xlu0 %v1196, 64
    %v2059 = vpop.permute.xlu0 %2058
    %2060 = vrot.lane.b32.xlu0 %v1199, 64
    %v2061 = vpop.permute.xlu0 %2060
    %2062 = vrot.lane.b32.xlu0 %v1201, 64
    %v2063 = vpop.permute.xlu0 %2062
    %2064 = vrot.lane.b32.xlu0 %v1204, 64
    %v2065 = vpop.permute.xlu0 %2064
    %2066 = vrot.lane.b32.xlu0 %v1206, 64
    %v2067 = vpop.permute.xlu0 %2066
    %2068 = vrot.lane.b32.xlu0 %v1209, 64
    %v2069 = vpop.permute.xlu0 %2068
    %2070 = vrot.lane.b32.xlu0 %v1211, 64
    %v2071 = vpop.permute.xlu0 %2070
    %2072 = vrot.lane.b32.xlu0 %v2004, 64
    %v2073 = vpop.permute.xlu0 %2072
    %2074 = vrot.lane.b32.xlu0 %v2006, 64
    %v2075 = vpop.permute.xlu0 %2074
    %2076 = vrot.lane.b32.xlu0 %v1214, 64
    %v2077 = vpop.permute.xlu0 %2076
    %2078 = vrot.lane.b32.xlu0 %v1216, 64
    %v2079 = vpop.permute.xlu0 %2078
    %2080 = vrot.lane.b32.xlu0 %v1219, 64
    %v2081 = vpop.permute.xlu0 %2080
    %2082 = vrot.lane.b32.xlu0 %v1221, 64
    %v2083 = vpop.permute.xlu0 %2082
    %2084 = vrot.lane.b32.xlu0 %v1224, 64
    %v2085 = vpop.permute.xlu0 %2084
    %2086 = vrot.lane.b32.xlu0 %v1226, 64
    %v2087 = vpop.permute.xlu0 %2086
    %2088 = vrot.lane.b32.xlu0 %v1229, 64
    %v2089 = vpop.permute.xlu0 %2088
    %2090 = vrot.lane.b32.xlu0 %v1231, 64
    %v2091 = vpop.permute.xlu0 %2090
    %2092 = vrot.lane.b32.xlu0 %v1234, 64
    %v2093 = vpop.permute.xlu0 %2092
    %2094 = vrot.lane.b32.xlu0 %v1236, 64
    %v2095 = vpop.permute.xlu0 %2094
    %2096 = vrot.lane.b32.xlu0 %v1239, 64
    %v2097 = vpop.permute.xlu0 %2096
    %2098 = vrot.lane.b32.xlu0 %v1241, 64
    %v2099 = vpop.permute.xlu0 %2098
    %2100 = vrot.lane.b32.xlu0 %v1244, 64
    %v2101 = vpop.permute.xlu0 %2100
    %2102 = vrot.lane.b32.xlu0 %v1246, 64
    %v2103 = vpop.permute.xlu0 %2102
    %2104 = vrot.lane.b32.xlu0 %v1249, 64
    %v2105 = vpop.permute.xlu0 %2104
    %2106 = vrot.lane.b32.xlu0 %v1251, 64
    %v2107 = vpop.permute.xlu0 %2106
    %2108 = vrot.lane.b32.xlu0 %v1254, 64
    %v2109 = vpop.permute.xlu0 %2108
    %2110 = vrot.lane.b32.xlu0 %v1256, 64
    %v2111 = vpop.permute.xlu0 %2110
    %2112 = vrot.lane.b32.xlu0 %v1259, 64
    %v2113 = vpop.permute.xlu0 %2112
    %2114 = vrot.lane.b32.xlu0 %v1261, 64
    %v2115 = vpop.permute.xlu0 %2114
    %2116 = vrot.lane.b32.xlu0 %v1264, 64
    %v2117 = vpop.permute.xlu0 %2116
    %2118 = vrot.lane.b32.xlu0 %v1266, 64
    %v2119 = vpop.permute.xlu0 %2118
    %2120 = vrot.lane.b32.xlu0 %v1269, 64
    %v2121 = vpop.permute.xlu0 %2120
    %2122 = vrot.lane.b32.xlu0 %v1271, 64
    %v2123 = vpop.permute.xlu0 %2122
    %2124 = vrot.lane.b32.xlu0 %v1274, 64
    %v2125 = vpop.permute.xlu0 %2124
    %2126 = vrot.lane.b32.xlu0 %v1276, 64
    %v2127 = vpop.permute.xlu0 %2126
    %2128 = vrot.lane.b32.xlu0 %v1279, 64
    %v2129 = vpop.permute.xlu0 %2128
    %2130 = vrot.lane.b32.xlu0 %v1281, 64
    %v2131 = vpop.permute.xlu0 %2130
    %2132 = vrot.lane.b32.xlu0 %v1284, 64
    %v2133 = vpop.permute.xlu0 %2132
    %2134 = vrot.lane.b32.xlu0 %v1286, 64
    %v2135 = vpop.permute.xlu0 %2134
    %2136 = vrot.lane.b32.xlu0 %v2009, 64
    %v2137 = vpop.permute.xlu0 %2136
    %2138 = vrot.lane.b32.xlu0 %v2011, 64
    %v2139 = vpop.permute.xlu0 %2138
    %v2204 = vrot.slane %v1024, 2
    %v2205 = vrot.slane %v866, 2
    %v2206 = vsel %vm1470, %v2204, %v2205
    %v2207 = vrot.slane %v1056, 2
    %v2208 = vsel %vm1470, %v2205, %v2207
    %v2209 = vrot.slane %v1040, 2
    %v2210 = vrot.slane %v914, 2
    %v2211 = vsel %vm1470, %v2209, %v2210
    %v2212 = vrot.slane %v1072, 2
    %v2213 = vsel %vm1470, %v2210, %v2212
    %2214 = vrot.lane.b32.xlu0 %v1475, 80
    %v2215 = vpop.permute.xlu0 %2214
    %2216 = vrot.lane.b32.xlu0 %v1477, 80
    %v2217 = vpop.permute.xlu0 %2216
    %2218 = vrot.lane.b32.xlu0 %v1480, 80
    %v2219 = vpop.permute.xlu0 %2218
    %2220 = vrot.lane.b32.xlu0 %v1482, 80
    %v2221 = vpop.permute.xlu0 %2220
    %2222 = vrot.lane.b32.xlu0 %v1485, 80
    %v2223 = vpop.permute.xlu0 %2222
    %2224 = vrot.lane.b32.xlu0 %v1487, 80
    %v2225 = vpop.permute.xlu0 %2224
    %2226 = vrot.lane.b32.xlu0 %v1490, 80
    %v2227 = vpop.permute.xlu0 %2226
    %2228 = vrot.lane.b32.xlu0 %v1492, 80
    %v2229 = vpop.permute.xlu0 %2228
    %2230 = vrot.lane.b32.xlu0 %v1495, 80
    %v2231 = vpop.permute.xlu0 %2230
    %2232 = vrot.lane.b32.xlu0 %v1497, 80
    %v2233 = vpop.permute.xlu0 %2232
    %2234 = vrot.lane.b32.xlu0 %v1500, 80
    %v2235 = vpop.permute.xlu0 %2234
    %2236 = vrot.lane.b32.xlu0 %v1502, 80
    %v2237 = vpop.permute.xlu0 %2236
    %2238 = vrot.lane.b32.xlu0 %v1505, 80
    %v2239 = vpop.permute.xlu0 %2238
    %2240 = vrot.lane.b32.xlu0 %v1507, 80
    %v2241 = vpop.permute.xlu0 %2240
    %2242 = vrot.lane.b32.xlu0 %v1510, 80
    %v2243 = vpop.permute.xlu0 %2242
    %2244 = vrot.lane.b32.xlu0 %v1512, 80
    %v2245 = vpop.permute.xlu0 %2244
    %2246 = vrot.lane.b32.xlu0 %v1515, 80
    %v2247 = vpop.permute.xlu0 %2246
    %2248 = vrot.lane.b32.xlu0 %v1517, 80
    %v2249 = vpop.permute.xlu0 %2248
    %2250 = vrot.lane.b32.xlu0 %v1520, 80
    %v2251 = vpop.permute.xlu0 %2250
    %2252 = vrot.lane.b32.xlu0 %v1522, 80
    %v2253 = vpop.permute.xlu0 %2252
    %2254 = vrot.lane.b32.xlu0 %v1525, 80
    %v2255 = vpop.permute.xlu0 %2254
    %2256 = vrot.lane.b32.xlu0 %v1527, 80
    %v2257 = vpop.permute.xlu0 %2256
    %2258 = vrot.lane.b32.xlu0 %v1530, 80
    %v2259 = vpop.permute.xlu0 %2258
    %2260 = vrot.lane.b32.xlu0 %v1532, 80
    %v2261 = vpop.permute.xlu0 %2260
    %2262 = vrot.lane.b32.xlu0 %v1535, 80
    %v2263 = vpop.permute.xlu0 %2262
    %2264 = vrot.lane.b32.xlu0 %v1537, 80
    %v2265 = vpop.permute.xlu0 %2264
    %2266 = vrot.lane.b32.xlu0 %v1540, 80
    %v2267 = vpop.permute.xlu0 %2266
    %2268 = vrot.lane.b32.xlu0 %v1542, 80
    %v2269 = vpop.permute.xlu0 %2268
    %2270 = vrot.lane.b32.xlu0 %v1545, 80
    %v2271 = vpop.permute.xlu0 %2270
    %2272 = vrot.lane.b32.xlu0 %v1547, 80
    %v2273 = vpop.permute.xlu0 %2272
    %2274 = vrot.lane.b32.xlu0 %v2206, 80
    %v2275 = vpop.permute.xlu0 %2274
    %2276 = vrot.lane.b32.xlu0 %v2208, 80
    %v2277 = vpop.permute.xlu0 %2276
    %2278 = vrot.lane.b32.xlu0 %v1550, 80
    %v2279 = vpop.permute.xlu0 %2278
    %2280 = vrot.lane.b32.xlu0 %v1552, 80
    %v2281 = vpop.permute.xlu0 %2280
    %2282 = vrot.lane.b32.xlu0 %v1555, 80
    %v2283 = vpop.permute.xlu0 %2282
    %2284 = vrot.lane.b32.xlu0 %v1557, 80
    %v2285 = vpop.permute.xlu0 %2284
    %2286 = vrot.lane.b32.xlu0 %v1560, 80
    %v2287 = vpop.permute.xlu0 %2286
    %2288 = vrot.lane.b32.xlu0 %v1562, 80
    %v2289 = vpop.permute.xlu0 %2288
    %2290 = vrot.lane.b32.xlu0 %v1565, 80
    %v2291 = vpop.permute.xlu0 %2290
    %2292 = vrot.lane.b32.xlu0 %v1567, 80
    %v2293 = vpop.permute.xlu0 %2292
    %2294 = vrot.lane.b32.xlu0 %v1570, 80
    %v2295 = vpop.permute.xlu0 %2294
    %2296 = vrot.lane.b32.xlu0 %v1572, 80
    %v2297 = vpop.permute.xlu0 %2296
    %2298 = vrot.lane.b32.xlu0 %v1575, 80
    %v2299 = vpop.permute.xlu0 %2298
    %2300 = vrot.lane.b32.xlu0 %v1577, 80
    %v2301 = vpop.permute.xlu0 %2300
    %2302 = vrot.lane.b32.xlu0 %v1580, 80
    %v2303 = vpop.permute.xlu0 %2302
    %2304 = vrot.lane.b32.xlu0 %v1582, 80
    %v2305 = vpop.permute.xlu0 %2304
    %2306 = vrot.lane.b32.xlu0 %v1585, 80
    %v2307 = vpop.permute.xlu0 %2306
    %2308 = vrot.lane.b32.xlu0 %v1587, 80
    %v2309 = vpop.permute.xlu0 %2308
    %2310 = vrot.lane.b32.xlu0 %v1590, 80
    %v2311 = vpop.permute.xlu0 %2310
    %2312 = vrot.lane.b32.xlu0 %v1592, 80
    %v2313 = vpop.permute.xlu0 %2312
    %2314 = vrot.lane.b32.xlu0 %v1595, 80
    %v2315 = vpop.permute.xlu0 %2314
    %2316 = vrot.lane.b32.xlu0 %v1597, 80
    %v2317 = vpop.permute.xlu0 %2316
    %2318 = vrot.lane.b32.xlu0 %v1600, 80
    %v2319 = vpop.permute.xlu0 %2318
    %2320 = vrot.lane.b32.xlu0 %v1602, 80
    %v2321 = vpop.permute.xlu0 %2320
    %2322 = vrot.lane.b32.xlu0 %v1605, 80
    %v2323 = vpop.permute.xlu0 %2322
    %2324 = vrot.lane.b32.xlu0 %v1607, 80
    %v2325 = vpop.permute.xlu0 %2324
    %2326 = vrot.lane.b32.xlu0 %v1610, 80
    %v2327 = vpop.permute.xlu0 %2326
    %2328 = vrot.lane.b32.xlu0 %v1612, 80
    %v2329 = vpop.permute.xlu0 %2328
    %2330 = vrot.lane.b32.xlu0 %v1615, 80
    %v2331 = vpop.permute.xlu0 %2330
    %2332 = vrot.lane.b32.xlu0 %v1617, 80
    %v2333 = vpop.permute.xlu0 %2332
    %2334 = vrot.lane.b32.xlu0 %v1620, 80
    %v2335 = vpop.permute.xlu0 %2334
    %2336 = vrot.lane.b32.xlu0 %v1622, 80
    %v2337 = vpop.permute.xlu0 %2336
    %2338 = vrot.lane.b32.xlu0 %v2211, 80
    %v2339 = vpop.permute.xlu0 %2338
    %2340 = vrot.lane.b32.xlu0 %v2213, 80
    %v2341 = vpop.permute.xlu0 %2340
    %2406 = vrot.lane.b32.xlu0 %v1010, 96
    %v2407 = vpop.permute.xlu0 %2406
    %2408 = vrot.lane.b32.xlu0 %v824, 96
    %v2409 = vpop.permute.xlu0 %2408
    %2410 = vrot.lane.b32.xlu0 %v1011, 96
    %v2411 = vpop.permute.xlu0 %2410
    %2412 = vrot.lane.b32.xlu0 %v827, 96
    %v2413 = vpop.permute.xlu0 %2412
    %2414 = vrot.lane.b32.xlu0 %v1012, 96
    %v2415 = vpop.permute.xlu0 %2414
    %2416 = vrot.lane.b32.xlu0 %v830, 96
    %v2417 = vpop.permute.xlu0 %2416
    %2418 = vrot.lane.b32.xlu0 %v1013, 96
    %v2419 = vpop.permute.xlu0 %2418
    %2420 = vrot.lane.b32.xlu0 %v833, 96
    %v2421 = vpop.permute.xlu0 %2420
    %2422 = vrot.lane.b32.xlu0 %v1014, 96
    %v2423 = vpop.permute.xlu0 %2422
    %2424 = vrot.lane.b32.xlu0 %v836, 96
    %v2425 = vpop.permute.xlu0 %2424
    %2426 = vrot.lane.b32.xlu0 %v1015, 96
    %v2427 = vpop.permute.xlu0 %2426
    %2428 = vrot.lane.b32.xlu0 %v839, 96
    %v2429 = vpop.permute.xlu0 %2428
    %2430 = vrot.lane.b32.xlu0 %v1016, 96
    %v2431 = vpop.permute.xlu0 %2430
    %2432 = vrot.lane.b32.xlu0 %v842, 96
    %v2433 = vpop.permute.xlu0 %2432
    %2434 = vrot.lane.b32.xlu0 %v1017, 96
    %v2435 = vpop.permute.xlu0 %2434
    %2436 = vrot.lane.b32.xlu0 %v845, 96
    %v2437 = vpop.permute.xlu0 %2436
    %2438 = vrot.lane.b32.xlu0 %v1018, 96
    %v2439 = vpop.permute.xlu0 %2438
    %2440 = vrot.lane.b32.xlu0 %v848, 96
    %v2441 = vpop.permute.xlu0 %2440
    %2442 = vrot.lane.b32.xlu0 %v1019, 96
    %v2443 = vpop.permute.xlu0 %2442
    %2444 = vrot.lane.b32.xlu0 %v851, 96
    %v2445 = vpop.permute.xlu0 %2444
    %2446 = vrot.lane.b32.xlu0 %v1020, 96
    %v2447 = vpop.permute.xlu0 %2446
    %2448 = vrot.lane.b32.xlu0 %v854, 96
    %v2449 = vpop.permute.xlu0 %2448
    %2450 = vrot.lane.b32.xlu0 %v1021, 96
    %v2451 = vpop.permute.xlu0 %2450
    %2452 = vrot.lane.b32.xlu0 %v857, 96
    %v2453 = vpop.permute.xlu0 %2452
    %2454 = vrot.lane.b32.xlu0 %v1022, 96
    %v2455 = vpop.permute.xlu0 %2454
    %2456 = vrot.lane.b32.xlu0 %v860, 96
    %v2457 = vpop.permute.xlu0 %2456
    %2458 = vrot.lane.b32.xlu0 %v1023, 96
    %v2459 = vpop.permute.xlu0 %2458
    %2460 = vrot.lane.b32.xlu0 %v863, 96
    %v2461 = vpop.permute.xlu0 %2460
    %2462 = vrot.lane.b32.xlu0 %v1024, 96
    %v2463 = vpop.permute.xlu0 %2462
    %2464 = vrot.lane.b32.xlu0 %v866, 96
    %v2465 = vpop.permute.xlu0 %2464
    %2466 = vrot.lane.b32.xlu0 0.0, 96
    %v2467 = vpop.permute.xlu0 %2466
    %2468 = vrot.lane.b32.xlu0 %v1026, 96
    %v2469 = vpop.permute.xlu0 %2468
    %2470 = vrot.lane.b32.xlu0 %v872, 96
    %v2471 = vpop.permute.xlu0 %2470
    %2472 = vrot.lane.b32.xlu0 %v1027, 96
    %v2473 = vpop.permute.xlu0 %2472
    %2474 = vrot.lane.b32.xlu0 %v875, 96
    %v2475 = vpop.permute.xlu0 %2474
    %2476 = vrot.lane.b32.xlu0 %v1028, 96
    %v2477 = vpop.permute.xlu0 %2476
    %2478 = vrot.lane.b32.xlu0 %v878, 96
    %v2479 = vpop.permute.xlu0 %2478
    %2480 = vrot.lane.b32.xlu0 %v1029, 96
    %v2481 = vpop.permute.xlu0 %2480
    %2482 = vrot.lane.b32.xlu0 %v881, 96
    %v2483 = vpop.permute.xlu0 %2482
    %2484 = vrot.lane.b32.xlu0 %v1030, 96
    %v2485 = vpop.permute.xlu0 %2484
    %2486 = vrot.lane.b32.xlu0 %v884, 96
    %v2487 = vpop.permute.xlu0 %2486
    %2488 = vrot.lane.b32.xlu0 %v1031, 96
    %v2489 = vpop.permute.xlu0 %2488
    %2490 = vrot.lane.b32.xlu0 %v887, 96
    %v2491 = vpop.permute.xlu0 %2490
    %2492 = vrot.lane.b32.xlu0 %v1032, 96
    %v2493 = vpop.permute.xlu0 %2492
    %2494 = vrot.lane.b32.xlu0 %v890, 96
    %v2495 = vpop.permute.xlu0 %2494
    %2496 = vrot.lane.b32.xlu0 %v1033, 96
    %v2497 = vpop.permute.xlu0 %2496
    %2498 = vrot.lane.b32.xlu0 %v893, 96
    %v2499 = vpop.permute.xlu0 %2498
    %2500 = vrot.lane.b32.xlu0 %v1034, 96
    %v2501 = vpop.permute.xlu0 %2500
    %2502 = vrot.lane.b32.xlu0 %v896, 96
    %v2503 = vpop.permute.xlu0 %2502
    %2504 = vrot.lane.b32.xlu0 %v1035, 96
    %v2505 = vpop.permute.xlu0 %2504
    %2506 = vrot.lane.b32.xlu0 %v899, 96
    %v2507 = vpop.permute.xlu0 %2506
    %2508 = vrot.lane.b32.xlu0 %v1036, 96
    %v2509 = vpop.permute.xlu0 %2508
    %2510 = vrot.lane.b32.xlu0 %v902, 96
    %v2511 = vpop.permute.xlu0 %2510
    %2512 = vrot.lane.b32.xlu0 %v1037, 96
    %v2513 = vpop.permute.xlu0 %2512
    %2514 = vrot.lane.b32.xlu0 %v905, 96
    %v2515 = vpop.permute.xlu0 %2514
    %2516 = vrot.lane.b32.xlu0 %v1038, 96
    %v2517 = vpop.permute.xlu0 %2516
    %2518 = vrot.lane.b32.xlu0 %v908, 96
    %v2519 = vpop.permute.xlu0 %2518
    %2520 = vrot.lane.b32.xlu0 %v1039, 96
    %v2521 = vpop.permute.xlu0 %2520
    %2522 = vrot.lane.b32.xlu0 %v911, 96
    %v2523 = vpop.permute.xlu0 %2522
    %2524 = vrot.lane.b32.xlu0 %v1040, 96
    %v2525 = vpop.permute.xlu0 %2524
    %2526 = vrot.lane.b32.xlu0 %v914, 96
    %v2527 = vpop.permute.xlu0 %2526
    %2589 = vrot.lane.b32.xlu0 %v1144, 112
    %v2590 = vpop.permute.xlu0 %2589
    %2591 = vrot.lane.b32.xlu0 %v1146, 112
    %v2592 = vpop.permute.xlu0 %2591
    %2593 = vrot.lane.b32.xlu0 %v1149, 112
    %v2594 = vpop.permute.xlu0 %2593
    %2595 = vrot.lane.b32.xlu0 %v1151, 112
    %v2596 = vpop.permute.xlu0 %2595
    %2597 = vrot.lane.b32.xlu0 %v1154, 112
    %v2598 = vpop.permute.xlu0 %2597
    %2599 = vrot.lane.b32.xlu0 %v1156, 112
    %v2600 = vpop.permute.xlu0 %2599
    %2601 = vrot.lane.b32.xlu0 %v1159, 112
    %v2602 = vpop.permute.xlu0 %2601
    %2603 = vrot.lane.b32.xlu0 %v1161, 112
    %v2604 = vpop.permute.xlu0 %2603
    %2605 = vrot.lane.b32.xlu0 %v1164, 112
    %v2606 = vpop.permute.xlu0 %2605
    %2607 = vrot.lane.b32.xlu0 %v1166, 112
    %v2608 = vpop.permute.xlu0 %2607
    %2609 = vrot.lane.b32.xlu0 %v1169, 112
    %v2610 = vpop.permute.xlu0 %2609
    %2611 = vrot.lane.b32.xlu0 %v1171, 112
    %v2612 = vpop.permute.xlu0 %2611
    %2613 = vrot.lane.b32.xlu0 %v1174, 112
    %v2614 = vpop.permute.xlu0 %2613
    %2615 = vrot.lane.b32.xlu0 %v1176, 112
    %v2616 = vpop.permute.xlu0 %2615
    %2617 = vrot.lane.b32.xlu0 %v1179, 112
    %v2618 = vpop.permute.xlu0 %2617
    %2619 = vrot.lane.b32.xlu0 %v1181, 112
    %v2620 = vpop.permute.xlu0 %2619
    %2621 = vrot.lane.b32.xlu0 %v1184, 112
    %v2622 = vpop.permute.xlu0 %2621
    %2623 = vrot.lane.b32.xlu0 %v1186, 112
    %v2624 = vpop.permute.xlu0 %2623
    %2625 = vrot.lane.b32.xlu0 %v1189, 112
    %v2626 = vpop.permute.xlu0 %2625
    %2627 = vrot.lane.b32.xlu0 %v1191, 112
    %v2628 = vpop.permute.xlu0 %2627
    %2629 = vrot.lane.b32.xlu0 %v1194, 112
    %v2630 = vpop.permute.xlu0 %2629
    %2631 = vrot.lane.b32.xlu0 %v1196, 112
    %v2632 = vpop.permute.xlu0 %2631
    %2633 = vrot.lane.b32.xlu0 %v1199, 112
    %v2634 = vpop.permute.xlu0 %2633
    %2635 = vrot.lane.b32.xlu0 %v1201, 112
    %v2636 = vpop.permute.xlu0 %2635
    %2637 = vrot.lane.b32.xlu0 %v1204, 112
    %v2638 = vpop.permute.xlu0 %2637
    %2639 = vrot.lane.b32.xlu0 %v1206, 112
    %v2640 = vpop.permute.xlu0 %2639
    %2641 = vrot.lane.b32.xlu0 %v1209, 112
    %v2642 = vpop.permute.xlu0 %2641
    %2643 = vrot.lane.b32.xlu0 %v1211, 112
    %v2644 = vpop.permute.xlu0 %2643
    %2645 = vrot.lane.b32.xlu0 %v2004, 112
    %v2646 = vpop.permute.xlu0 %2645
    %2647 = vrot.lane.b32.xlu0 %v2006, 112
    %v2648 = vpop.permute.xlu0 %2647
    %2649 = vrot.lane.b32.xlu0 %v1136, 112
    %v2650 = vpop.permute.xlu0 %2649
    %2651 = vrot.lane.b32.xlu0 %v1219, 112
    %v2652 = vpop.permute.xlu0 %2651
    %2653 = vrot.lane.b32.xlu0 %v1221, 112
    %v2654 = vpop.permute.xlu0 %2653
    %2655 = vrot.lane.b32.xlu0 %v1224, 112
    %v2656 = vpop.permute.xlu0 %2655
    %2657 = vrot.lane.b32.xlu0 %v1226, 112
    %v2658 = vpop.permute.xlu0 %2657
    %2659 = vrot.lane.b32.xlu0 %v1229, 112
    %v2660 = vpop.permute.xlu0 %2659
    %2661 = vrot.lane.b32.xlu0 %v1231, 112
    %v2662 = vpop.permute.xlu0 %2661
    %2663 = vrot.lane.b32.xlu0 %v1234, 112
    %v2664 = vpop.permute.xlu0 %2663
    %2665 = vrot.lane.b32.xlu0 %v1236, 112
    %v2666 = vpop.permute.xlu0 %2665
    %2667 = vrot.lane.b32.xlu0 %v1239, 112
    %v2668 = vpop.permute.xlu0 %2667
    %2669 = vrot.lane.b32.xlu0 %v1241, 112
    %v2670 = vpop.permute.xlu0 %2669
    %2671 = vrot.lane.b32.xlu0 %v1244, 112
    %v2672 = vpop.permute.xlu0 %2671
    %2673 = vrot.lane.b32.xlu0 %v1246, 112
    %v2674 = vpop.permute.xlu0 %2673
    %2675 = vrot.lane.b32.xlu0 %v1249, 112
    %v2676 = vpop.permute.xlu0 %2675
    %2677 = vrot.lane.b32.xlu0 %v1251, 112
    %v2678 = vpop.permute.xlu0 %2677
    %2679 = vrot.lane.b32.xlu0 %v1254, 112
    %v2680 = vpop.permute.xlu0 %2679
    %2681 = vrot.lane.b32.xlu0 %v1256, 112
    %v2682 = vpop.permute.xlu0 %2681
    %2683 = vrot.lane.b32.xlu0 %v1259, 112
    %v2684 = vpop.permute.xlu0 %2683
    %2685 = vrot.lane.b32.xlu0 %v1261, 112
    %v2686 = vpop.permute.xlu0 %2685
    %2687 = vrot.lane.b32.xlu0 %v1264, 112
    %v2688 = vpop.permute.xlu0 %2687
    %2689 = vrot.lane.b32.xlu0 %v1266, 112
    %v2690 = vpop.permute.xlu0 %2689
    %2691 = vrot.lane.b32.xlu0 %v1269, 112
    %v2692 = vpop.permute.xlu0 %2691
    %2693 = vrot.lane.b32.xlu0 %v1271, 112
    %v2694 = vpop.permute.xlu0 %2693
    %2695 = vrot.lane.b32.xlu0 %v1274, 112
    %v2696 = vpop.permute.xlu0 %2695
    %2697 = vrot.lane.b32.xlu0 %v1276, 112
    %v2698 = vpop.permute.xlu0 %2697
    %2699 = vrot.lane.b32.xlu0 %v1279, 112
    %v2700 = vpop.permute.xlu0 %2699
    %2701 = vrot.lane.b32.xlu0 %v1281, 112
    %v2702 = vpop.permute.xlu0 %2701
    %2703 = vrot.lane.b32.xlu0 %v1284, 112
    %v2704 = vpop.permute.xlu0 %2703
    %2705 = vrot.lane.b32.xlu0 %v1286, 112
    %v2706 = vpop.permute.xlu0 %2705
    %2707 = vrot.lane.b32.xlu0 %v2009, 112
    %v2708 = vpop.permute.xlu0 %2707
    %2709 = vrot.lane.b32.xlu0 %v2011, 112
    %v2710 = vpop.permute.xlu0 %2709
    %vm2772 = vcmask 130048
    %v2773 = vsel %vm2772, 0.0, %v1288
    %v2774 = vsel %vm2772, %v1009, %v1290
    %v2775 = vsel %vm2772, %v821, %v1292
    %v2776 = vsel %vm2772, %v1010, %v1294
    %v2777 = vsel %vm2772, %v824, %v1296
    %v2778 = vsel %vm2772, %v1011, %v1298
    %v2779 = vsel %vm2772, %v827, %v1300
    %v2780 = vsel %vm2772, %v1012, %v1302
    %v2781 = vsel %vm2772, %v830, %v1304
    %v2782 = vsel %vm2772, %v1013, %v1306
    %v2783 = vsel %vm2772, %v833, %v1308
    %v2784 = vsel %vm2772, %v1014, %v1310
    %v2785 = vsel %vm2772, %v836, %v1312
    %v2786 = vsel %vm2772, %v1015, %v1314
    %v2787 = vsel %vm2772, %v839, %v1316
    %v2788 = vsel %vm2772, %v1016, %v1318
    %v2789 = vsel %vm2772, %v842, %v1320
    %v2790 = vsel %vm2772, %v1017, %v1322
    %v2791 = vsel %vm2772, %v845, %v1324
    %v2792 = vsel %vm2772, %v1018, %v1326
    %v2793 = vsel %vm2772, %v848, %v1328
    %v2794 = vsel %vm2772, %v1019, %v1330
    %v2795 = vsel %vm2772, %v851, %v1332
    %v2796 = vsel %vm2772, %v1020, %v1334
    %v2797 = vsel %vm2772, %v854, %v1336
    %v2798 = vsel %vm2772, %v1021, %v1338
    %v2799 = vsel %vm2772, %v857, %v1340
    %v2800 = vsel %vm2772, %v1022, %v1342
    %v2801 = vsel %vm2772, %v860, %v1344
    %v2802 = vsel %vm2772, %v1023, %v1346
    %v2803 = vsel %vm2772, %v863, %v1348
    %v2804 = vsel %vm2772, %v1025, %v1350
    %v2805 = vsel %vm2772, %v869, %v1352
    %v2806 = vsel %vm2772, %v1026, %v1354
    %v2807 = vsel %vm2772, %v872, %v1356
    %v2808 = vsel %vm2772, %v1027, %v1358
    %v2809 = vsel %vm2772, %v875, %v1360
    %v2810 = vsel %vm2772, %v1028, %v1362
    %v2811 = vsel %vm2772, %v878, %v1364
    %v2812 = vsel %vm2772, %v1029, %v1366
    %v2813 = vsel %vm2772, %v881, %v1368
    %v2814 = vsel %vm2772, %v1030, %v1370
    %v2815 = vsel %vm2772, %v884, %v1372
    %v2816 = vsel %vm2772, %v1031, %v1374
    %v2817 = vsel %vm2772, %v887, %v1376
    %v2818 = vsel %vm2772, %v1032, %v1378
    %v2819 = vsel %vm2772, %v890, %v1380
    %v2820 = vsel %vm2772, %v1033, %v1382
    %v2821 = vsel %vm2772, %v893, %v1384
    %v2822 = vsel %vm2772, %v1034, %v1386
    %v2823 = vsel %vm2772, %v896, %v1388
    %v2824 = vsel %vm2772, %v1035, %v1390
    %v2825 = vsel %vm2772, %v899, %v1392
    %v2826 = vsel %vm2772, %v1036, %v1394
    %v2827 = vsel %vm2772, %v902, %v1396
    %v2828 = vsel %vm2772, %v1037, %v1398
    %v2829 = vsel %vm2772, %v905, %v1400
    %v2830 = vsel %vm2772, %v1038, %v1402
    %v2831 = vsel %vm2772, %v908, %v1404
    %v2832 = vsel %vm2772, %v1039, %v1406
    %v2833 = vsel %vm2772, %v911, %v1408
    %vm2834 = vcmask 261120
    %v2835 = vsel %vm2834, %v2773, %v1624
    %v2836 = vsel %vm2834, %v2774, %v1626
    %v2837 = vsel %vm2834, %v2775, %v1628
    %v2838 = vsel %vm2834, %v2776, %v1630
    %v2839 = vsel %vm2834, %v2777, %v1632
    %v2840 = vsel %vm2834, %v2778, %v1634
    %v2841 = vsel %vm2834, %v2779, %v1636
    %v2842 = vsel %vm2834, %v2780, %v1638
    %v2843 = vsel %vm2834, %v2781, %v1640
    %v2844 = vsel %vm2834, %v2782, %v1642
    %v2845 = vsel %vm2834, %v2783, %v1644
    %v2846 = vsel %vm2834, %v2784, %v1646
    %v2847 = vsel %vm2834, %v2785, %v1648
    %v2848 = vsel %vm2834, %v2786, %v1650
    %v2849 = vsel %vm2834, %v2787, %v1652
    %v2850 = vsel %vm2834, %v2788, %v1654
    %v2851 = vsel %vm2834, %v2789, %v1656
    %v2852 = vsel %vm2834, %v2790, %v1658
    %v2853 = vsel %vm2834, %v2791, %v1660
    %v2854 = vsel %vm2834, %v2792, %v1662
    %v2855 = vsel %vm2834, %v2793, %v1664
    %v2856 = vsel %vm2834, %v2794, %v1666
    %v2857 = vsel %vm2834, %v2795, %v1668
    %v2858 = vsel %vm2834, %v2796, %v1670
    %v2859 = vsel %vm2834, %v2797, %v1672
    %v2860 = vsel %vm2834, %v2798, %v1674
    %v2861 = vsel %vm2834, %v2799, %v1676
    %v2862 = vsel %vm2834, %v2800, %v1678
    %v2863 = vsel %vm2834, %v2801, %v1680
    %v2864 = vsel %vm2834, %v2802, %v1682
    %v2865 = vsel %vm2834, %v2803, %v1684
    %v2866 = vsel %vm2834, %v2804, %v1686
    %v2867 = vsel %vm2834, %v2805, %v1688
    %v2868 = vsel %vm2834, %v2806, %v1690
    %v2869 = vsel %vm2834, %v2807, %v1692
    %v2870 = vsel %vm2834, %v2808, %v1694
    %v2871 = vsel %vm2834, %v2809, %v1696
    %v2872 = vsel %vm2834, %v2810, %v1698
    %v2873 = vsel %vm2834, %v2811, %v1700
    %v2874 = vsel %vm2834, %v2812, %v1702
    %v2875 = vsel %vm2834, %v2813, %v1704
    %v2876 = vsel %vm2834, %v2814, %v1706
    %v2877 = vsel %vm2834, %v2815, %v1708
    %v2878 = vsel %vm2834, %v2816, %v1710
    %v2879 = vsel %vm2834, %v2817, %v1712
    %v2880 = vsel %vm2834, %v2818, %v1714
    %v2881 = vsel %vm2834, %v2819, %v1716
    %v2882 = vsel %vm2834, %v2820, %v1718
    %v2883 = vsel %vm2834, %v2821, %v1720
    %v2884 = vsel %vm2834, %v2822, %v1722
    %v2885 = vsel %vm2834, %v2823, %v1724
    %v2886 = vsel %vm2834, %v2824, %v1726
    %v2887 = vsel %vm2834, %v2825, %v1728
    %v2888 = vsel %vm2834, %v2826, %v1730
    %v2889 = vsel %vm2834, %v2827, %v1732
    %v2890 = vsel %vm2834, %v2828, %v1734
    %v2891 = vsel %vm2834, %v2829, %v1736
    %v2892 = vsel %vm2834, %v2830, %v1738
    %v2893 = vsel %vm2834, %v2831, %v1740
    %v2894 = vsel %vm2834, %v2832, %v1742
    %v2895 = vsel %vm2834, %v2833, %v1744
    %vm2896 = vcmask 392192
    %v2897 = vsel %vm2896, %v2835, %v1809
    %v2898 = vsel %vm2896, %v2835, %v1811
    %v2899 = vsel %vm2896, %v2836, %v1813
    %v2900 = vsel %vm2896, %v2837, %v1815
    %v2901 = vsel %vm2896, %v2838, %v1817
    %v2902 = vsel %vm2896, %v2839, %v1819
    %v2903 = vsel %vm2896, %v2840, %v1821
    %v2904 = vsel %vm2896, %v2841, %v1823
    %v2905 = vsel %vm2896, %v2842, %v1825
    %v2906 = vsel %vm2896, %v2843, %v1827
    %v2907 = vsel %vm2896, %v2844, %v1829
    %v2908 = vsel %vm2896, %v2845, %v1831
    %v2909 = vsel %vm2896, %v2846, %v1833
    %v2910 = vsel %vm2896, %v2847, %v1835
    %v2911 = vsel %vm2896, %v2848, %v1837
    %v2912 = vsel %vm2896, %v2849, %v1839
    %v2913 = vsel %vm2896, %v2850, %v1841
    %v2914 = vsel %vm2896, %v2851, %v1843
    %v2915 = vsel %vm2896, %v2852, %v1845
    %v2916 = vsel %vm2896, %v2853, %v1847
    %v2917 = vsel %vm2896, %v2854, %v1849
    %v2918 = vsel %vm2896, %v2855, %v1851
    %v2919 = vsel %vm2896, %v2856, %v1853
    %v2920 = vsel %vm2896, %v2857, %v1855
    %v2921 = vsel %vm2896, %v2858, %v1857
    %v2922 = vsel %vm2896, %v2859, %v1859
    %v2923 = vsel %vm2896, %v2860, %v1861
    %v2924 = vsel %vm2896, %v2861, %v1863
    %v2925 = vsel %vm2896, %v2862, %v1865
    %v2926 = vsel %vm2896, %v2863, %v1867
    %v2927 = vsel %vm2896, %v2864, %v1869
    %v2928 = vsel %vm2896, %v2865, %v1871
    %v2929 = vsel %vm2896, %v2835, %v1873
    %v2930 = vsel %vm2896, %v2835, %v1875
    %v2931 = vsel %vm2896, %v2866, %v1877
    %v2932 = vsel %vm2896, %v2867, %v1879
    %v2933 = vsel %vm2896, %v2868, %v1881
    %v2934 = vsel %vm2896, %v2869, %v1883
    %v2935 = vsel %vm2896, %v2870, %v1885
    %v2936 = vsel %vm2896, %v2871, %v1887
    %v2937 = vsel %vm2896, %v2872, %v1889
    %v2938 = vsel %vm2896, %v2873, %v1891
    %v2939 = vsel %vm2896, %v2874, %v1893
    %v2940 = vsel %vm2896, %v2875, %v1895
    %v2941 = vsel %vm2896, %v2876, %v1897
    %v2942 = vsel %vm2896, %v2877, %v1899
    %v2943 = vsel %vm2896, %v2878, %v1901
    %v2944 = vsel %vm2896, %v2879, %v1903
    %v2945 = vsel %vm2896, %v2880, %v1905
    %v2946 = vsel %vm2896, %v2881, %v1907
    %v2947 = vsel %vm2896, %v2882, %v1909
    %v2948 = vsel %vm2896, %v2883, %v1911
    %v2949 = vsel %vm2896, %v2884, %v1913
    %v2950 = vsel %vm2896, %v2885, %v1915
    %v2951 = vsel %vm2896, %v2886, %v1917
    %v2952 = vsel %vm2896, %v2887, %v1919
    %v2953 = vsel %vm2896, %v2888, %v1921
    %v2954 = vsel %vm2896, %v2889, %v1923
    %v2955 = vsel %vm2896, %v2890, %v1925
    %v2956 = vsel %vm2896, %v2891, %v1927
    %v2957 = vsel %vm2896, %v2892, %v1929
    %v2958 = vsel %vm2896, %v2893, %v1931
    %v2959 = vsel %vm2896, %v2894, %v1933
    %v2960 = vsel %vm2896, %v2895, %v1935
    %vm2961 = vcmask 523264
    %v2962 = vsel %vm2961, %v2897, %v2013
    %v2963 = vsel %vm2961, %v2898, %v2015
    %v2964 = vsel %vm2961, %v2899, %v2017
    %v2965 = vsel %vm2961, %v2900, %v2019
    %v2966 = vsel %vm2961, %v2901, %v2021
    %v2967 = vsel %vm2961, %v2902, %v2023
    %v2968 = vsel %vm2961, %v2903, %v2025
    %v2969 = vsel %vm2961, %v2904, %v2027
    %v2970 = vsel %vm2961, %v2905, %v2029
    %v2971 = vsel %vm2961, %v2906, %v2031
    %v2972 = vsel %vm2961, %v2907, %v2033
    %v2973 = vsel %vm2961, %v2908, %v2035
    %v2974 = vsel %vm2961, %v2909, %v2037
    %v2975 = vsel %vm2961, %v2910, %v2039
    %v2976 = vsel %vm2961, %v2911, %v2041
    %v2977 = vsel %vm2961, %v2912, %v2043
    %v2978 = vsel %vm2961, %v2913, %v2045
    %v2979 = vsel %vm2961, %v2914, %v2047
    %v2980 = vsel %vm2961, %v2915, %v2049
    %v2981 = vsel %vm2961, %v2916, %v2051
    %v2982 = vsel %vm2961, %v2917, %v2053
    %v2983 = vsel %vm2961, %v2918, %v2055
    %v2984 = vsel %vm2961, %v2919, %v2057
    %v2985 = vsel %vm2961, %v2920, %v2059
    %v2986 = vsel %vm2961, %v2921, %v2061
    %v2987 = vsel %vm2961, %v2922, %v2063
    %v2988 = vsel %vm2961, %v2923, %v2065
    %v2989 = vsel %vm2961, %v2924, %v2067
    %v2990 = vsel %vm2961, %v2925, %v2069
    %v2991 = vsel %vm2961, %v2926, %v2071
    %v2992 = vsel %vm2961, %v2927, %v2073
    %v2993 = vsel %vm2961, %v2928, %v2075
    %v2994 = vsel %vm2961, %v2929, %v2077
    %v2995 = vsel %vm2961, %v2930, %v2079
    %v2996 = vsel %vm2961, %v2931, %v2081
    %v2997 = vsel %vm2961, %v2932, %v2083
    %v2998 = vsel %vm2961, %v2933, %v2085
    %v2999 = vsel %vm2961, %v2934, %v2087
    %v3000 = vsel %vm2961, %v2935, %v2089
    %v3001 = vsel %vm2961, %v2936, %v2091
    %v3002 = vsel %vm2961, %v2937, %v2093
    %v3003 = vsel %vm2961, %v2938, %v2095
    %v3004 = vsel %vm2961, %v2939, %v2097
    %v3005 = vsel %vm2961, %v2940, %v2099
    %v3006 = vsel %vm2961, %v2941, %v2101
    %v3007 = vsel %vm2961, %v2942, %v2103
    %v3008 = vsel %vm2961, %v2943, %v2105
    %v3009 = vsel %vm2961, %v2944, %v2107
    %v3010 = vsel %vm2961, %v2945, %v2109
    %v3011 = vsel %vm2961, %v2946, %v2111
    %v3012 = vsel %vm2961, %v2947, %v2113
    %v3013 = vsel %vm2961, %v2948, %v2115
    %v3014 = vsel %vm2961, %v2949, %v2117
    %v3015 = vsel %vm2961, %v2950, %v2119
    %v3016 = vsel %vm2961, %v2951, %v2121
    %v3017 = vsel %vm2961, %v2952, %v2123
    %v3018 = vsel %vm2961, %v2953, %v2125
    %v3019 = vsel %vm2961, %v2954, %v2127
    %v3020 = vsel %vm2961, %v2955, %v2129
    %v3021 = vsel %vm2961, %v2956, %v2131
    %v3022 = vsel %vm2961, %v2957, %v2133
    %v3023 = vsel %vm2961, %v2958, %v2135
    %v3024 = vsel %vm2961, %v2959, %v2137
    %v3025 = vsel %vm2961, %v2960, %v2139
    %vm3026 = vcmask 654336
    %v3027 = vsel %vm3026, %v2962, %v2215
    %v3028 = vsel %vm3026, %v2963, %v2217
    %v3029 = vsel %vm3026, %v2964, %v2219
    %v3030 = vsel %vm3026, %v2965, %v2221
    %v3031 = vsel %vm3026, %v2966, %v2223
    %v3032 = vsel %vm3026, %v2967, %v2225
    %v3033 = vsel %vm3026, %v2968, %v2227
    %v3034 = vsel %vm3026, %v2969, %v2229
    %v3035 = vsel %vm3026, %v2970, %v2231
    %v3036 = vsel %vm3026, %v2971, %v2233
    %v3037 = vsel %vm3026, %v2972, %v2235
    %v3038 = vsel %vm3026, %v2973, %v2237
    %v3039 = vsel %vm3026, %v2974, %v2239
    %v3040 = vsel %vm3026, %v2975, %v2241
    %v3041 = vsel %vm3026, %v2976, %v2243
    %v3042 = vsel %vm3026, %v2977, %v2245
    %v3043 = vsel %vm3026, %v2978, %v2247
    %v3044 = vsel %vm3026, %v2979, %v2249
    %v3045 = vsel %vm3026, %v2980, %v2251
    %v3046 = vsel %vm3026, %v2981, %v2253
    %v3047 = vsel %vm3026, %v2982, %v2255
    %v3048 = vsel %vm3026, %v2983, %v2257
    %v3049 = vsel %vm3026, %v2984, %v2259
    %v3050 = vsel %vm3026, %v2985, %v2261
    %v3051 = vsel %vm3026, %v2986, %v2263
    %v3052 = vsel %vm3026, %v2987, %v2265
    %v3053 = vsel %vm3026, %v2988, %v2267
    %v3054 = vsel %vm3026, %v2989, %v2269
    %v3055 = vsel %vm3026, %v2990, %v2271
    %v3056 = vsel %vm3026, %v2991, %v2273
    %v3057 = vsel %vm3026, %v2992, %v2275
    %v3058 = vsel %vm3026, %v2993, %v2277
    %v3059 = vsel %vm3026, %v2994, %v2279
    %v3060 = vsel %vm3026, %v2995, %v2281
    %v3061 = vsel %vm3026, %v2996, %v2283
    %v3062 = vsel %vm3026, %v2997, %v2285
    %v3063 = vsel %vm3026, %v2998, %v2287
    %v3064 = vsel %vm3026, %v2999, %v2289
    %v3065 = vsel %vm3026, %v3000, %v2291
    %v3066 = vsel %vm3026, %v3001, %v2293
    %v3067 = vsel %vm3026, %v3002, %v2295
    %v3068 = vsel %vm3026, %v3003, %v2297
    %v3069 = vsel %vm3026, %v3004, %v2299
    %v3070 = vsel %vm3026, %v3005, %v2301
    %v3071 = vsel %vm3026, %v3006, %v2303
    %v3072 = vsel %vm3026, %v3007, %v2305
    %v3073 = vsel %vm3026, %v3008, %v2307
    %v3074 = vsel %vm3026, %v3009, %v2309
    %v3075 = vsel %vm3026, %v3010, %v2311
    %v3076 = vsel %vm3026, %v3011, %v2313
    %v3077 = vsel %vm3026, %v3012, %v2315
    %v3078 = vsel %vm3026, %v3013, %v2317
    %v3079 = vsel %vm3026, %v3014, %v2319
    %v3080 = vsel %vm3026, %v3015, %v2321
    %v3081 = vsel %vm3026, %v3016, %v2323
    %v3082 = vsel %vm3026, %v3017, %v2325
    %v3083 = vsel %vm3026, %v3018, %v2327
    %v3084 = vsel %vm3026, %v3019, %v2329
    %v3085 = vsel %vm3026, %v3020, %v2331
    %v3086 = vsel %vm3026, %v3021, %v2333
    %v3087 = vsel %vm3026, %v3022, %v2335
    %v3088 = vsel %vm3026, %v3023, %v2337
    %v3089 = vsel %vm3026, %v3024, %v2339
    %v3090 = vsel %vm3026, %v3025, %v2341
    %vm3091 = vcmask 785408
    %v3092 = vsel %vm3091, %v3027, %v2407
    %v3093 = vsel %vm3091, %v3028, %v2409
    %v3094 = vsel %vm3091, %v3029, %v2411
    %v3095 = vsel %vm3091, %v3030, %v2413
    %v3096 = vsel %vm3091, %v3031, %v2415
    %v3097 = vsel %vm3091, %v3032, %v2417
    %v3098 = vsel %vm3091, %v3033, %v2419
    %v3099 = vsel %vm3091, %v3034, %v2421
    %v3100 = vsel %vm3091, %v3035, %v2423
    %v3101 = vsel %vm3091, %v3036, %v2425
    %v3102 = vsel %vm3091, %v3037, %v2427
    %v3103 = vsel %vm3091, %v3038, %v2429
    %v3104 = vsel %vm3091, %v3039, %v2431
    %v3105 = vsel %vm3091, %v3040, %v2433
    %v3106 = vsel %vm3091, %v3041, %v2435
    %v3107 = vsel %vm3091, %v3042, %v2437
    %v3108 = vsel %vm3091, %v3043, %v2439
    %v3109 = vsel %vm3091, %v3044, %v2441
    %v3110 = vsel %vm3091, %v3045, %v2443
    %v3111 = vsel %vm3091, %v3046, %v2445
    %v3112 = vsel %vm3091, %v3047, %v2447
    %v3113 = vsel %vm3091, %v3048, %v2449
    %v3114 = vsel %vm3091, %v3049, %v2451
    %v3115 = vsel %vm3091, %v3050, %v2453
    %v3116 = vsel %vm3091, %v3051, %v2455
    %v3117 = vsel %vm3091, %v3052, %v2457
    %v3118 = vsel %vm3091, %v3053, %v2459
    %v3119 = vsel %vm3091, %v3054, %v2461
    %v3120 = vsel %vm3091, %v3055, %v2463
    %v3121 = vsel %vm3091, %v3056, %v2465
    %v3122 = vsel %vm3091, %v3057, %v2467
    %v3123 = vsel %vm3091, %v3058, %v2467
    %v3124 = vsel %vm3091, %v3059, %v2469
    %v3125 = vsel %vm3091, %v3060, %v2471
    %v3126 = vsel %vm3091, %v3061, %v2473
    %v3127 = vsel %vm3091, %v3062, %v2475
    %v3128 = vsel %vm3091, %v3063, %v2477
    %v3129 = vsel %vm3091, %v3064, %v2479
    %v3130 = vsel %vm3091, %v3065, %v2481
    %v3131 = vsel %vm3091, %v3066, %v2483
    %v3132 = vsel %vm3091, %v3067, %v2485
    %v3133 = vsel %vm3091, %v3068, %v2487
    %v3134 = vsel %vm3091, %v3069, %v2489
    %v3135 = vsel %vm3091, %v3070, %v2491
    %v3136 = vsel %vm3091, %v3071, %v2493
    %v3137 = vsel %vm3091, %v3072, %v2495
    %v3138 = vsel %vm3091, %v3073, %v2497
    %v3139 = vsel %vm3091, %v3074, %v2499
    %v3140 = vsel %vm3091, %v3075, %v2501
    %v3141 = vsel %vm3091, %v3076, %v2503
    %v3142 = vsel %vm3091, %v3077, %v2505
    %v3143 = vsel %vm3091, %v3078, %v2507
    %v3144 = vsel %vm3091, %v3079, %v2509
    %v3145 = vsel %vm3091, %v3080, %v2511
    %v3146 = vsel %vm3091, %v3081, %v2513
    %v3147 = vsel %vm3091, %v3082, %v2515
    %v3148 = vsel %vm3091, %v3083, %v2517
    %v3149 = vsel %vm3091, %v3084, %v2519
    %v3150 = vsel %vm3091, %v3085, %v2521
    %v3151 = vsel %vm3091, %v3086, %v2523
    %v3152 = vsel %vm3091, %v3087, %v2525
    %v3153 = vsel %vm3091, %v3088, %v2527
    %v3154 = vsel %vm3091, %v3089, %v2467
    %v3155 = vsel %vm3091, %v3090, %v2467
    %vm3156 = vcmask 916480
    %v3157 = vsel %vm3156, %v3092, %v2590
    %v3158 = vsel %vm3156, %v3093, %v2592
    %v3159 = vsel %vm3156, %v3094, %v2594
    %v3160 = vsel %vm3156, %v3095, %v2596
    %v3161 = vsel %vm3156, %v3096, %v2598
    %v3162 = vsel %vm3156, %v3097, %v2600
    %v3163 = vsel %vm3156, %v3098, %v2602
    %v3164 = vsel %vm3156, %v3099, %v2604
    %v3165 = vsel %vm3156, %v3100, %v2606
    %v3166 = vsel %vm3156, %v3101, %v2608
    %v3167 = vsel %vm3156, %v3102, %v2610
    %v3168 = vsel %vm3156, %v3103, %v2612
    %v3169 = vsel %vm3156, %v3104, %v2614
    %v3170 = vsel %vm3156, %v3105, %v2616
    %v3171 = vsel %vm3156, %v3106, %v2618
    %v3172 = vsel %vm3156, %v3107, %v2620
    %v3173 = vsel %vm3156, %v3108, %v2622
    %v3174 = vsel %vm3156, %v3109, %v2624
    %v3175 = vsel %vm3156, %v3110, %v2626
    %v3176 = vsel %vm3156, %v3111, %v2628
    %v3177 = vsel %vm3156, %v3112, %v2630
    %v3178 = vsel %vm3156, %v3113, %v2632
    %v3179 = vsel %vm3156, %v3114, %v2634
    %v3180 = vsel %vm3156, %v3115, %v2636
    %v3181 = vsel %vm3156, %v3116, %v2638
    %v3182 = vsel %vm3156, %v3117, %v2640
    %v3183 = vsel %vm3156, %v3118, %v2642
    %v3184 = vsel %vm3156, %v3119, %v2644
    %v3185 = vsel %vm3156, %v3120, %v2646
    %v3186 = vsel %vm3156, %v3121, %v2648
    %v3187 = vsel %vm3156, %v3122, %v2650
    %v3188 = vsel %vm3156, %v3123, %v2650
    %v3189 = vsel %vm3156, %v3124, %v2652
    %v3190 = vsel %vm3156, %v3125, %v2654
    %v3191 = vsel %vm3156, %v3126, %v2656
    %v3192 = vsel %vm3156, %v3127, %v2658
    %v3193 = vsel %vm3156, %v3128, %v2660
    %v3194 = vsel %vm3156, %v3129, %v2662
    %v3195 = vsel %vm3156, %v3130, %v2664
    %v3196 = vsel %vm3156, %v3131, %v2666
    %v3197 = vsel %vm3156, %v3132, %v2668
    %v3198 = vsel %vm3156, %v3133, %v2670
    %v3199 = vsel %vm3156, %v3134, %v2672
    %v3200 = vsel %vm3156, %v3135, %v2674
    %v3201 = vsel %vm3156, %v3136, %v2676
    %v3202 = vsel %vm3156, %v3137, %v2678
    %v3203 = vsel %vm3156, %v3138, %v2680
    %v3204 = vsel %vm3156, %v3139, %v2682
    %v3205 = vsel %vm3156, %v3140, %v2684
    %v3206 = vsel %vm3156, %v3141, %v2686
    %v3207 = vsel %vm3156, %v3142, %v2688
    %v3208 = vsel %vm3156, %v3143, %v2690
    %v3209 = vsel %vm3156, %v3144, %v2692
    %v3210 = vsel %vm3156, %v3145, %v2694
    %v3211 = vsel %vm3156, %v3146, %v2696
    %v3212 = vsel %vm3156, %v3147, %v2698
    %v3213 = vsel %vm3156, %v3148, %v2700
    %v3214 = vsel %vm3156, %v3149, %v2702
    %v3215 = vsel %vm3156, %v3150, %v2704
    %v3216 = vsel %vm3156, %v3151, %v2706
    %v3217 = vsel %vm3156, %v3152, %v2708
    %v3218 = vsel %vm3156, %v3153, %v2710
    %v3219 = vsel %vm3156, %v3154, %v2650
    %v3220 = vsel %vm3156, %v3155, %v2650
    %v3221 = vld [vmem:[%s3] sm:$0xff]
    %v3222 = vld [vmem:[%s3 + $0x8] sm:$0xff]
    %v3223 = vld [vmem:[%s3 + $0x10] sm:$0xff]
    %v3224 = vld [vmem:[%s3 + $0x18] sm:$0xff]
    %v3225 = vld [vmem:[%s3 + $0x20] sm:$0xff]
    %v3226 = vld [vmem:[%s3 + $0x28] sm:$0xff]
    %v3227 = vld [vmem:[%s3 + $0x30] sm:$0xff]
    %v3228 = vld [vmem:[%s3 + $0x38] sm:$0xff]
    %v3229 = vld [vmem:[%s3 + $0x40] sm:$0xff]
    %v3230 = vld [vmem:[%s3 + $0x48] sm:$0xff]
    %v3231 = vld [vmem:[%s3 + $0x50] sm:$0xff]
    %v3232 = vld [vmem:[%s3 + $0x58] sm:$0xff]
    %v3233 = vld [vmem:[%s3 + $0x60] sm:$0xff]
    %v3234 = vld [vmem:[%s3 + $0x68] sm:$0xff]
    %v3235 = vld [vmem:[%s3 + $0x70] sm:$0xff]
    %v3236 = vld [vmem:[%s3 + $0x78] sm:$0xff]
    %v3237 = vld [vmem:[%s3 + $0x80] sm:$0xff]
    %v3238 = vld [vmem:[%s3 + $0x88] sm:$0xff]
    %v3239 = vld [vmem:[%s4] sm:$0x1]
    %v3241 = vlaneseq
    %v3242 = vshrl.u32 %v3241, 7
    %v3243 = vsub.s32 0, %v3242
    %v3244 = vrot.slane %v3239, %v3243
    %v3246 = vsel %vm2772, %v1480, 0
    %v3248 = vsel %vm2772, %v1482, 0
    %v3250 = vsel %vm2772, %v1485, 0
    %v3252 = vsel %vm2772, %v1487, 0
    %v3254 = vsel %vm2772, %v1490, 0
    %v3256 = vsel %vm2772, %v1492, 0
    %v3258 = vsel %vm2772, %v1495, 0
    %v3260 = vsel %vm2772, %v1497, 0
    %v3262 = vsel %vm2772, %v1500, 0
    %v3264 = vsel %vm2772, %v1502, 0
    %v3266 = vsel %vm2772, %v1505, 0
    %v3268 = vsel %vm2772, %v1507, 0
    %v3270 = vsel %vm2772, %v1510, 0
    %v3272 = vsel %vm2772, %v1512, 0
    %v3274 = vsel %vm2772, %v1515, 0
    %v3276 = vsel %vm2772, %v1517, 0
    %v3278 = vsel %vm2772, %v1520, 0
    %v3280 = vsel %vm2772, %v1522, 0
    %v3282 = vsel %vm2772, %v1525, 0
    %v3284 = vsel %vm2772, %v1527, 0
    %v3286 = vsel %vm2772, %v1530, 0
    %v3288 = vsel %vm2772, %v1532, 0
    %v3290 = vsel %vm2772, %v1535, 0
    %v3292 = vsel %vm2772, %v1537, 0
    %v3294 = vsel %vm2772, %v1540, 0
    %v3296 = vsel %vm2772, %v1542, 0
    %v3298 = vsel %vm2772, %v1545, 0
    %v3300 = vsel %vm2772, %v1547, 0
    %v3302 = vsel %vm2772, %v2206, 0
    %v3304 = vsel %vm2772, %v2208, 0
    %v3306 = vsel %vm2772, %v1472, 0
    %v3308 = vsel %vm2772, %v1555, 0
    %v3310 = vsel %vm2772, %v1557, 0
    %v3312 = vsel %vm2772, %v1560, 0
    %v3314 = vsel %vm2772, %v1562, 0
    %v3316 = vsel %vm2772, %v1565, 0
    %v3318 = vsel %vm2772, %v1567, 0
    %v3320 = vsel %vm2772, %v1570, 0
    %v3322 = vsel %vm2772, %v1572, 0
    %v3324 = vsel %vm2772, %v1575, 0
    %v3326 = vsel %vm2772, %v1577, 0
    %v3328 = vsel %vm2772, %v1580, 0
    %v3330 = vsel %vm2772, %v1582, 0
    %v3332 = vsel %vm2772, %v1585, 0
    %v3334 = vsel %vm2772, %v1587, 0
    %v3336 = vsel %vm2772, %v1590, 0
    %v3338 = vsel %vm2772, %v1592, 0
    %v3340 = vsel %vm2772, %v1595, 0
    %v3342 = vsel %vm2772, %v1597, 0
    %v3344 = vsel %vm2772, %v1600, 0
    %v3346 = vsel %vm2772, %v1602, 0
    %v3348 = vsel %vm2772, %v1605, 0
    %v3350 = vsel %vm2772, %v1607, 0
    %v3352 = vsel %vm2772, %v1610, 0
    %v3354 = vsel %vm2772, %v1612, 0
    %v3356 = vsel %vm2772, %v1615, 0
    %v3358 = vsel %vm2772, %v1617, 0
    %v3360 = vsel %vm2772, %v1620, 0
    %v3362 = vsel %vm2772, %v1622, 0
    %v3364 = vsel %vm2772, %v2211, 0
    %v3366 = vsel %vm2772, %v2213, 0
    %3368 = vmatprep.subr.mxu0 0.0
    %3369 = vmatpush1.msra.mxu0 %v3221
    %3370 = vmatprep.subr.mxu0 0.0
    %3371 = vmatpush1.msra.mxu0 %v3222
    %3372 = vmatprep.subr.mxu0 0.0
    %3373 = vmatpush1.msra.mxu0 %v3223
    %3374 = vmatprep.subr.mxu0 0.0
    %3375 = vmatpush1.msra.mxu0 %v3224
    %3376 = vmatprep.subr.mxu0 0.0
    %3377 = vmatpush1.msra.mxu0 %v3225
    %3378 = vmatprep.subr.mxu0 0.0
    %3379 = vmatpush1.msra.mxu0 %v3226
    %3380 = vmatprep.subr.mxu0 0.0
    %3381 = vmatpush1.msra.mxu0 %v3227
    %3382 = vmatprep.subr.mxu0 0.0
    %3383 = vmatpush1.msra.mxu0 %v3228
    %3384 = vmatprep.subr.mxu0 0.0
    %3385 = vmatpush1.msra.mxu0 %v3229
    %3386 = vmatprep.subr.mxu0 0.0
    %3387 = vmatpush1.msra.mxu0 %v3230
    %3388 = vmatprep.subr.mxu0 0.0
    %3389 = vmatpush1.msra.mxu0 %v3231
    %3390 = vmatprep.subr.mxu0 0.0
    %3391 = vmatpush1.msra.mxu0 %v3232
    %3392 = vmatprep.subr.mxu0 0.0
    %3393 = vmatpush1.msra.mxu0 %v3233
    %3394 = vmatprep.subr.mxu0 0.0
    %3395 = vmatpush1.msra.mxu0 %v3234
    %3396 = vmatprep.subr.mxu0 0.0
    %3397 = vmatpush1.msra.mxu0 %v3235
    %3398 = vmatprep.subr.mxu0 0.0
    %3399 = vmatpush1.msra.mxu0 %v3236
    %3400 = vmatprep.subr.mxu0 0.0
    %3401 = vmatpush1.msra.mxu0 %v3237
    %3402 = vmatprep.subr.mxu0 0.0
    %3403 = vmatpush1.msra.mxu0 %v3238
    %3404 = vmatprep.subr.mxu0 0.0
    %3405 = vmatpush1.msra.mxu0 0.0
    %3406 = vmatprep.subr.mxu0 0.0
    %3407 = vmatpush1.msra.mxu0 0.0
    %3408 = vmatprep.subr.mxu0 0.0
    %3409 = vmatpush1.msra.mxu0 0.0
    %3410 = vmatprep.subr.mxu0 0.0
    %3411 = vmatpush1.msra.mxu0 0.0
    %3412 = vmatprep.subr.mxu0 0.0
    %3413 = vmatpush1.msra.mxu0 0.0
    %3414 = vmatprep.subr.mxu0 0.0
    %3415 = vmatpush1.msra.mxu0 0.0
    %3416 = vmatprep.subr.mxu0 0.0
    %3417 = vmatpush1.msra.mxu0 0.0
    %3418 = vmatprep.subr.mxu0 0.0
    %3419 = vmatpush1.msra.mxu0 0.0
    %3420 = vmatprep.subr.mxu0 0.0
    %3421 = vmatpush1.msra.mxu0 0.0
    %3422 = vmatprep.subr.mxu0 0.0
    %3423 = vmatpush1.msra.mxu0 0.0
    %3424 = vmatprep.subr.mxu0 0.0
    %3425 = vmatpush1.msra.mxu0 0.0
    %3426 = vmatprep.subr.mxu0 0.0
    %3427 = vmatpush1.msra.mxu0 0.0
    %3428 = vmatprep.subr.mxu0 0.0
    %3429 = vmatpush1.msra.mxu0 0.0
    %3430 = vmatprep.subr.mxu0 0.0
    %3431 = vmatpush1.msra.mxu0 0.0
    %3432 = vmatprep.mubr.f32.mxu0 %v3246
    %3433 = vmatmul.mubr.f32.gmra.mrb[0].mxu0 %v3157
    %v3434 = vpop.f32.mrb[0].mxu0
    %v3435 = vadd.f32 %v3244, %v3434
    %v3436 = vpop.f32.mrb[0].mxu0
    %3437 = vmatprep.mubr.f32.mxu0 %v3248
    %3438 = vmatmul.mubr.f32.gmra.mrb[0].mxu0 %v3158
    %v3439 = vpop.f32.mrb[0].mxu0
    %v3440 = vadd.f32 %v3244, %v3439
    %v3441 = vpop.f32.mrb[0].mxu0
    %3442 = vmatprep.mubr.f32.mxu0 %v3250
    %3443 = vmatmul.mubr.f32.gmra.mrb[0].mxu0 %v3159
    %v3444 = vpop.f32.mrb[0].mxu0
    %v3445 = vadd.f32 %v3244, %v3444
    %v3446 = vpop.f32.mrb[0].mxu0
    %3447 = vmatprep.mubr.f32.mxu0 %v3252
    %3448 = vmatmul.mubr.f32.gmra.mrb[0].mxu0 %v3160
    %v3449 = vpop.f32.mrb[0].mxu0
    %v3450 = vadd.f32 %v3244, %v3449
    %v3451 = vpop.f32.mrb[0].mxu0
    %3452 = vmatprep.mubr.f32.mxu0 %v3254
    %3453 = vmatmul.mubr.f32.gmra.mrb[0].mxu0 %v3161
    %v3454 = vpop.f32.mrb[0].mxu0
    %v3455 = vadd.f32 %v3244, %v3454
    %v3456 = vpop.f32.mrb[0].mxu0
    %3457 = vmatprep.mubr.f32.mxu0 %v3256
    %3458 = vmatmul.mubr.f32.gmra.mrb[0].mxu0 %v3162
    %v3459 = vpop.f32.mrb[0].mxu0
    %v3460 = vadd.f32 %v3244, %v3459
    %v3461 = vpop.f32.mrb[0].mxu0
    %3462 = vmatprep.mubr.f32.mxu0 %v3258
    %3463 = vmatmul.mubr.f32.gmra.mrb[0].mxu0 %v3163
    %v3464 = vpop.f32.mrb[0].mxu0
    %v3465 = vadd.f32 %v3244, %v3464
    %v3466 = vpop.f32.mrb[0].mxu0
    %3467 = vmatprep.mubr.f32.mxu0 %v3260
    %3468 = vmatmul.mubr.f32.gmra.mrb[0].mxu0 %v3164
    %v3469 = vpop.f32.mrb[0].mxu0
    %v3470 = vadd.f32 %v3244, %v3469
    %v3471 = vpop.f32.mrb[0].mxu0
    %3472 = vmatprep.mubr.f32.mxu0 %v3262
    %3473 = vmatmul.mubr.f32.gmra.mrb[0].mxu0 %v3165
    %v3474 = vpop.f32.mrb[0].mxu0
    %v3475 = vadd.f32 %v3244, %v3474
    %v3476 = vpop.f32.mrb[0].mxu0
    %3477 = vmatprep.mubr.f32.mxu0 %v3264
    %3478 = vmatmul.mubr.f32.gmra.mrb[0].mxu0 %v3166
    %v3479 = vpop.f32.mrb[0].mxu0
    %v3480 = vadd.f32 %v3244, %v3479
    %v3481 = vpop.f32.mrb[0].mxu0
    %3482 = vmatprep.mubr.f32.mxu0 %v3266
    %3483 = vmatmul.mubr.f32.gmra.mrb[0].mxu0 %v3167
    %v3484 = vpop.f32.mrb[0].mxu0
    %v3485 = vadd.f32 %v3244, %v3484
    %v3486 = vpop.f32.mrb[0].mxu0
    %3487 = vmatprep.mubr.f32.mxu0 %v3268
    %3488 = vmatmul.mubr.f32.gmra.mrb[0].mxu0 %v3168
    %v3489 = vpop.f32.mrb[0].mxu0
    %v3490 = vadd.f32 %v3244, %v3489
    %v3491 = vpop.f32.mrb[0].mxu0
    %3492 = vmatprep.mubr.f32.mxu0 %v3270
    %3493 = vmatmul.mubr.f32.gmra.mrb[0].mxu0 %v3169
    %v3494 = vpop.f32.mrb[0].mxu0
    %v3495 = vadd.f32 %v3244, %v3494
    %v3496 = vpop.f32.mrb[0].mxu0
    %3497 = vmatprep.mubr.f32.mxu0 %v3272
    %3498 = vmatmul.mubr.f32.gmra.mrb[0].mxu0 %v3170
    %v3499 = vpop.f32.mrb[0].mxu0
    %v3500 = vadd.f32 %v3244, %v3499
    %v3501 = vpop.f32.mrb[0].mxu0
    %3502 = vmatprep.mubr.f32.mxu0 %v3274
    %3503 = vmatmul.mubr.f32.gmra.mrb[0].mxu0 %v3171
    %v3504 = vpop.f32.mrb[0].mxu0
    %v3505 = vadd.f32 %v3244, %v3504
    %v3506 = vpop.f32.mrb[0].mxu0
    %3507 = vmatprep.mubr.f32.mxu0 %v3276
    %3508 = vmatmul.mubr.f32.gmra.mrb[0].mxu0 %v3172
    %v3509 = vpop.f32.mrb[0].mxu0
    %v3510 = vadd.f32 %v3244, %v3509
    %v3511 = vpop.f32.mrb[0].mxu0
    %3512 = vmatprep.mubr.f32.mxu0 %v3278
    %3513 = vmatmul.mubr.f32.gmra.mrb[0].mxu0 %v3173
    %v3514 = vpop.f32.mrb[0].mxu0
    %v3515 = vadd.f32 %v3244, %v3514
    %v3516 = vpop.f32.mrb[0].mxu0
    %3517 = vmatprep.mubr.f32.mxu0 %v3280
    %3518 = vmatmul.mubr.f32.gmra.mrb[0].mxu0 %v3174
    %v3519 = vpop.f32.mrb[0].mxu0
    %v3520 = vadd.f32 %v3244, %v3519
    %v3521 = vpop.f32.mrb[0].mxu0
    %3522 = vmatprep.mubr.f32.mxu0 %v3282
    %3523 = vmatmul.mubr.f32.gmra.mrb[0].mxu0 %v3175
    %v3524 = vpop.f32.mrb[0].mxu0
    %v3525 = vadd.f32 %v3244, %v3524
    %v3526 = vpop.f32.mrb[0].mxu0
    %3527 = vmatprep.mubr.f32.mxu0 %v3284
    %3528 = vmatmul.mubr.f32.gmra.mrb[0].mxu0 %v3176
    %v3529 = vpop.f32.mrb[0].mxu0
    %v3530 = vadd.f32 %v3244, %v3529
    %v3531 = vpop.f32.mrb[0].mxu0
    %3532 = vmatprep.mubr.f32.mxu0 %v3286
    %3533 = vmatmul.mubr.f32.gmra.mrb[0].mxu0 %v3177
    %v3534 = vpop.f32.mrb[0].mxu0
    %v3535 = vadd.f32 %v3244, %v3534
    %v3536 = vpop.f32.mrb[0].mxu0
    %3537 = vmatprep.mubr.f32.mxu0 %v3288
    %3538 = vmatmul.mubr.f32.gmra.mrb[0].mxu0 %v3178
    %v3539 = vpop.f32.mrb[0].mxu0
    %v3540 = vadd.f32 %v3244, %v3539
    %v3541 = vpop.f32.mrb[0].mxu0
    %3542 = vmatprep.mubr.f32.mxu0 %v3290
    %3543 = vmatmul.mubr.f32.gmra.mrb[0].mxu0 %v3179
    %v3544 = vpop.f32.mrb[0].mxu0
    %v3545 = vadd.f32 %v3244, %v3544
    %v3546 = vpop.f32.mrb[0].mxu0
    %3547 = vmatprep.mubr.f32.mxu0 %v3292
    %3548 = vmatmul.mubr.f32.gmra.mrb[0].mxu0 %v3180
    %v3549 = vpop.f32.mrb[0].mxu0
    %v3550 = vadd.f32 %v3244, %v3549
    %v3551 = vpop.f32.mrb[0].mxu0
    %3552 = vmatprep.mubr.f32.mxu0 %v3294
    %3553 = vmatmul.mubr.f32.gmra.mrb[0].mxu0 %v3181
    %v3554 = vpop.f32.mrb[0].mxu0
    %v3555 = vadd.f32 %v3244, %v3554
    %v3556 = vpop.f32.mrb[0].mxu0
    %3557 = vmatprep.mubr.f32.mxu0 %v3296
    %3558 = vmatmul.mubr.f32.gmra.mrb[0].mxu0 %v3182
    %v3559 = vpop.f32.mrb[0].mxu0
    %v3560 = vadd.f32 %v3244, %v3559
    %v3561 = vpop.f32.mrb[0].mxu0
    %3562 = vmatprep.mubr.f32.mxu0 %v3298
    %3563 = vmatmul.mubr.f32.gmra.mrb[0].mxu0 %v3183
    %v3564 = vpop.f32.mrb[0].mxu0
    %v3565 = vadd.f32 %v3244, %v3564
    %v3566 = vpop.f32.mrb[0].mxu0
    %3567 = vmatprep.mubr.f32.mxu0 %v3300
    %3568 = vmatmul.mubr.f32.gmra.mrb[0].mxu0 %v3184
    %v3569 = vpop.f32.mrb[0].mxu0
    %v3570 = vadd.f32 %v3244, %v3569
    %v3571 = vpop.f32.mrb[0].mxu0
    %3572 = vmatprep.mubr.f32.mxu0 %v3302
    %3573 = vmatmul.mubr.f32.gmra.mrb[0].mxu0 %v3185
    %v3574 = vpop.f32.mrb[0].mxu0
    %v3575 = vadd.f32 %v3244, %v3574
    %v3576 = vpop.f32.mrb[0].mxu0
    %3577 = vmatprep.mubr.f32.mxu0 %v3304
    %3578 = vmatmul.mubr.f32.gmra.mrb[0].mxu0 %v3186
    %v3579 = vpop.f32.mrb[0].mxu0
    %v3580 = vadd.f32 %v3244, %v3579
    %v3581 = vpop.f32.mrb[0].mxu0
    %3582 = vmatprep.mubr.f32.mxu0 %v3306
    %3583 = vmatmul.mubr.f32.gmra.mrb[0].mxu0 %v3187
    %v3584 = vpop.f32.mrb[0].mxu0
    %v3585 = vadd.f32 %v3244, %v3584
    %v3586 = vpop.f32.mrb[0].mxu0
    %3587 = vmatprep.mubr.f32.mxu0 %v3306
    %3588 = vmatmul.mubr.f32.gmra.mrb[0].mxu0 %v3188
    %v3589 = vpop.f32.mrb[0].mxu0
    %v3590 = vadd.f32 %v3244, %v3589
    %v3591 = vpop.f32.mrb[0].mxu0
    %3592 = vmatprep.mubr.f32.mxu0 %v3308
    %3593 = vmatmul.mubr.f32.gmra.mrb[0].mxu0 %v3189
    %v3594 = vpop.f32.mrb[0].mxu0
    %v3595 = vadd.f32 %v3244, %v3594
    %v3596 = vpop.f32.mrb[0].mxu0
    %3597 = vmatprep.mubr.f32.mxu0 %v3310
    %3598 = vmatmul.mubr.f32.gmra.mrb[0].mxu0 %v3190
    %v3599 = vpop.f32.mrb[0].mxu0
    %v3600 = vadd.f32 %v3244, %v3599
    %v3601 = vpop.f32.mrb[0].mxu0
    %3602 = vmatprep.mubr.f32.mxu0 %v3312
    %3603 = vmatmul.mubr.f32.gmra.mrb[0].mxu0 %v3191
    %v3604 = vpop.f32.mrb[0].mxu0
    %v3605 = vadd.f32 %v3244, %v3604
    %v3606 = vpop.f32.mrb[0].mxu0
    %3607 = vmatprep.mubr.f32.mxu0 %v3314
    %3608 = vmatmul.mubr.f32.gmra.mrb[0].mxu0 %v3192
    %v3609 = vpop.f32.mrb[0].mxu0
    %v3610 = vadd.f32 %v3244, %v3609
    %v3611 = vpop.f32.mrb[0].mxu0
    %3612 = vmatprep.mubr.f32.mxu0 %v3316
    %3613 = vmatmul.mubr.f32.gmra.mrb[0].mxu0 %v3193
    %v3614 = vpop.f32.mrb[0].mxu0
    %v3615 = vadd.f32 %v3244, %v3614
    %v3616 = vpop.f32.mrb[0].mxu0
    %3617 = vmatprep.mubr.f32.mxu0 %v3318
    %3618 = vmatmul.mubr.f32.gmra.mrb[0].mxu0 %v3194
    %v3619 = vpop.f32.mrb[0].mxu0
    %v3620 = vadd.f32 %v3244, %v3619
    %v3621 = vpop.f32.mrb[0].mxu0
    %3622 = vmatprep.mubr.f32.mxu0 %v3320
    %3623 = vmatmul.mubr.f32.gmra.mrb[0].mxu0 %v3195
    %v3624 = vpop.f32.mrb[0].mxu0
    %v3625 = vadd.f32 %v3244, %v3624
    %v3626 = vpop.f32.mrb[0].mxu0
    %3627 = vmatprep.mubr.f32.mxu0 %v3322
    %3628 = vmatmul.mubr.f32.gmra.mrb[0].mxu0 %v3196
    %v3629 = vpop.f32.mrb[0].mxu0
    %v3630 = vadd.f32 %v3244, %v3629
    %v3631 = vpop.f32.mrb[0].mxu0
    %3632 = vmatprep.mubr.f32.mxu0 %v3324
    %3633 = vmatmul.mubr.f32.gmra.mrb[0].mxu0 %v3197
    %v3634 = vpop.f32.mrb[0].mxu0
    %v3635 = vadd.f32 %v3244, %v3634
    %v3636 = vpop.f32.mrb[0].mxu0
    %3637 = vmatprep.mubr.f32.mxu0 %v3326
    %3638 = vmatmul.mubr.f32.gmra.mrb[0].mxu0 %v3198
    %v3639 = vpop.f32.mrb[0].mxu0
    %v3640 = vadd.f32 %v3244, %v3639
    %v3641 = vpop.f32.mrb[0].mxu0
    %3642 = vmatprep.mubr.f32.mxu0 %v3328
    %3643 = vmatmul.mubr.f32.gmra.mrb[0].mxu0 %v3199
    %v3644 = vpop.f32.mrb[0].mxu0
    %v3645 = vadd.f32 %v3244, %v3644
    %v3646 = vpop.f32.mrb[0].mxu0
    %3647 = vmatprep.mubr.f32.mxu0 %v3330
    %3648 = vmatmul.mubr.f32.gmra.mrb[0].mxu0 %v3200
    %v3649 = vpop.f32.mrb[0].mxu0
    %v3650 = vadd.f32 %v3244, %v3649
    %v3651 = vpop.f32.mrb[0].mxu0
    %3652 = vmatprep.mubr.f32.mxu0 %v3332
    %3653 = vmatmul.mubr.f32.gmra.mrb[0].mxu0 %v3201
    %v3654 = vpop.f32.mrb[0].mxu0
    %v3655 = vadd.f32 %v3244, %v3654
    %v3656 = vpop.f32.mrb[0].mxu0
    %3657 = vmatprep.mubr.f32.mxu0 %v3334
    %3658 = vmatmul.mubr.f32.gmra.mrb[0].mxu0 %v3202
    %v3659 = vpop.f32.mrb[0].mxu0
    %v3660 = vadd.f32 %v3244, %v3659
    %v3661 = vpop.f32.mrb[0].mxu0
    %3662 = vmatprep.mubr.f32.mxu0 %v3336
    %3663 = vmatmul.mubr.f32.gmra.mrb[0].mxu0 %v3203
    %v3664 = vpop.f32.mrb[0].mxu0
    %v3665 = vadd.f32 %v3244, %v3664
    %v3666 = vpop.f32.mrb[0].mxu0
    %3667 = vmatprep.mubr.f32.mxu0 %v3338
    %3668 = vmatmul.mubr.f32.gmra.mrb[0].mxu0 %v3204
    %v3669 = vpop.f32.mrb[0].mxu0
    %v3670 = vadd.f32 %v3244, %v3669
    %v3671 = vpop.f32.mrb[0].mxu0
    %3672 = vmatprep.mubr.f32.mxu0 %v3340
    %3673 = vmatmul.mubr.f32.gmra.mrb[0].mxu0 %v3205
    %v3674 = vpop.f32.mrb[0].mxu0
    %v3675 = vadd.f32 %v3244, %v3674
    %v3676 = vpop.f32.mrb[0].mxu0
    %3677 = vmatprep.mubr.f32.mxu0 %v3342
    %3678 = vmatmul.mubr.f32.gmra.mrb[0].mxu0 %v3206
    %v3679 = vpop.f32.mrb[0].mxu0
    %v3680 = vadd.f32 %v3244, %v3679
    %v3681 = vpop.f32.mrb[0].mxu0
    %3682 = vmatprep.mubr.f32.mxu0 %v3344
    %3683 = vmatmul.mubr.f32.gmra.mrb[0].mxu0 %v3207
    %v3684 = vpop.f32.mrb[0].mxu0
    %v3685 = vadd.f32 %v3244, %v3684
    %v3686 = vpop.f32.mrb[0].mxu0
    %3687 = vmatprep.mubr.f32.mxu0 %v3346
    %3688 = vmatmul.mubr.f32.gmra.mrb[0].mxu0 %v3208
    %v3689 = vpop.f32.mrb[0].mxu0
    %v3690 = vadd.f32 %v3244, %v3689
    %v3691 = vpop.f32.mrb[0].mxu0
    %3692 = vmatprep.mubr.f32.mxu0 %v3348
    %3693 = vmatmul.mubr.f32.gmra.mrb[0].mxu0 %v3209
    %v3694 = vpop.f32.mrb[0].mxu0
    %v3695 = vadd.f32 %v3244, %v3694
    %v3696 = vpop.f32.mrb[0].mxu0
    %3697 = vmatprep.mubr.f32.mxu0 %v3350
    %3698 = vmatmul.mubr.f32.gmra.mrb[0].mxu0 %v3210
    %v3699 = vpop.f32.mrb[0].mxu0
    %v3700 = vadd.f32 %v3244, %v3699
    %v3701 = vpop.f32.mrb[0].mxu0
    %3702 = vmatprep.mubr.f32.mxu0 %v3352
    %3703 = vmatmul.mubr.f32.gmra.mrb[0].mxu0 %v3211
    %v3704 = vpop.f32.mrb[0].mxu0
    %v3705 = vadd.f32 %v3244, %v3704
    %v3706 = vpop.f32.mrb[0].mxu0
    %3707 = vmatprep.mubr.f32.mxu0 %v3354
    %3708 = vmatmul.mubr.f32.gmra.mrb[0].mxu0 %v3212
    %v3709 = vpop.f32.mrb[0].mxu0
    %v3710 = vadd.f32 %v3244, %v3709
    %v3711 = vpop.f32.mrb[0].mxu0
    %3712 = vmatprep.mubr.f32.mxu0 %v3356
    %3713 = vmatmul.mubr.f32.gmra.mrb[0].mxu0 %v3213
    %v3714 = vpop.f32.mrb[0].mxu0
    %v3715 = vadd.f32 %v3244, %v3714
    %v3716 = vpop.f32.mrb[0].mxu0
    %3717 = vmatprep.mubr.f32.mxu0 %v3358
    %3718 = vmatmul.mubr.f32.gmra.mrb[0].mxu0 %v3214
    %v3719 = vpop.f32.mrb[0].mxu0
    %v3720 = vadd.f32 %v3244, %v3719
    %v3721 = vpop.f32.mrb[0].mxu0
    %3722 = vmatprep.mubr.f32.mxu0 %v3360
    %3723 = vmatmul.mubr.f32.gmra.mrb[0].mxu0 %v3215
    %v3724 = vpop.f32.mrb[0].mxu0
    %v3725 = vadd.f32 %v3244, %v3724
    %v3726 = vpop.f32.mrb[0].mxu0
    %3727 = vmatprep.mubr.f32.mxu0 %v3362
    %3728 = vmatmul.mubr.f32.gmra.mrb[0].mxu0 %v3216
    %v3729 = vpop.f32.mrb[0].mxu0
    %v3730 = vadd.f32 %v3244, %v3729
    %v3731 = vpop.f32.mrb[0].mxu0
    %3732 = vmatprep.mubr.f32.mxu0 %v3364
    %3733 = vmatmul.mubr.f32.gmra.mrb[0].mxu0 %v3217
    %v3734 = vpop.f32.mrb[0].mxu0
    %v3735 = vadd.f32 %v3244, %v3734
    %v3736 = vpop.f32.mrb[0].mxu0
    %3737 = vmatprep.mubr.f32.mxu0 %v3366
    %3738 = vmatmul.mubr.f32.gmra.mrb[0].mxu0 %v3218
    %v3739 = vpop.f32.mrb[0].mxu0
    %v3740 = vadd.f32 %v3244, %v3739
    %v3741 = vpop.f32.mrb[0].mxu0
    %3742 = vmatprep.mubr.f32.mxu0 %v3306
    %3743 = vmatmul.mubr.f32.gmra.mrb[0].mxu0 %v3219
    %v3744 = vpop.f32.mrb[0].mxu0
    %v3745 = vadd.f32 %v3244, %v3744
    %v3746 = vpop.f32.mrb[0].mxu0
    %3747 = vmatprep.mubr.f32.mxu0 %v3306
    %3748 = vmatmul.mubr.f32.gmra.mrb[0].mxu0 %v3220
    %v3749 = vpop.f32.mrb[0].mxu0
    %v3750 = vadd.f32 %v3244, %v3749
    %v3751 = vpop.f32.mrb[0].mxu0
    %3752 = vdwg.mxu0
    %v3753 = vmax.f32 %v3435, 0.0
    %v3754 = vmax.f32 %v3440, 0.0
    %v3755 = vmax.f32 %v3445, 0.0
    %v3756 = vmax.f32 %v3450, 0.0
    %v3757 = vmax.f32 %v3455, 0.0
    %v3758 = vmax.f32 %v3460, 0.0
    %v3759 = vmax.f32 %v3465, 0.0
    %v3760 = vmax.f32 %v3470, 0.0
    %v3761 = vmax.f32 %v3475, 0.0
    %v3762 = vmax.f32 %v3480, 0.0
    %v3763 = vmax.f32 %v3485, 0.0
    %v3764 = vmax.f32 %v3490, 0.0
    %v3765 = vmax.f32 %v3495, 0.0
    %v3766 = vmax.f32 %v3500, 0.0
    %v3767 = vmax.f32 %v3505, 0.0
    %v3768 = vmax.f32 %v3510, 0.0
    %v3769 = vmax.f32 %v3515, 0.0
    %v3770 = vmax.f32 %v3520, 0.0
    %v3771 = vmax.f32 %v3525, 0.0
    %v3772 = vmax.f32 %v3530, 0.0
    %v3773 = vmax.f32 %v3535, 0.0
    %v3774 = vmax.f32 %v3540, 0.0
    %v3775 = vmax.f32 %v3545, 0.0
    %v3776 = vmax.f32 %v3550, 0.0
    %v3777 = vmax.f32 %v3555, 0.0
    %v3778 = vmax.f32 %v3560, 0.0
    %v3779 = vmax.f32 %v3565, 0.0
    %v3780 = vmax.f32 %v3570, 0.0
    %v3781 = vmax.f32 %v3575, 0.0
    %v3782 = vmax.f32 %v3580, 0.0
    %v3783 = vmax.f32 %v3585, 0.0
    %v3784 = vmax.f32 %v3590, 0.0
    %v3785 = vmax.f32 %v3595, 0.0
    %v3786 = vmax.f32 %v3600, 0.0
    %v3787 = vmax.f32 %v3605, 0.0
    %v3788 = vmax.f32 %v3610, 0.0
    %v3789 = vmax.f32 %v3615, 0.0
    %v3790 = vmax.f32 %v3620, 0.0
    %v3791 = vmax.f32 %v3625, 0.0
    %v3792 = vmax.f32 %v3630, 0.0
    %v3793 = vmax.f32 %v3635, 0.0
    %v3794 = vmax.f32 %v3640, 0.0
    %v3795 = vmax.f32 %v3645, 0.0
    %v3796 = vmax.f32 %v3650, 0.0
    %v3797 = vmax.f32 %v3655, 0.0
    %v3798 = vmax.f32 %v3660, 0.0
    %v3799 = vmax.f32 %v3665, 0.0
    %v3800 = vmax.f32 %v3670, 0.0
    %v3801 = vmax.f32 %v3675, 0.0
    %v3802 = vmax.f32 %v3680, 0.0
    %v3803 = vmax.f32 %v3685, 0.0
    %v3804 = vmax.f32 %v3690, 0.0
    %v3805 = vmax.f32 %v3695, 0.0
    %v3806 = vmax.f32 %v3700, 0.0
    %v3807 = vmax.f32 %v3705, 0.0
    %v3808 = vmax.f32 %v3710, 0.0
    %v3809 = vmax.f32 %v3715, 0.0
    %v3810 = vmax.f32 %v3720, 0.0
    %v3811 = vmax.f32 %v3725, 0.0
    %v3812 = vmax.f32 %v3730, 0.0
    %v3813 = vmax.f32 %v3735, 0.0
    %v3814 = vmax.f32 %v3740, 0.0
    %v3815 = vmax.f32 %v3745, 0.0
    %v3816 = vmax.f32 %v3750, 0.0
    %v3881 = vrot.slane %v3753, 1
    %v3882 = vrot.slane %v3754, 1
    %v3883 = vsel %vm1134, %v3881, %v3882
    %v3884 = vrot.slane %v3755, 1
    %v3885 = vrot.slane %v3756, 1
    %v3886 = vsel %vm1134, %v3884, %v3885
    %v3887 = vrot.slane %v3757, 1
    %v3888 = vrot.slane %v3758, 1
    %v3889 = vsel %vm1134, %v3887, %v3888
    %v3890 = vrot.slane %v3759, 1
    %v3891 = vrot.slane %v3760, 1
    %v3892 = vsel %vm1134, %v3890, %v3891
    %v3893 = vrot.slane %v3761, 1
    %v3894 = vrot.slane %v3762, 1
    %v3895 = vsel %vm1134, %v3893, %v3894
    %v3896 = vrot.slane %v3763, 1
    %v3897 = vrot.slane %v3764, 1
    %v3898 = vsel %vm1134, %v3896, %v3897
    %v3899 = vrot.slane %v3765, 1
    %v3900 = vrot.slane %v3766, 1
    %v3901 = vsel %vm1134, %v3899, %v3900
    %v3902 = vrot.slane %v3767, 1
    %v3903 = vrot.slane %v3768, 1
    %v3904 = vsel %vm1134, %v3902, %v3903
    %v3905 = vrot.slane %v3769, 1
    %v3906 = vrot.slane %v3770, 1
    %v3907 = vsel %vm1134, %v3905, %v3906
    %v3908 = vrot.slane %v3771, 1
    %v3909 = vrot.slane %v3772, 1
    %v3910 = vsel %vm1134, %v3908, %v3909
    %v3911 = vrot.slane %v3773, 1
    %v3912 = vrot.slane %v3774, 1
    %v3913 = vsel %vm1134, %v3911, %v3912
    %v3914 = vrot.slane %v3775, 1
    %v3915 = vrot.slane %v3776, 1
    %v3916 = vsel %vm1134, %v3914, %v3915
    %v3917 = vrot.slane %v3777, 1
    %v3918 = vrot.slane %v3778, 1
    %v3919 = vsel %vm1134, %v3917, %v3918
    %v3920 = vrot.slane %v3779, 1
    %v3921 = vrot.slane %v3780, 1
    %v3922 = vsel %vm1134, %v3920, %v3921
    %v3923 = vrot.slane %v3781, 1
    %v3924 = vrot.slane %v3782, 1
    %v3925 = vsel %vm1134, %v3923, %v3924
    %v3926 = vrot.slane %v3783, 1
    %v3927 = vrot.slane %v3784, 1
    %v3928 = vsel %vm1134, %v3926, %v3927
    %v3929 = vrot.slane %v3785, 1
    %v3930 = vrot.slane %v3786, 1
    %v3931 = vsel %vm1134, %v3929, %v3930
    %v3932 = vrot.slane %v3787, 1
    %v3933 = vrot.slane %v3788, 1
    %v3934 = vsel %vm1134, %v3932, %v3933
    %v3935 = vrot.slane %v3789, 1
    %v3936 = vrot.slane %v3790, 1
    %v3937 = vsel %vm1134, %v3935, %v3936
    %v3938 = vrot.slane %v3791, 1
    %v3939 = vrot.slane %v3792, 1
    %v3940 = vsel %vm1134, %v3938, %v3939
    %v3941 = vrot.slane %v3793, 1
    %v3942 = vrot.slane %v3794, 1
    %v3943 = vsel %vm1134, %v3941, %v3942
    %v3944 = vrot.slane %v3795, 1
    %v3945 = vrot.slane %v3796, 1
    %v3946 = vsel %vm1134, %v3944, %v3945
    %v3947 = vrot.slane %v3797, 1
    %v3948 = vrot.slane %v3798, 1
    %v3949 = vsel %vm1134, %v3947, %v3948
    %v3950 = vrot.slane %v3799, 1
    %v3951 = vrot.slane %v3800, 1
    %v3952 = vsel %vm1134, %v3950, %v3951
    %v3953 = vrot.slane %v3801, 1
    %v3954 = vrot.slane %v3802, 1
    %v3955 = vsel %vm1134, %v3953, %v3954
    %v3956 = vrot.slane %v3803, 1
    %v3957 = vrot.slane %v3804, 1
    %v3958 = vsel %vm1134, %v3956, %v3957
    %v3959 = vrot.slane %v3805, 1
    %v3960 = vrot.slane %v3806, 1
    %v3961 = vsel %vm1134, %v3959, %v3960
    %v3962 = vrot.slane %v3807, 1
    %v3963 = vrot.slane %v3808, 1
    %v3964 = vsel %vm1134, %v3962, %v3963
    %v3965 = vrot.slane %v3809, 1
    %v3966 = vrot.slane %v3810, 1
    %v3967 = vsel %vm1134, %v3965, %v3966
    %v3968 = vrot.slane %v3811, 1
    %v3969 = vrot.slane %v3812, 1
    %v3970 = vsel %vm1134, %v3968, %v3969
    %v3971 = vrot.slane %v3813, 1
    %v3972 = vrot.slane %v3814, 1
    %v3973 = vsel %vm1134, %v3971, %v3972
    %v3974 = vrot.slane %v3815, 1
    %v3975 = vrot.slane %v3816, 1
    %v3976 = vsel %vm1134, %v3974, %v3975
    %v4041 = vsel %vm1134, %v3882, %v3754
    %v4042 = vsel %vm1134, %v3885, %v3756
    %v4043 = vsel %vm1134, %v3888, %v3758
    %v4044 = vsel %vm1134, %v3891, %v3760
    %v4045 = vsel %vm1134, %v3894, %v3762
    %v4046 = vsel %vm1134, %v3897, %v3764
    %v4047 = vsel %vm1134, %v3900, %v3766
    %v4048 = vsel %vm1134, %v3903, %v3768
    %v4049 = vsel %vm1134, %v3906, %v3770
    %v4050 = vsel %vm1134, %v3909, %v3772
    %v4051 = vsel %vm1134, %v3912, %v3774
    %v4052 = vsel %vm1134, %v3915, %v3776
    %v4053 = vsel %vm1134, %v3918, %v3778
    %v4054 = vsel %vm1134, %v3921, %v3780
    %v4055 = vsel %vm1134, %v3924, %v3782
    %v4056 = vsel %vm1134, %v3927, %v3784
    %v4057 = vsel %vm1134, %v3930, %v3786
    %v4058 = vsel %vm1134, %v3933, %v3788
    %v4059 = vsel %vm1134, %v3936, %v3790
    %v4060 = vsel %vm1134, %v3939, %v3792
    %v4061 = vsel %vm1134, %v3942, %v3794
    %v4062 = vsel %vm1134, %v3945, %v3796
    %v4063 = vsel %vm1134, %v3948, %v3798
    %v4064 = vsel %vm1134, %v3951, %v3800
    %v4065 = vsel %vm1134, %v3954, %v3802
    %v4066 = vsel %vm1134, %v3957, %v3804
    %v4067 = vsel %vm1134, %v3960, %v3806
    %v4068 = vsel %vm1134, %v3963, %v3808
    %v4069 = vsel %vm1134, %v3966, %v3810
    %v4070 = vsel %vm1134, %v3969, %v3812
    %v4071 = vsel %vm1134, %v3972, %v3814
    %v4072 = vsel %vm1134, %v3975, %v3816
    %v4073 = vmax.f32 %v3753, %v3883
    %v4074 = vmax.f32 %v3754, %v4041
    %v4075 = vmax.f32 %v3755, %v3886
    %v4076 = vmax.f32 %v3756, %v4042
    %v4077 = vmax.f32 %v3757, %v3889
    %v4078 = vmax.f32 %v3758, %v4043
    %v4079 = vmax.f32 %v3759, %v3892
    %v4080 = vmax.f32 %v3760, %v4044
    %v4081 = vmax.f32 %v3761, %v3895
    %v4082 = vmax.f32 %v3762, %v4045
    %v4083 = vmax.f32 %v3763, %v3898
    %v4084 = vmax.f32 %v3764, %v4046
    %v4085 = vmax.f32 %v3765, %v3901
    %v4086 = vmax.f32 %v3766, %v4047
    %v4087 = vmax.f32 %v3767, %v3904
    %v4088 = vmax.f32 %v3768, %v4048
    %v4089 = vmax.f32 %v3769, %v3907
    %v4090 = vmax.f32 %v3770, %v4049
    %v4091 = vmax.f32 %v3771, %v3910
    %v4092 = vmax.f32 %v3772, %v4050
    %v4093 = vmax.f32 %v3773, %v3913
    %v4094 = vmax.f32 %v3774, %v4051
    %v4095 = vmax.f32 %v3775, %v3916
    %v4096 = vmax.f32 %v3776, %v4052
    %v4097 = vmax.f32 %v3777, %v3919
    %v4098 = vmax.f32 %v3778, %v4053
    %v4099 = vmax.f32 %v3779, %v3922
    %v4100 = vmax.f32 %v3780, %v4054
    %v4101 = vmax.f32 %v3781, %v3925
    %v4102 = vmax.f32 %v3782, %v4055
    %v4103 = vmax.f32 %v3783, %v3928
    %v4104 = vmax.f32 %v3784, %v4056
    %v4105 = vmax.f32 %v3785, %v3931
    %v4106 = vmax.f32 %v3786, %v4057
    %v4107 = vmax.f32 %v3787, %v3934
    %v4108 = vmax.f32 %v3788, %v4058
    %v4109 = vmax.f32 %v3789, %v3937
    %v4110 = vmax.f32 %v3790, %v4059
    %v4111 = vmax.f32 %v3791, %v3940
    %v4112 = vmax.f32 %v3792, %v4060
    %v4113 = vmax.f32 %v3793, %v3943
    %v4114 = vmax.f32 %v3794, %v4061
    %v4115 = vmax.f32 %v3795, %v3946
    %v4116 = vmax.f32 %v3796, %v4062
    %v4117 = vmax.f32 %v3797, %v3949
    %v4118 = vmax.f32 %v3798, %v4063
    %v4119 = vmax.f32 %v3799, %v3952
    %v4120 = vmax.f32 %v3800, %v4064
    %v4121 = vmax.f32 %v3801, %v3955
    %v4122 = vmax.f32 %v3802, %v4065
    %v4123 = vmax.f32 %v3803, %v3958
    %v4124 = vmax.f32 %v3804, %v4066
    %v4125 = vmax.f32 %v3805, %v3961
    %v4126 = vmax.f32 %v3806, %v4067
    %v4127 = vmax.f32 %v3807, %v3964
    %v4128 = vmax.f32 %v3808, %v4068
    %v4129 = vmax.f32 %v3809, %v3967
    %v4130 = vmax.f32 %v3810, %v4069
    %v4131 = vmax.f32 %v3811, %v3970
    %v4132 = vmax.f32 %v3812, %v4070
    %v4133 = vmax.f32 %v3813, %v3973
    %v4134 = vmax.f32 %v3814, %v4071
    %v4135 = vmax.f32 %v3815, %v3976
    %v4136 = vmax.f32 %v3816, %v4072
    %v4137 = vmax.f32 %v4073, %v4075
    %v4138 = vmax.f32 %v4074, %v4076
    %v4139 = vmax.f32 %v4075, %v4077
    %v4140 = vmax.f32 %v4076, %v4078
    %v4141 = vmax.f32 %v4077, %v4079
    %v4142 = vmax.f32 %v4078, %v4080
    %v4143 = vmax.f32 %v4079, %v4081
    %v4144 = vmax.f32 %v4080, %v4082
    %v4145 = vmax.f32 %v4081, %v4083
    %v4146 = vmax.f32 %v4082, %v4084
    %v4147 = vmax.f32 %v4083, %v4085
    %v4148 = vmax.f32 %v4084, %v4086
    %v4149 = vmax.f32 %v4085, %v4087
    %v4150 = vmax.f32 %v4086, %v4088
    %v4151 = vmax.f32 %v4087, %v4089
    %v4152 = vmax.f32 %v4088, %v4090
    %v4153 = vmax.f32 %v4089, %v4091
    %v4154 = vmax.f32 %v4090, %v4092
    %v4155 = vmax.f32 %v4091, %v4093
    %v4156 = vmax.f32 %v4092, %v4094
    %v4157 = vmax.f32 %v4093, %v4095
    %v4158 = vmax.f32 %v4094, %v4096
    %v4159 = vmax.f32 %v4095, %v4097
    %v4160 = vmax.f32 %v4096, %v4098
    %v4161 = vmax.f32 %v4097, %v4099
    %v4162 = vmax.f32 %v4098, %v4100
    %v4163 = vmax.f32 %v4099, %v4101
    %v4164 = vmax.f32 %v4100, %v4102
    %v4165 = vmax.f32 %v4101, %v4103
    %v4166 = vmax.f32 %v4102, %v4104
    %v4167 = vmax.f32 %v4105, %v4107
    %v4168 = vmax.f32 %v4106, %v4108
    %v4169 = vmax.f32 %v4107, %v4109
    %v4170 = vmax.f32 %v4108, %v4110
    %v4171 = vmax.f32 %v4109, %v4111
    %v4172 = vmax.f32 %v4110, %v4112
    %v4173 = vmax.f32 %v4111, %v4113
    %v4174 = vmax.f32 %v4112, %v4114
    %v4175 = vmax.f32 %v4113, %v4115
    %v4176 = vmax.f32 %v4114, %v4116
    %v4177 = vmax.f32 %v4115, %v4117
    %v4178 = vmax.f32 %v4116, %v4118
    %v4179 = vmax.f32 %v4117, %v4119
    %v4180 = vmax.f32 %v4118, %v4120
    %v4181 = vmax.f32 %v4119, %v4121
    %v4182 = vmax.f32 %v4120, %v4122
    %v4183 = vmax.f32 %v4121, %v4123
    %v4184 = vmax.f32 %v4122, %v4124
    %v4185 = vmax.f32 %v4123, %v4125
    %v4186 = vmax.f32 %v4124, %v4126
    %v4187 = vmax.f32 %v4125, %v4127
    %v4188 = vmax.f32 %v4126, %v4128
    %v4189 = vmax.f32 %v4127, %v4129
    %v4190 = vmax.f32 %v4128, %v4130
    %v4191 = vmax.f32 %v4129, %v4131
    %v4192 = vmax.f32 %v4130, %v4132
    %v4193 = vmax.f32 %v4131, %v4133
    %v4194 = vmax.f32 %v4132, %v4134
    %v4195 = vmax.f32 %v4133, %v4135
    %v4196 = vmax.f32 %v4134, %v4136
    %v4197 = vld [vmem:[%s5] sm:$0xff]
    %v4198 = vld [vmem:[%s5 + $0x8] sm:$0xff]
    %v4199 = vld [vmem:[%s5 + $0x10] sm:$0xff]
    %v4200 = vld [vmem:[%s5 + $0x18] sm:$0xff]
    %v4201 = vld [vmem:[%s5 + $0x20] sm:$0xff]
    %v4202 = vld [vmem:[%s5 + $0x28] sm:$0xff]
    %v4203 = vld [vmem:[%s5 + $0x30] sm:$0xff]
    %v4204 = vld [vmem:[%s5 + $0x38] sm:$0xff]
    %v4205 = vld [vmem:[%s5 + $0x40] sm:$0xff]
    %v4206 = vld [vmem:[%s5 + $0x48] sm:$0xff]
    %v4207 = vld [vmem:[%s5 + $0x50] sm:$0xff]
    %v4208 = vld [vmem:[%s5 + $0x58] sm:$0xff]
    %v4209 = vld [vmem:[%s5 + $0x60] sm:$0xff]
    %v4210 = vld [vmem:[%s5 + $0x68] sm:$0xff]
    %v4211 = vld [vmem:[%s5 + $0x70] sm:$0xff]
    %v4212 = vld [vmem:[%s5 + $0x78] sm:$0xff]
    %v4213 = vld [vmem:[%s5 + $0x80] sm:$0xff]
    %v4214 = vld [vmem:[%s5 + $0x88] sm:$0xff]
    %v4215 = vld [vmem:[%s5 + $0x90] sm:$0xff]
    %v4216 = vld [vmem:[%s5 + $0x98] sm:$0xff]
    %v4217 = vld [vmem:[%s5 + $0xa0] sm:$0xff]
    %v4218 = vld [vmem:[%s5 + $0xa8] sm:$0xff]
    %v4219 = vld [vmem:[%s5 + $0xb0] sm:$0xff]
    %v4220 = vld [vmem:[%s5 + $0xb8] sm:$0xff]
    %v4221 = vld [vmem:[%s5 + $0xc0] sm:$0xff]
    %v4222 = vld [vmem:[%s5 + $0xc8] sm:$0xff]
    %v4223 = vld [vmem:[%s5 + $0xd0] sm:$0xff]
    %v4224 = vld [vmem:[%s5 + $0xd8] sm:$0xff]
    %v4225 = vld [vmem:[%s5 + $0xe0] sm:$0xff]
    %v4226 = vld [vmem:[%s5 + $0xe8] sm:$0xff]
    %v4227 = vld [vmem:[%s5 + $0xf0] sm:$0xff]
    %v4228 = vld [vmem:[%s5 + $0xf8] sm:$0xff]
    %v4229 = vld [vmem:[%s5 + $0x100] sm:$0xff]
    %v4230 = vld [vmem:[%s5 + $0x108] sm:$0xff]
    %v4231 = vld [vmem:[%s5 + $0x110] sm:$0xff]
    %v4232 = vld [vmem:[%s5 + $0x118] sm:$0xff]
    %v4233 = vld [vmem:[%s5 + $0x120] sm:$0xff]
    %v4234 = vld [vmem:[%s5 + $0x128] sm:$0xff]
    %v4235 = vld [vmem:[%s5 + $0x130] sm:$0xff]
    %v4236 = vld [vmem:[%s5 + $0x138] sm:$0xff]
    %v4237 = vld [vmem:[%s5 + $0x140] sm:$0xff]
    %v4238 = vld [vmem:[%s5 + $0x148] sm:$0xff]
    %v4239 = vld [vmem:[%s5 + $0x150] sm:$0xff]
    %v4240 = vld [vmem:[%s5 + $0x158] sm:$0xff]
    %v4241 = vld [vmem:[%s5 + $0x160] sm:$0xff]
    %v4242 = vld [vmem:[%s5 + $0x168] sm:$0xff]
    %v4243 = vld [vmem:[%s5 + $0x170] sm:$0xff]
    %v4244 = vld [vmem:[%s5 + $0x178] sm:$0xff]
    %v4245 = vld [vmem:[%s5 + $0x180] sm:$0xff]
    %v4246 = vld [vmem:[%s5 + $0x188] sm:$0xff]
    %v4247 = vld [vmem:[%s5 + $0x190] sm:$0xff]
    %v4248 = vld [vmem:[%s5 + $0x198] sm:$0xff]
    %v4249 = vld [vmem:[%s5 + $0x1a0] sm:$0xff]
    %v4250 = vld [vmem:[%s5 + $0x1a8] sm:$0xff]
    %v4251 = vld [vmem:[%s5 + $0x1b0] sm:$0xff]
    %v4252 = vld [vmem:[%s5 + $0x1b8] sm:$0xff]
    %v4253 = vld [vmem:[%s5 + $0x1c0] sm:$0xff]
    %v4254 = vld [vmem:[%s5 + $0x1c8] sm:$0xff]
    %v4255 = vld [vmem:[%s5 + $0x1d0] sm:$0xff]
    %v4256 = vld [vmem:[%s5 + $0x1d8] sm:$0xff]
    %v4257 = vld [vmem:[%s5 + $0x1e0] sm:$0xff]
    %v4258 = vld [vmem:[%s5 + $0x1e8] sm:$0xff]
    %v4259 = vld [vmem:[%s5 + $0x1f0] sm:$0xff]
    %v4260 = vld [vmem:[%s5 + $0x1f8] sm:$0xff]
    %v4261 = vmul.f32 %v4137, %v4197
    %v4262 = vmul.f32 %v4138, %v4198
    %v4263 = vmul.f32 %v4139, %v4199
    %v4264 = vmul.f32 %v4140, %v4200
    %v4265 = vmul.f32 %v4141, %v4201
    %v4266 = vmul.f32 %v4142, %v4202
    %v4267 = vmul.f32 %v4143, %v4203
    %v4268 = vmul.f32 %v4144, %v4204
    %v4269 = vmul.f32 %v4145, %v4205
    %v4270 = vmul.f32 %v4146, %v4206
    %v4271 = vmul.f32 %v4147, %v4207
    %v4272 = vmul.f32 %v4148, %v4208
    %v4273 = vmul.f32 %v4149, %v4209
    %v4274 = vmul.f32 %v4150, %v4210
    %v4275 = vmul.f32 %v4151, %v4211
    %v4276 = vmul.f32 %v4152, %v4212
    %v4277 = vmul.f32 %v4153, %v4213
    %v4278 = vmul.f32 %v4154, %v4214
    %v4279 = vmul.f32 %v4155, %v4215
    %v4280 = vmul.f32 %v4156, %v4216
    %v4281 = vmul.f32 %v4157, %v4217
    %v4282 = vmul.f32 %v4158, %v4218
    %v4283 = vmul.f32 %v4159, %v4219
    %v4284 = vmul.f32 %v4160, %v4220
    %v4285 = vmul.f32 %v4161, %v4221
    %v4286 = vmul.f32 %v4162, %v4222
    %v4287 = vmul.f32 %v4163, %v4223
    %v4288 = vmul.f32 %v4164, %v4224
    %v4289 = vmul.f32 %v4165, %v4225
    %v4290 = vmul.f32 %v4166, %v4226
    %v4291 = vmul.f32 %v4103, %v4227
    %v4292 = vmul.f32 %v4104, %v4228
    %v4293 = vmul.f32 %v4167, %v4197
    %v4294 = vmul.f32 %v4168, %v4198
    %v4295 = vmul.f32 %v4169, %v4199
    %v4296 = vmul.f32 %v4170, %v4200
    %v4297 = vmul.f32 %v4171, %v4201
    %v4298 = vmul.f32 %v4172, %v4202
    %v4299 = vmul.f32 %v4173, %v4203
    %v4300 = vmul.f32 %v4174, %v4204
    %v4301 = vmul.f32 %v4175, %v4205
    %v4302 = vmul.f32 %v4176, %v4206
    %v4303 = vmul.f32 %v4177, %v4207
    %v4304 = vmul.f32 %v4178, %v4208
    %v4305 = vmul.f32 %v4179, %v4209
    %v4306 = vmul.f32 %v4180, %v4210
    %v4307 = vmul.f32 %v4181, %v4211
    %v4308 = vmul.f32 %v4182, %v4212
    %v4309 = vmul.f32 %v4183, %v4213
    %v4310 = vmul.f32 %v4184, %v4214
    %v4311 = vmul.f32 %v4185, %v4215
    %v4312 = vmul.f32 %v4186, %v4216
    %v4313 = vmul.f32 %v4187, %v4217
    %v4314 = vmul.f32 %v4188, %v4218
    %v4315 = vmul.f32 %v4189, %v4219
    %v4316 = vmul.f32 %v4190, %v4220
    %v4317 = vmul.f32 %v4191, %v4221
    %v4318 = vmul.f32 %v4192, %v4222
    %v4319 = vmul.f32 %v4193, %v4223
    %v4320 = vmul.f32 %v4194, %v4224
    %v4321 = vmul.f32 %v4195, %v4225
    %v4322 = vmul.f32 %v4196, %v4226
    %v4323 = vmul.f32 %v4135, %v4227
    %v4324 = vmul.f32 %v4136, %v4228
    %v4325 = vsel %vm2834, %v4261, 0.0
    %4326 = vadd.xlane.f32.xlu0 %v4325
    %v4327 = vpop.xlane.xlu0 %4326
    %v4328 = vsel %vm2834, %v4262, 0.0
    %4329 = vadd.xlane.f32.xlu0 %v4328
    %v4330 = vpop.xlane.xlu0 %4329
    %v4331 = vsel %vm2834, %v4263, 0.0
    %4332 = vadd.xlane.f32.xlu0 %v4331
    %v4333 = vpop.xlane.xlu0 %4332
    %v4334 = vsel %vm2834, %v4264, 0.0
    %4335 = vadd.xlane.f32.xlu0 %v4334
    %v4336 = vpop.xlane.xlu0 %4335
    %v4337 = vsel %vm2834, %v4265, 0.0
    %4338 = vadd.xlane.f32.xlu0 %v4337
    %v4339 = vpop.xlane.xlu0 %4338
    %v4340 = vsel %vm2834, %v4266, 0.0
    %4341 = vadd.xlane.f32.xlu0 %v4340
    %v4342 = vpop.xlane.xlu0 %4341
    %v4343 = vsel %vm2834, %v4267, 0.0
    %4344 = vadd.xlane.f32.xlu0 %v4343
    %v4345 = vpop.xlane.xlu0 %4344
    %v4346 = vsel %vm2834, %v4268, 0.0
    %4347 = vadd.xlane.f32.xlu0 %v4346
    %v4348 = vpop.xlane.xlu0 %4347
    %v4349 = vsel %vm2834, %v4269, 0.0
    %4350 = vadd.xlane.f32.xlu0 %v4349
    %v4351 = vpop.xlane.xlu0 %4350
    %v4352 = vsel %vm2834, %v4270, 0.0
    %4353 = vadd.xlane.f32.xlu0 %v4352
    %v4354 = vpop.xlane.xlu0 %4353
    %v4355 = vsel %vm2834, %v4271, 0.0
    %4356 = vadd.xlane.f32.xlu0 %v4355
    %v4357 = vpop.xlane.xlu0 %4356
    %v4358 = vsel %vm2834, %v4272, 0.0
    %4359 = vadd.xlane.f32.xlu0 %v4358
    %v4360 = vpop.xlane.xlu0 %4359
    %v4361 = vsel %vm2834, %v4273, 0.0
    %4362 = vadd.xlane.f32.xlu0 %v4361
    %v4363 = vpop.xlane.xlu0 %4362
    %v4364 = vsel %vm2834, %v4274, 0.0
    %4365 = vadd.xlane.f32.xlu0 %v4364
    %v4366 = vpop.xlane.xlu0 %4365
    %v4367 = vsel %vm2834, %v4275, 0.0
    %4368 = vadd.xlane.f32.xlu0 %v4367
    %v4369 = vpop.xlane.xlu0 %4368
    %v4370 = vsel %vm2834, %v4276, 0.0
    %4371 = vadd.xlane.f32.xlu0 %v4370
    %v4372 = vpop.xlane.xlu0 %4371
    %v4373 = vsel %vm2834, %v4277, 0.0
    %4374 = vadd.xlane.f32.xlu0 %v4373
    %v4375 = vpop.xlane.xlu0 %4374
    %v4376 = vsel %vm2834, %v4278, 0.0
    %4377 = vadd.xlane.f32.xlu0 %v4376
    %v4378 = vpop.xlane.xlu0 %4377
    %v4379 = vsel %vm2834, %v4279, 0.0
    %4380 = vadd.xlane.f32.xlu0 %v4379
    %v4381 = vpop.xlane.xlu0 %4380
    %v4382 = vsel %vm2834, %v4280, 0.0
    %4383 = vadd.xlane.f32.xlu0 %v4382
    %v4384 = vpop.xlane.xlu0 %4383
    %v4385 = vsel %vm2834, %v4281, 0.0
    %4386 = vadd.xlane.f32.xlu0 %v4385
    %v4387 = vpop.xlane.xlu0 %4386
    %v4388 = vsel %vm2834, %v4282, 0.0
    %4389 = vadd.xlane.f32.xlu0 %v4388
    %v4390 = vpop.xlane.xlu0 %4389
    %v4391 = vsel %vm2834, %v4283, 0.0
    %4392 = vadd.xlane.f32.xlu0 %v4391
    %v4393 = vpop.xlane.xlu0 %4392
    %v4394 = vsel %vm2834, %v4284, 0.0
    %4395 = vadd.xlane.f32.xlu0 %v4394
    %v4396 = vpop.xlane.xlu0 %4395
    %v4397 = vsel %vm2834, %v4285, 0.0
    %4398 = vadd.xlane.f32.xlu0 %v4397
    %v4399 = vpop.xlane.xlu0 %4398
    %v4400 = vsel %vm2834, %v4286, 0.0
    %4401 = vadd.xlane.f32.xlu0 %v4400
    %v4402 = vpop.xlane.xlu0 %4401
    %v4403 = vsel %vm2834, %v4287, 0.0
    %4404 = vadd.xlane.f32.xlu0 %v4403
    %v4405 = vpop.xlane.xlu0 %4404
    %v4406 = vsel %vm2834, %v4288, 0.0
    %4407 = vadd.xlane.f32.xlu0 %v4406
    %v4408 = vpop.xlane.xlu0 %4407
    %v4409 = vsel %vm2834, %v4289, 0.0
    %4410 = vadd.xlane.f32.xlu0 %v4409
    %v4411 = vpop.xlane.xlu0 %4410
    %v4412 = vsel %vm2834, %v4290, 0.0
    %4413 = vadd.xlane.f32.xlu0 %v4412
    %v4414 = vpop.xlane.xlu0 %4413
    %v4415 = vsel %vm2834, %v4291, 0.0
    %4416 = vadd.xlane.f32.xlu0 %v4415
    %v4417 = vpop.xlane.xlu0 %4416
    %v4418 = vsel %vm2834, %v4292, 0.0
    %4419 = vadd.xlane.f32.xlu0 %v4418
    %v4420 = vpop.xlane.xlu0 %4419
    %v4421 = vsel %vm2834, %v4293, 0.0
    %4422 = vadd.xlane.f32.xlu0 %v4421
    %v4423 = vpop.xlane.xlu0 %4422
    %v4424 = vsel %vm2834, %v4294, 0.0
    %4425 = vadd.xlane.f32.xlu0 %v4424
    %v4426 = vpop.xlane.xlu0 %4425
    %v4427 = vsel %vm2834, %v4295, 0.0
    %4428 = vadd.xlane.f32.xlu0 %v4427
    %v4429 = vpop.xlane.xlu0 %4428
    %v4430 = vsel %vm2834, %v4296, 0.0
    %4431 = vadd.xlane.f32.xlu0 %v4430
    %v4432 = vpop.xlane.xlu0 %4431
    %v4433 = vsel %vm2834, %v4297, 0.0
    %4434 = vadd.xlane.f32.xlu0 %v4433
    %v4435 = vpop.xlane.xlu0 %4434
    %v4436 = vsel %vm2834, %v4298, 0.0
    %4437 = vadd.xlane.f32.xlu0 %v4436
    %v4438 = vpop.xlane.xlu0 %4437
    %v4439 = vsel %vm2834, %v4299, 0.0
    %4440 = vadd.xlane.f32.xlu0 %v4439
    %v4441 = vpop.xlane.xlu0 %4440
    %v4442 = vsel %vm2834, %v4300, 0.0
    %4443 = vadd.xlane.f32.xlu0 %v4442
    %v4444 = vpop.xlane.xlu0 %4443
    %v4445 = vsel %vm2834, %v4301, 0.0
    %4446 = vadd.xlane.f32.xlu0 %v4445
    %v4447 = vpop.xlane.xlu0 %4446
    %v4448 = vsel %vm2834, %v4302, 0.0
    %4449 = vadd.xlane.f32.xlu0 %v4448
    %v4450 = vpop.xlane.xlu0 %4449
    %v4451 = vsel %vm2834, %v4303, 0.0
    %4452 = vadd.xlane.f32.xlu0 %v4451
    %v4453 = vpop.xlane.xlu0 %4452
    %v4454 = vsel %vm2834, %v4304, 0.0
    %4455 = vadd.xlane.f32.xlu0 %v4454
    %v4456 = vpop.xlane.xlu0 %4455
    %v4457 = vsel %vm2834, %v4305, 0.0
    %4458 = vadd.xlane.f32.xlu0 %v4457
    %v4459 = vpop.xlane.xlu0 %4458
    %v4460 = vsel %vm2834, %v4306, 0.0
    %4461 = vadd.xlane.f32.xlu0 %v4460
    %v4462 = vpop.xlane.xlu0 %4461
    %v4463 = vsel %vm2834, %v4307, 0.0
    %4464 = vadd.xlane.f32.xlu0 %v4463
    %v4465 = vpop.xlane.xlu0 %4464
    %v4466 = vsel %vm2834, %v4308, 0.0
    %4467 = vadd.xlane.f32.xlu0 %v4466
    %v4468 = vpop.xlane.xlu0 %4467
    %v4469 = vsel %vm2834, %v4309, 0.0
    %4470 = vadd.xlane.f32.xlu0 %v4469
    %v4471 = vpop.xlane.xlu0 %4470
    %v4472 = vsel %vm2834, %v4310, 0.0
    %4473 = vadd.xlane.f32.xlu0 %v4472
    %v4474 = vpop.xlane.xlu0 %4473
    %v4475 = vsel %vm2834, %v4311, 0.0
    %4476 = vadd.xlane.f32.xlu0 %v4475
    %v4477 = vpop.xlane.xlu0 %4476
    %v4478 = vsel %vm2834, %v4312, 0.0
    %4479 = vadd.xlane.f32.xlu0 %v4478
    %v4480 = vpop.xlane.xlu0 %4479
    %v4481 = vsel %vm2834, %v4313, 0.0
    %4482 = vadd.xlane.f32.xlu0 %v4481
    %v4483 = vpop.xlane.xlu0 %4482
    %v4484 = vsel %vm2834, %v4314, 0.0
    %4485 = vadd.xlane.f32.xlu0 %v4484
    %v4486 = vpop.xlane.xlu0 %4485
    %v4487 = vsel %vm2834, %v4315, 0.0
    %4488 = vadd.xlane.f32.xlu0 %v4487
    %v4489 = vpop.xlane.xlu0 %4488
    %v4490 = vsel %vm2834, %v4316, 0.0
    %4491 = vadd.xlane.f32.xlu0 %v4490
    %v4492 = vpop.xlane.xlu0 %4491
    %v4493 = vsel %vm2834, %v4317, 0.0
    %4494 = vadd.xlane.f32.xlu0 %v4493
    %v4495 = vpop.xlane.xlu0 %4494
    %v4496 = vsel %vm2834, %v4318, 0.0
    %4497 = vadd.xlane.f32.xlu0 %v4496
    %v4498 = vpop.xlane.xlu0 %4497
    %v4499 = vsel %vm2834, %v4319, 0.0
    %4500 = vadd.xlane.f32.xlu0 %v4499
    %v4501 = vpop.xlane.xlu0 %4500
    %v4502 = vsel %vm2834, %v4320, 0.0
    %4503 = vadd.xlane.f32.xlu0 %v4502
    %v4504 = vpop.xlane.xlu0 %4503
    %v4505 = vsel %vm2834, %v4321, 0.0
    %4506 = vadd.xlane.f32.xlu0 %v4505
    %v4507 = vpop.xlane.xlu0 %4506
    %v4508 = vsel %vm2834, %v4322, 0.0
    %4509 = vadd.xlane.f32.xlu0 %v4508
    %v4510 = vpop.xlane.xlu0 %4509
    %v4511 = vsel %vm2834, %v4323, 0.0
    %4512 = vadd.xlane.f32.xlu0 %v4511
    %v4513 = vpop.xlane.xlu0 %4512
    %v4514 = vsel %vm2834, %v4324, 0.0
    %4515 = vadd.xlane.f32.xlu0 %v4514
    %v4516 = vpop.xlane.xlu0 %4515
    %v4517 = vadd.f32 %v4327, %v4330
    %v4518 = vrot.slane %v4517, 4
    %v4519 = vadd.f32 %v4517, %v4518
    %v4520 = vrot.slane %v4519, 2
    %v4521 = vadd.f32 %v4519, %v4520
    %v4522 = vrot.slane %v4521, 1
    %v4523 = vadd.f32 %v4521, %v4522
    %v4524 = vadd.f32 %v4333, %v4336
    %v4525 = vrot.slane %v4524, 4
    %v4526 = vadd.f32 %v4524, %v4525
    %v4527 = vrot.slane %v4526, 2
    %v4528 = vadd.f32 %v4526, %v4527
    %v4529 = vrot.slane %v4528, 1
    %v4530 = vadd.f32 %v4528, %v4529
    %v4531 = vadd.f32 %v4339, %v4342
    %v4532 = vrot.slane %v4531, 4
    %v4533 = vadd.f32 %v4531, %v4532
    %v4534 = vrot.slane %v4533, 2
    %v4535 = vadd.f32 %v4533, %v4534
    %v4536 = vrot.slane %v4535, 1
    %v4537 = vadd.f32 %v4535, %v4536
    %v4538 = vadd.f32 %v4345, %v4348
    %v4539 = vrot.slane %v4538, 4
    %v4540 = vadd.f32 %v4538, %v4539
    %v4541 = vrot.slane %v4540, 2
    %v4542 = vadd.f32 %v4540, %v4541
    %v4543 = vrot.slane %v4542, 1
    %v4544 = vadd.f32 %v4542, %v4543
    %v4545 = vadd.f32 %v4351, %v4354
    %v4546 = vrot.slane %v4545, 4
    %v4547 = vadd.f32 %v4545, %v4546
    %v4548 = vrot.slane %v4547, 2
    %v4549 = vadd.f32 %v4547, %v4548
    %v4550 = vrot.slane %v4549, 1
    %v4551 = vadd.f32 %v4549, %v4550
    %v4552 = vadd.f32 %v4357, %v4360
    %v4553 = vrot.slane %v4552, 4
    %v4554 = vadd.f32 %v4552, %v4553
    %v4555 = vrot.slane %v4554, 2
    %v4556 = vadd.f32 %v4554, %v4555
    %v4557 = vrot.slane %v4556, 1
    %v4558 = vadd.f32 %v4556, %v4557
    %v4559 = vadd.f32 %v4363, %v4366
    %v4560 = vrot.slane %v4559, 4
    %v4561 = vadd.f32 %v4559, %v4560
    %v4562 = vrot.slane %v4561, 2
    %v4563 = vadd.f32 %v4561, %v4562
    %v4564 = vrot.slane %v4563, 1
    %v4565 = vadd.f32 %v4563, %v4564
    %v4566 = vadd.f32 %v4369, %v4372
    %v4567 = vrot.slane %v4566, 4
    %v4568 = vadd.f32 %v4566, %v4567
    %v4569 = vrot.slane %v4568, 2
    %v4570 = vadd.f32 %v4568, %v4569
    %v4571 = vrot.slane %v4570, 1
    %v4572 = vadd.f32 %v4570, %v4571
    %v4573 = vadd.f32 %v4375, %v4378
    %v4574 = vrot.slane %v4573, 4
    %v4575 = vadd.f32 %v4573, %v4574
    %v4576 = vrot.slane %v4575, 2
    %v4577 = vadd.f32 %v4575, %v4576
    %v4578 = vrot.slane %v4577, 1
    %v4579 = vadd.f32 %v4577, %v4578
    %v4580 = vadd.f32 %v4381, %v4384
    %v4581 = vrot.slane %v4580, 4
    %v4582 = vadd.f32 %v4580, %v4581
    %v4583 = vrot.slane %v4582, 2
    %v4584 = vadd.f32 %v4582, %v4583
    %v4585 = vrot.slane %v4584, 1
    %v4586 = vadd.f32 %v4584, %v4585
    %v4587 = vadd.f32 %v4387, %v4390
    %v4588 = vrot.slane %v4587, 4
    %v4589 = vadd.f32 %v4587, %v4588
    %v4590 = vrot.slane %v4589, 2
    %v4591 = vadd.f32 %v4589, %v4590
    %v4592 = vrot.slane %v4591, 1
    %v4593 = vadd.f32 %v4591, %v4592
    %v4594 = vadd.f32 %v4393, %v4396
    %v4595 = vrot.slane %v4594, 4
    %v4596 = vadd.f32 %v4594, %v4595
    %v4597 = vrot.slane %v4596, 2
    %v4598 = vadd.f32 %v4596, %v4597
    %v4599 = vrot.slane %v4598, 1
    %v4600 = vadd.f32 %v4598, %v4599
    %v4601 = vadd.f32 %v4399, %v4402
    %v4602 = vrot.slane %v4601, 4
    %v4603 = vadd.f32 %v4601, %v4602
    %v4604 = vrot.slane %v4603, 2
    %v4605 = vadd.f32 %v4603, %v4604
    %v4606 = vrot.slane %v4605, 1
    %v4607 = vadd.f32 %v4605, %v4606
    %v4608 = vadd.f32 %v4405, %v4408
    %v4609 = vrot.slane %v4608, 4
    %v4610 = vadd.f32 %v4608, %v4609
    %v4611 = vrot.slane %v4610, 2
    %v4612 = vadd.f32 %v4610, %v4611
    %v4613 = vrot.slane %v4612, 1
    %v4614 = vadd.f32 %v4612, %v4613
    %v4615 = vadd.f32 %v4411, %v4414
    %v4616 = vrot.slane %v4615, 4
    %v4617 = vadd.f32 %v4615, %v4616
    %v4618 = vrot.slane %v4617, 2
    %v4619 = vadd.f32 %v4617, %v4618
    %v4620 = vrot.slane %v4619, 1
    %v4621 = vadd.f32 %v4619, %v4620
    %v4622 = vadd.f32 %v4417, %v4420
    %v4623 = vrot.slane %v4622, 4
    %v4624 = vadd.f32 %v4622, %v4623
    %v4625 = vrot.slane %v4624, 2
    %v4626 = vadd.f32 %v4624, %v4625
    %v4627 = vrot.slane %v4626, 1
    %v4628 = vadd.f32 %v4626, %v4627
    %v4629 = vadd.f32 %v4423, %v4426
    %v4630 = vrot.slane %v4629, 4
    %v4631 = vadd.f32 %v4629, %v4630
    %v4632 = vrot.slane %v4631, 2
    %v4633 = vadd.f32 %v4631, %v4632
    %v4634 = vrot.slane %v4633, 1
    %v4635 = vadd.f32 %v4633, %v4634
    %v4636 = vadd.f32 %v4429, %v4432
    %v4637 = vrot.slane %v4636, 4
    %v4638 = vadd.f32 %v4636, %v4637
    %v4639 = vrot.slane %v4638, 2
    %v4640 = vadd.f32 %v4638, %v4639
    %v4641 = vrot.slane %v4640, 1
    %v4642 = vadd.f32 %v4640, %v4641
    %v4643 = vadd.f32 %v4435, %v4438
    %v4644 = vrot.slane %v4643, 4
    %v4645 = vadd.f32 %v4643, %v4644
    %v4646 = vrot.slane %v4645, 2
    %v4647 = vadd.f32 %v4645, %v4646
    %v4648 = vrot.slane %v4647, 1
    %v4649 = vadd.f32 %v4647, %v4648
    %v4650 = vadd.f32 %v4441, %v4444
    %v4651 = vrot.slane %v4650, 4
    %v4652 = vadd.f32 %v4650, %v4651
    %v4653 = vrot.slane %v4652, 2
    %v4654 = vadd.f32 %v4652, %v4653
    %v4655 = vrot.slane %v4654, 1
    %v4656 = vadd.f32 %v4654, %v4655
    %v4657 = vadd.f32 %v4447, %v4450
    %v4658 = vrot.slane %v4657, 4
    %v4659 = vadd.f32 %v4657, %v4658
    %v4660 = vrot.slane %v4659, 2
    %v4661 = vadd.f32 %v4659, %v4660
    %v4662 = vrot.slane %v4661, 1
    %v4663 = vadd.f32 %v4661, %v4662
    %v4664 = vadd.f32 %v4453, %v4456
    %v4665 = vrot.slane %v4664, 4
    %v4666 = vadd.f32 %v4664, %v4665
    %v4667 = vrot.slane %v4666, 2
    %v4668 = vadd.f32 %v4666, %v4667
    %v4669 = vrot.slane %v4668, 1
    %v4670 = vadd.f32 %v4668, %v4669
    %v4671 = vadd.f32 %v4459, %v4462
    %v4672 = vrot.slane %v4671, 4
    %v4673 = vadd.f32 %v4671, %v4672
    %v4674 = vrot.slane %v4673, 2
    %v4675 = vadd.f32 %v4673, %v4674
    %v4676 = vrot.slane %v4675, 1
    %v4677 = vadd.f32 %v4675, %v4676
    %v4678 = vadd.f32 %v4465, %v4468
    %v4679 = vrot.slane %v4678, 4
    %v4680 = vadd.f32 %v4678, %v4679
    %v4681 = vrot.slane %v4680, 2
    %v4682 = vadd.f32 %v4680, %v4681
    %v4683 = vrot.slane %v4682, 1
    %v4684 = vadd.f32 %v4682, %v4683
    %v4685 = vadd.f32 %v4471, %v4474
    %v4686 = vrot.slane %v4685, 4
    %v4687 = vadd.f32 %v4685, %v4686
    %v4688 = vrot.slane %v4687, 2
    %v4689 = vadd.f32 %v4687, %v4688
    %v4690 = vrot.slane %v4689, 1
    %v4691 = vadd.f32 %v4689, %v4690
    %v4692 = vadd.f32 %v4477, %v4480
    %v4693 = vrot.slane %v4692, 4
    %v4694 = vadd.f32 %v4692, %v4693
    %v4695 = vrot.slane %v4694, 2
    %v4696 = vadd.f32 %v4694, %v4695
    %v4697 = vrot.slane %v4696, 1
    %v4698 = vadd.f32 %v4696, %v4697
    %v4699 = vadd.f32 %v4483, %v4486
    %v4700 = vrot.slane %v4699, 4
    %v4701 = vadd.f32 %v4699, %v4700
    %v4702 = vrot.slane %v4701, 2
    %v4703 = vadd.f32 %v4701, %v4702
    %v4704 = vrot.slane %v4703, 1
    %v4705 = vadd.f32 %v4703, %v4704
    %v4706 = vadd.f32 %v4489, %v4492
    %v4707 = vrot.slane %v4706, 4
    %v4708 = vadd.f32 %v4706, %v4707
    %v4709 = vrot.slane %v4708, 2
    %v4710 = vadd.f32 %v4708, %v4709
    %v4711 = vrot.slane %v4710, 1
    %v4712 = vadd.f32 %v4710, %v4711
    %v4713 = vadd.f32 %v4495, %v4498
    %v4714 = vrot.slane %v4713, 4
    %v4715 = vadd.f32 %v4713, %v4714
    %v4716 = vrot.slane %v4715, 2
    %v4717 = vadd.f32 %v4715, %v4716
    %v4718 = vrot.slane %v4717, 1
    %v4719 = vadd.f32 %v4717, %v4718
    %v4720 = vadd.f32 %v4501, %v4504
    %v4721 = vrot.slane %v4720, 4
    %v4722 = vadd.f32 %v4720, %v4721
    %v4723 = vrot.slane %v4722, 2
    %v4724 = vadd.f32 %v4722, %v4723
    %v4725 = vrot.slane %v4724, 1
    %v4726 = vadd.f32 %v4724, %v4725
    %v4727 = vadd.f32 %v4507, %v4510
    %v4728 = vrot.slane %v4727, 4
    %v4729 = vadd.f32 %v4727, %v4728
    %v4730 = vrot.slane %v4729, 2
    %v4731 = vadd.f32 %v4729, %v4730
    %v4732 = vrot.slane %v4731, 1
    %v4733 = vadd.f32 %v4731, %v4732
    %v4734 = vadd.f32 %v4513, %v4516
    %v4735 = vrot.slane %v4734, 4
    %v4736 = vadd.f32 %v4734, %v4735
    %v4737 = vrot.slane %v4736, 2
    %v4738 = vadd.f32 %v4736, %v4737
    %v4739 = vrot.slane %v4738, 1
    %v4740 = vadd.f32 %v4738, %v4739
    %v4741 = vadd.f32 %v4523, %v4530
    %v4742 = vadd.f32 %v4741, %v4537
    %v4743 = vadd.f32 %v4742, %v4544
    %v4744 = vadd.f32 %v4743, %v4551
    %v4745 = vadd.f32 %v4744, %v4558
    %v4746 = vadd.f32 %v4745, %v4565
    %v4747 = vadd.f32 %v4746, %v4572
    %v4748 = vadd.f32 %v4747, %v4579
    %v4749 = vadd.f32 %v4748, %v4586
    %v4750 = vadd.f32 %v4749, %v4593
    %v4751 = vadd.f32 %v4750, %v4600
    %v4752 = vadd.f32 %v4751, %v4607
    %v4753 = vadd.f32 %v4752, %v4614
    %v4754 = vadd.f32 %v4753, %v4621
    %v4755 = vadd.f32 %v4754, %v4628
    %v4756 = vadd.f32 %v4635, %v4642
    %v4757 = vadd.f32 %v4756, %v4649
    %v4758 = vadd.f32 %v4757, %v4656
    %v4759 = vadd.f32 %v4758, %v4663
    %v4760 = vadd.f32 %v4759, %v4670
    %v4761 = vadd.f32 %v4760, %v4677
    %v4762 = vadd.f32 %v4761, %v4684
    %v4763 = vadd.f32 %v4762, %v4691
    %v4764 = vadd.f32 %v4763, %v4698
    %v4765 = vadd.f32 %v4764, %v4705
    %v4766 = vadd.f32 %v4765, %v4712
    %v4767 = vadd.f32 %v4766, %v4719
    %v4768 = vadd.f32 %v4767, %v4726
    %v4769 = vadd.f32 %v4768, %v4733
    %v4770 = vadd.f32 %v4769, %v4740
    %v4771 = vmul.f32 %v4137, %v4229
    %v4772 = vmul.f32 %v4138, %v4230
    %v4773 = vmul.f32 %v4139, %v4231
    %v4774 = vmul.f32 %v4140, %v4232
    %v4775 = vmul.f32 %v4141, %v4233
    %v4776 = vmul.f32 %v4142, %v4234
    %v4777 = vmul.f32 %v4143, %v4235
    %v4778 = vmul.f32 %v4144, %v4236
    %v4779 = vmul.f32 %v4145, %v4237
    %v4780 = vmul.f32 %v4146, %v4238
    %v4781 = vmul.f32 %v4147, %v4239
    %v4782 = vmul.f32 %v4148, %v4240
    %v4783 = vmul.f32 %v4149, %v4241
    %v4784 = vmul.f32 %v4150, %v4242
    %v4785 = vmul.f32 %v4151, %v4243
    %v4786 = vmul.f32 %v4152, %v4244
    %v4787 = vmul.f32 %v4153, %v4245
    %v4788 = vmul.f32 %v4154, %v4246
    %v4789 = vmul.f32 %v4155, %v4247
    %v4790 = vmul.f32 %v4156, %v4248
    %v4791 = vmul.f32 %v4157, %v4249
    %v4792 = vmul.f32 %v4158, %v4250
    %v4793 = vmul.f32 %v4159, %v4251
    %v4794 = vmul.f32 %v4160, %v4252
    %v4795 = vmul.f32 %v4161, %v4253
    %v4796 = vmul.f32 %v4162, %v4254
    %v4797 = vmul.f32 %v4163, %v4255
    %v4798 = vmul.f32 %v4164, %v4256
    %v4799 = vmul.f32 %v4165, %v4257
    %v4800 = vmul.f32 %v4166, %v4258
    %v4801 = vmul.f32 %v4103, %v4259
    %v4802 = vmul.f32 %v4104, %v4260
    %v4803 = vmul.f32 %v4167, %v4229
    %v4804 = vmul.f32 %v4168, %v4230
    %v4805 = vmul.f32 %v4169, %v4231
    %v4806 = vmul.f32 %v4170, %v4232
    %v4807 = vmul.f32 %v4171, %v4233
    %v4808 = vmul.f32 %v4172, %v4234
    %v4809 = vmul.f32 %v4173, %v4235
    %v4810 = vmul.f32 %v4174, %v4236
    %v4811 = vmul.f32 %v4175, %v4237
    %v4812 = vmul.f32 %v4176, %v4238
    %v4813 = vmul.f32 %v4177, %v4239
    %v4814 = vmul.f32 %v4178, %v4240
    %v4815 = vmul.f32 %v4179, %v4241
    %v4816 = vmul.f32 %v4180, %v4242
    %v4817 = vmul.f32 %v4181, %v4243
    %v4818 = vmul.f32 %v4182, %v4244
    %v4819 = vmul.f32 %v4183, %v4245
    %v4820 = vmul.f32 %v4184, %v4246
    %v4821 = vmul.f32 %v4185, %v4247
    %v4822 = vmul.f32 %v4186, %v4248
    %v4823 = vmul.f32 %v4187, %v4249
    %v4824 = vmul.f32 %v4188, %v4250
    %v4825 = vmul.f32 %v4189, %v4251
    %v4826 = vmul.f32 %v4190, %v4252
    %v4827 = vmul.f32 %v4191, %v4253
    %v4828 = vmul.f32 %v4192, %v4254
    %v4829 = vmul.f32 %v4193, %v4255
    %v4830 = vmul.f32 %v4194, %v4256
    %v4831 = vmul.f32 %v4195, %v4257
    %v4832 = vmul.f32 %v4196, %v4258
    %v4833 = vmul.f32 %v4135, %v4259
    %v4834 = vmul.f32 %v4136, %v4260
    %v4835 = vsel %vm2834, %v4771, 0.0
    %4836 = vadd.xlane.f32.xlu0 %v4835
    %v4837 = vpop.xlane.xlu0 %4836
    %v4838 = vsel %vm2834, %v4772, 0.0
    %4839 = vadd.xlane.f32.xlu0 %v4838
    %v4840 = vpop.xlane.xlu0 %4839
    %v4841 = vsel %vm2834, %v4773, 0.0
    %4842 = vadd.xlane.f32.xlu0 %v4841
    %v4843 = vpop.xlane.xlu0 %4842
    %v4844 = vsel %vm2834, %v4774, 0.0
    %4845 = vadd.xlane.f32.xlu0 %v4844
    %v4846 = vpop.xlane.xlu0 %4845
    %v4847 = vsel %vm2834, %v4775, 0.0
    %4848 = vadd.xlane.f32.xlu0 %v4847
    %v4849 = vpop.xlane.xlu0 %4848
    %v4850 = vsel %vm2834, %v4776, 0.0
    %4851 = vadd.xlane.f32.xlu0 %v4850
    %v4852 = vpop.xlane.xlu0 %4851
    %v4853 = vsel %vm2834, %v4777, 0.0
    %4854 = vadd.xlane.f32.xlu0 %v4853
    %v4855 = vpop.xlane.xlu0 %4854
    %v4856 = vsel %vm2834, %v4778, 0.0
    %4857 = vadd.xlane.f32.xlu0 %v4856
    %v4858 = vpop.xlane.xlu0 %4857
    %v4859 = vsel %vm2834, %v4779, 0.0
    %4860 = vadd.xlane.f32.xlu0 %v4859
    %v4861 = vpop.xlane.xlu0 %4860
    %v4862 = vsel %vm2834, %v4780, 0.0
    %4863 = vadd.xlane.f32.xlu0 %v4862
    %v4864 = vpop.xlane.xlu0 %4863
    %v4865 = vsel %vm2834, %v4781, 0.0
    %4866 = vadd.xlane.f32.xlu0 %v4865
    %v4867 = vpop.xlane.xlu0 %4866
    %v4868 = vsel %vm2834, %v4782, 0.0
    %4869 = vadd.xlane.f32.xlu0 %v4868
    %v4870 = vpop.xlane.xlu0 %4869
    %v4871 = vsel %vm2834, %v4783, 0.0
    %4872 = vadd.xlane.f32.xlu0 %v4871
    %v4873 = vpop.xlane.xlu0 %4872
    %v4874 = vsel %vm2834, %v4784, 0.0
    %4875 = vadd.xlane.f32.xlu0 %v4874
    %v4876 = vpop.xlane.xlu0 %4875
    %v4877 = vsel %vm2834, %v4785, 0.0
    %4878 = vadd.xlane.f32.xlu0 %v4877
    %v4879 = vpop.xlane.xlu0 %4878
    %v4880 = vsel %vm2834, %v4786, 0.0
    %4881 = vadd.xlane.f32.xlu0 %v4880
    %v4882 = vpop.xlane.xlu0 %4881
    %v4883 = vsel %vm2834, %v4787, 0.0
    %4884 = vadd.xlane.f32.xlu0 %v4883
    %v4885 = vpop.xlane.xlu0 %4884
    %v4886 = vsel %vm2834, %v4788, 0.0
    %4887 = vadd.xlane.f32.xlu0 %v4886
    %v4888 = vpop.xlane.xlu0 %4887
    %v4889 = vsel %vm2834, %v4789, 0.0
    %4890 = vadd.xlane.f32.xlu0 %v4889
    %v4891 = vpop.xlane.xlu0 %4890
    %v4892 = vsel %vm2834, %v4790, 0.0
    %4893 = vadd.xlane.f32.xlu0 %v4892
    %v4894 = vpop.xlane.xlu0 %4893
    %v4895 = vsel %vm2834, %v4791, 0.0
    %4896 = vadd.xlane.f32.xlu0 %v4895
    %v4897 = vpop.xlane.xlu0 %4896
    %v4898 = vsel %vm2834, %v4792, 0.0
    %4899 = vadd.xlane.f32.xlu0 %v4898
    %v4900 = vpop.xlane.xlu0 %4899
    %v4901 = vsel %vm2834, %v4793, 0.0
    %4902 = vadd.xlane.f32.xlu0 %v4901
    %v4903 = vpop.xlane.xlu0 %4902
    %v4904 = vsel %vm2834, %v4794, 0.0
    %4905 = vadd.xlane.f32.xlu0 %v4904
    %v4906 = vpop.xlane.xlu0 %4905
    %v4907 = vsel %vm2834, %v4795, 0.0
    %4908 = vadd.xlane.f32.xlu0 %v4907
    %v4909 = vpop.xlane.xlu0 %4908
    %v4910 = vsel %vm2834, %v4796, 0.0
    %4911 = vadd.xlane.f32.xlu0 %v4910
    %v4912 = vpop.xlane.xlu0 %4911
    %v4913 = vsel %vm2834, %v4797, 0.0
    %4914 = vadd.xlane.f32.xlu0 %v4913
    %v4915 = vpop.xlane.xlu0 %4914
    %v4916 = vsel %vm2834, %v4798, 0.0
    %4917 = vadd.xlane.f32.xlu0 %v4916
    %v4918 = vpop.xlane.xlu0 %4917
    %v4919 = vsel %vm2834, %v4799, 0.0
    %4920 = vadd.xlane.f32.xlu0 %v4919
    %v4921 = vpop.xlane.xlu0 %4920
    %v4922 = vsel %vm2834, %v4800, 0.0
    %4923 = vadd.xlane.f32.xlu0 %v4922
    %v4924 = vpop.xlane.xlu0 %4923
    %v4925 = vsel %vm2834, %v4801, 0.0
    %4926 = vadd.xlane.f32.xlu0 %v4925
    %v4927 = vpop.xlane.xlu0 %4926
    %v4928 = vsel %vm2834, %v4802, 0.0
    %4929 = vadd.xlane.f32.xlu0 %v4928
    %v4930 = vpop.xlane.xlu0 %4929
    %v4931 = vsel %vm2834, %v4803, 0.0
    %4932 = vadd.xlane.f32.xlu0 %v4931
    %v4933 = vpop.xlane.xlu0 %4932
    %v4934 = vsel %vm2834, %v4804, 0.0
    %4935 = vadd.xlane.f32.xlu0 %v4934
    %v4936 = vpop.xlane.xlu0 %4935
    %v4937 = vsel %vm2834, %v4805, 0.0
    %4938 = vadd.xlane.f32.xlu0 %v4937
    %v4939 = vpop.xlane.xlu0 %4938
    %v4940 = vsel %vm2834, %v4806, 0.0
    %4941 = vadd.xlane.f32.xlu0 %v4940
    %v4942 = vpop.xlane.xlu0 %4941
    %v4943 = vsel %vm2834, %v4807, 0.0
    %4944 = vadd.xlane.f32.xlu0 %v4943
    %v4945 = vpop.xlane.xlu0 %4944
    %v4946 = vsel %vm2834, %v4808, 0.0
    %4947 = vadd.xlane.f32.xlu0 %v4946
    %v4948 = vpop.xlane.xlu0 %4947
    %v4949 = vsel %vm2834, %v4809, 0.0
    %4950 = vadd.xlane.f32.xlu0 %v4949
    %v4951 = vpop.xlane.xlu0 %4950
    %v4952 = vsel %vm2834, %v4810, 0.0
    %4953 = vadd.xlane.f32.xlu0 %v4952
    %v4954 = vpop.xlane.xlu0 %4953
    %v4955 = vsel %vm2834, %v4811, 0.0
    %4956 = vadd.xlane.f32.xlu0 %v4955
    %v4957 = vpop.xlane.xlu0 %4956
    %v4958 = vsel %vm2834, %v4812, 0.0
    %4959 = vadd.xlane.f32.xlu0 %v4958
    %v4960 = vpop.xlane.xlu0 %4959
    %v4961 = vsel %vm2834, %v4813, 0.0
    %4962 = vadd.xlane.f32.xlu0 %v4961
    %v4963 = vpop.xlane.xlu0 %4962
    %v4964 = vsel %vm2834, %v4814, 0.0
    %4965 = vadd.xlane.f32.xlu0 %v4964
    %v4966 = vpop.xlane.xlu0 %4965
    %v4967 = vsel %vm2834, %v4815, 0.0
    %4968 = vadd.xlane.f32.xlu0 %v4967
    %v4969 = vpop.xlane.xlu0 %4968
    %v4970 = vsel %vm2834, %v4816, 0.0
    %4971 = vadd.xlane.f32.xlu0 %v4970
    %v4972 = vpop.xlane.xlu0 %4971
    %v4973 = vsel %vm2834, %v4817, 0.0
    %4974 = vadd.xlane.f32.xlu0 %v4973
    %v4975 = vpop.xlane.xlu0 %4974
    %v4976 = vsel %vm2834, %v4818, 0.0
    %4977 = vadd.xlane.f32.xlu0 %v4976
    %v4978 = vpop.xlane.xlu0 %4977
    %v4979 = vsel %vm2834, %v4819, 0.0
    %4980 = vadd.xlane.f32.xlu0 %v4979
    %v4981 = vpop.xlane.xlu0 %4980
    %v4982 = vsel %vm2834, %v4820, 0.0
    %4983 = vadd.xlane.f32.xlu0 %v4982
    %v4984 = vpop.xlane.xlu0 %4983
    %v4985 = vsel %vm2834, %v4821, 0.0
    %4986 = vadd.xlane.f32.xlu0 %v4985
    %v4987 = vpop.xlane.xlu0 %4986
    %v4988 = vsel %vm2834, %v4822, 0.0
    %4989 = vadd.xlane.f32.xlu0 %v4988
    %v4990 = vpop.xlane.xlu0 %4989
    %v4991 = vsel %vm2834, %v4823, 0.0
    %4992 = vadd.xlane.f32.xlu0 %v4991
    %v4993 = vpop.xlane.xlu0 %4992
    %v4994 = vsel %vm2834, %v4824, 0.0
    %4995 = vadd.xlane.f32.xlu0 %v4994
    %v4996 = vpop.xlane.xlu0 %4995
    %v4997 = vsel %vm2834, %v4825, 0.0
    %4998 = vadd.xlane.f32.xlu0 %v4997
    %v4999 = vpop.xlane.xlu0 %4998
    %v5000 = vsel %vm2834, %v4826, 0.0
    %5001 = vadd.xlane.f32.xlu0 %v5000
    %v5002 = vpop.xlane.xlu0 %5001
    %v5003 = vsel %vm2834, %v4827, 0.0
    %5004 = vadd.xlane.f32.xlu0 %v5003
    %v5005 = vpop.xlane.xlu0 %5004
    %v5006 = vsel %vm2834, %v4828, 0.0
    %5007 = vadd.xlane.f32.xlu0 %v5006
    %v5008 = vpop.xlane.xlu0 %5007
    %v5009 = vsel %vm2834, %v4829, 0.0
    %5010 = vadd.xlane.f32.xlu0 %v5009
    %v5011 = vpop.xlane.xlu0 %5010
    %v5012 = vsel %vm2834, %v4830, 0.0
    %5013 = vadd.xlane.f32.xlu0 %v5012
    %v5014 = vpop.xlane.xlu0 %5013
    %v5015 = vsel %vm2834, %v4831, 0.0
    %5016 = vadd.xlane.f32.xlu0 %v5015
    %v5017 = vpop.xlane.xlu0 %5016
    %v5018 = vsel %vm2834, %v4832, 0.0
    %5019 = vadd.xlane.f32.xlu0 %v5018
    %v5020 = vpop.xlane.xlu0 %5019
    %v5021 = vsel %vm2834, %v4833, 0.0
    %5022 = vadd.xlane.f32.xlu0 %v5021
    %v5023 = vpop.xlane.xlu0 %5022
    %v5024 = vsel %vm2834, %v4834, 0.0
    %5025 = vadd.xlane.f32.xlu0 %v5024
    %v5026 = vpop.xlane.xlu0 %5025
    %v5027 = vadd.f32 %v4837, %v4840
    %v5028 = vrot.slane %v5027, 4
    %v5029 = vadd.f32 %v5027, %v5028
    %v5030 = vrot.slane %v5029, 2
    %v5031 = vadd.f32 %v5029, %v5030
    %v5032 = vrot.slane %v5031, 1
    %v5033 = vadd.f32 %v5031, %v5032
    %v5034 = vadd.f32 %v4843, %v4846
    %v5035 = vrot.slane %v5034, 4
    %v5036 = vadd.f32 %v5034, %v5035
    %v5037 = vrot.slane %v5036, 2
    %v5038 = vadd.f32 %v5036, %v5037
    %v5039 = vrot.slane %v5038, 1
    %v5040 = vadd.f32 %v5038, %v5039
    %v5041 = vadd.f32 %v4849, %v4852
    %v5042 = vrot.slane %v5041, 4
    %v5043 = vadd.f32 %v5041, %v5042
    %v5044 = vrot.slane %v5043, 2
    %v5045 = vadd.f32 %v5043, %v5044
    %v5046 = vrot.slane %v5045, 1
    %v5047 = vadd.f32 %v5045, %v5046
    %v5048 = vadd.f32 %v4855, %v4858
    %v5049 = vrot.slane %v5048, 4
    %v5050 = vadd.f32 %v5048, %v5049
    %v5051 = vrot.slane %v5050, 2
    %v5052 = vadd.f32 %v5050, %v5051
    %v5053 = vrot.slane %v5052, 1
    %v5054 = vadd.f32 %v5052, %v5053
    %v5055 = vadd.f32 %v4861, %v4864
    %v5056 = vrot.slane %v5055, 4
    %v5057 = vadd.f32 %v5055, %v5056
    %v5058 = vrot.slane %v5057, 2
    %v5059 = vadd.f32 %v5057, %v5058
    %v5060 = vrot.slane %v5059, 1
    %v5061 = vadd.f32 %v5059, %v5060
    %v5062 = vadd.f32 %v4867, %v4870
    %v5063 = vrot.slane %v5062, 4
    %v5064 = vadd.f32 %v5062, %v5063
    %v5065 = vrot.slane %v5064, 2
    %v5066 = vadd.f32 %v5064, %v5065
    %v5067 = vrot.slane %v5066, 1
    %v5068 = vadd.f32 %v5066, %v5067
    %v5069 = vadd.f32 %v4873, %v4876
    %v5070 = vrot.slane %v5069, 4
    %v5071 = vadd.f32 %v5069, %v5070
    %v5072 = vrot.slane %v5071, 2
    %v5073 = vadd.f32 %v5071, %v5072
    %v5074 = vrot.slane %v5073, 1
    %v5075 = vadd.f32 %v5073, %v5074
    %v5076 = vadd.f32 %v4879, %v4882
    %v5077 = vrot.slane %v5076, 4
    %v5078 = vadd.f32 %v5076, %v5077
    %v5079 = vrot.slane %v5078, 2
    %v5080 = vadd.f32 %v5078, %v5079
    %v5081 = vrot.slane %v5080, 1
    %v5082 = vadd.f32 %v5080, %v5081
    %v5083 = vadd.f32 %v4885, %v4888
    %v5084 = vrot.slane %v5083, 4
    %v5085 = vadd.f32 %v5083, %v5084
    %v5086 = vrot.slane %v5085, 2
    %v5087 = vadd.f32 %v5085, %v5086
    %v5088 = vrot.slane %v5087, 1
    %v5089 = vadd.f32 %v5087, %v5088
    %v5090 = vadd.f32 %v4891, %v4894
    %v5091 = vrot.slane %v5090, 4
    %v5092 = vadd.f32 %v5090, %v5091
    %v5093 = vrot.slane %v5092, 2
    %v5094 = vadd.f32 %v5092, %v5093
    %v5095 = vrot.slane %v5094, 1
    %v5096 = vadd.f32 %v5094, %v5095
    %v5097 = vadd.f32 %v4897, %v4900
    %v5098 = vrot.slane %v5097, 4
    %v5099 = vadd.f32 %v5097, %v5098
    %v5100 = vrot.slane %v5099, 2
    %v5101 = vadd.f32 %v5099, %v5100
    %v5102 = vrot.slane %v5101, 1
    %v5103 = vadd.f32 %v5101, %v5102
    %v5104 = vadd.f32 %v4903, %v4906
    %v5105 = vrot.slane %v5104, 4
    %v5106 = vadd.f32 %v5104, %v5105
    %v5107 = vrot.slane %v5106, 2
    %v5108 = vadd.f32 %v5106, %v5107
    %v5109 = vrot.slane %v5108, 1
    %v5110 = vadd.f32 %v5108, %v5109
    %v5111 = vadd.f32 %v4909, %v4912
    %v5112 = vrot.slane %v5111, 4
    %v5113 = vadd.f32 %v5111, %v5112
    %v5114 = vrot.slane %v5113, 2
    %v5115 = vadd.f32 %v5113, %v5114
    %v5116 = vrot.slane %v5115, 1
    %v5117 = vadd.f32 %v5115, %v5116
    %v5118 = vadd.f32 %v4915, %v4918
    %v5119 = vrot.slane %v5118, 4
    %v5120 = vadd.f32 %v5118, %v5119
    %v5121 = vrot.slane %v5120, 2
    %v5122 = vadd.f32 %v5120, %v5121
    %v5123 = vrot.slane %v5122, 1
    %v5124 = vadd.f32 %v5122, %v5123
    %v5125 = vadd.f32 %v4921, %v4924
    %v5126 = vrot.slane %v5125, 4
    %v5127 = vadd.f32 %v5125, %v5126
    %v5128 = vrot.slane %v5127, 2
    %v5129 = vadd.f32 %v5127, %v5128
    %v5130 = vrot.slane %v5129, 1
    %v5131 = vadd.f32 %v5129, %v5130
    %v5132 = vadd.f32 %v4927, %v4930
    %v5133 = vrot.slane %v5132, 4
    %v5134 = vadd.f32 %v5132, %v5133
    %v5135 = vrot.slane %v5134, 2
    %v5136 = vadd.f32 %v5134, %v5135
    %v5137 = vrot.slane %v5136, 1
    %v5138 = vadd.f32 %v5136, %v5137
    %v5139 = vadd.f32 %v4933, %v4936
    %v5140 = vrot.slane %v5139, 4
    %v5141 = vadd.f32 %v5139, %v5140
    %v5142 = vrot.slane %v5141, 2
    %v5143 = vadd.f32 %v5141, %v5142
    %v5144 = vrot.slane %v5143, 1
    %v5145 = vadd.f32 %v5143, %v5144
    %v5146 = vadd.f32 %v4939, %v4942
    %v5147 = vrot.slane %v5146, 4
    %v5148 = vadd.f32 %v5146, %v5147
    %v5149 = vrot.slane %v5148, 2
    %v5150 = vadd.f32 %v5148, %v5149
    %v5151 = vrot.slane %v5150, 1
    %v5152 = vadd.f32 %v5150, %v5151
    %v5153 = vadd.f32 %v4945, %v4948
    %v5154 = vrot.slane %v5153, 4
    %v5155 = vadd.f32 %v5153, %v5154
    %v5156 = vrot.slane %v5155, 2
    %v5157 = vadd.f32 %v5155, %v5156
    %v5158 = vrot.slane %v5157, 1
    %v5159 = vadd.f32 %v5157, %v5158
    %v5160 = vadd.f32 %v4951, %v4954
    %v5161 = vrot.slane %v5160, 4
    %v5162 = vadd.f32 %v5160, %v5161
    %v5163 = vrot.slane %v5162, 2
    %v5164 = vadd.f32 %v5162, %v5163
    %v5165 = vrot.slane %v5164, 1
    %v5166 = vadd.f32 %v5164, %v5165
    %v5167 = vadd.f32 %v4957, %v4960
    %v5168 = vrot.slane %v5167, 4
    %v5169 = vadd.f32 %v5167, %v5168
    %v5170 = vrot.slane %v5169, 2
    %v5171 = vadd.f32 %v5169, %v5170
    %v5172 = vrot.slane %v5171, 1
    %v5173 = vadd.f32 %v5171, %v5172
    %v5174 = vadd.f32 %v4963, %v4966
    %v5175 = vrot.slane %v5174, 4
    %v5176 = vadd.f32 %v5174, %v5175
    %v5177 = vrot.slane %v5176, 2
    %v5178 = vadd.f32 %v5176, %v5177
    %v5179 = vrot.slane %v5178, 1
    %v5180 = vadd.f32 %v5178, %v5179
    %v5181 = vadd.f32 %v4969, %v4972
    %v5182 = vrot.slane %v5181, 4
    %v5183 = vadd.f32 %v5181, %v5182
    %v5184 = vrot.slane %v5183, 2
    %v5185 = vadd.f32 %v5183, %v5184
    %v5186 = vrot.slane %v5185, 1
    %v5187 = vadd.f32 %v5185, %v5186
    %v5188 = vadd.f32 %v4975, %v4978
    %v5189 = vrot.slane %v5188, 4
    %v5190 = vadd.f32 %v5188, %v5189
    %v5191 = vrot.slane %v5190, 2
    %v5192 = vadd.f32 %v5190, %v5191
    %v5193 = vrot.slane %v5192, 1
    %v5194 = vadd.f32 %v5192, %v5193
    %v5195 = vadd.f32 %v4981, %v4984
    %v5196 = vrot.slane %v5195, 4
    %v5197 = vadd.f32 %v5195, %v5196
    %v5198 = vrot.slane %v5197, 2
    %v5199 = vadd.f32 %v5197, %v5198
    %v5200 = vrot.slane %v5199, 1
    %v5201 = vadd.f32 %v5199, %v5200
    %v5202 = vadd.f32 %v4987, %v4990
    %v5203 = vrot.slane %v5202, 4
    %v5204 = vadd.f32 %v5202, %v5203
    %v5205 = vrot.slane %v5204, 2
    %v5206 = vadd.f32 %v5204, %v5205
    %v5207 = vrot.slane %v5206, 1
    %v5208 = vadd.f32 %v5206, %v5207
    %v5209 = vadd.f32 %v4993, %v4996
    %v5210 = vrot.slane %v5209, 4
    %v5211 = vadd.f32 %v5209, %v5210
    %v5212 = vrot.slane %v5211, 2
    %v5213 = vadd.f32 %v5211, %v5212
    %v5214 = vrot.slane %v5213, 1
    %v5215 = vadd.f32 %v5213, %v5214
    %v5216 = vadd.f32 %v4999, %v5002
    %v5217 = vrot.slane %v5216, 4
    %v5218 = vadd.f32 %v5216, %v5217
    %v5219 = vrot.slane %v5218, 2
    %v5220 = vadd.f32 %v5218, %v5219
    %v5221 = vrot.slane %v5220, 1
    %v5222 = vadd.f32 %v5220, %v5221
    %v5223 = vadd.f32 %v5005, %v5008
    %v5224 = vrot.slane %v5223, 4
    %v5225 = vadd.f32 %v5223, %v5224
    %v5226 = vrot.slane %v5225, 2
    %v5227 = vadd.f32 %v5225, %v5226
    %v5228 = vrot.slane %v5227, 1
    %v5229 = vadd.f32 %v5227, %v5228
    %v5230 = vadd.f32 %v5011, %v5014
    %v5231 = vrot.slane %v5230, 4
    %v5232 = vadd.f32 %v5230, %v5231
    %v5233 = vrot.slane %v5232, 2
    %v5234 = vadd.f32 %v5232, %v5233
    %v5235 = vrot.slane %v5234, 1
    %v5236 = vadd.f32 %v5234, %v5235
    %v5237 = vadd.f32 %v5017, %v5020
    %v5238 = vrot.slane %v5237, 4
    %v5239 = vadd.f32 %v5237, %v5238
    %v5240 = vrot.slane %v5239, 2
    %v5241 = vadd.f32 %v5239, %v5240
    %v5242 = vrot.slane %v5241, 1
    %v5243 = vadd.f32 %v5241, %v5242
    %v5244 = vadd.f32 %v5023, %v5026
    %v5245 = vrot.slane %v5244, 4
    %v5246 = vadd.f32 %v5244, %v5245
    %v5247 = vrot.slane %v5246, 2
    %v5248 = vadd.f32 %v5246, %v5247
    %v5249 = vrot.slane %v5248, 1
    %v5250 = vadd.f32 %v5248, %v5249
    %v5251 = vadd.f32 %v5033, %v5040
    %v5252 = vadd.f32 %v5251, %v5047
    %v5253 = vadd.f32 %v5252, %v5054
    %v5254 = vadd.f32 %v5253, %v5061
    %v5255 = vadd.f32 %v5254, %v5068
    %v5256 = vadd.f32 %v5255, %v5075
    %v5257 = vadd.f32 %v5256, %v5082
    %v5258 = vadd.f32 %v5257, %v5089
    %v5259 = vadd.f32 %v5258, %v5096
    %v5260 = vadd.f32 %v5259, %v5103
    %v5261 = vadd.f32 %v5260, %v5110
    %v5262 = vadd.f32 %v5261, %v5117
    %v5263 = vadd.f32 %v5262, %v5124
    %v5264 = vadd.f32 %v5263, %v5131
    %v5265 = vadd.f32 %v5264, %v5138
    %v5266 = vadd.f32 %v5145, %v5152
    %v5267 = vadd.f32 %v5266, %v5159
    %v5268 = vadd.f32 %v5267, %v5166
    %v5269 = vadd.f32 %v5268, %v5173
    %v5270 = vadd.f32 %v5269, %v5180
    %v5271 = vadd.f32 %v5270, %v5187
    %v5272 = vadd.f32 %v5271, %v5194
    %v5273 = vadd.f32 %v5272, %v5201
    %v5274 = vadd.f32 %v5273, %v5208
    %v5275 = vadd.f32 %v5274, %v5215
    %v5276 = vadd.f32 %v5275, %v5222
    %v5277 = vadd.f32 %v5276, %v5229
    %v5278 = vadd.f32 %v5277, %v5236
    %v5279 = vadd.f32 %v5278, %v5243
    %v5280 = vadd.f32 %v5279, %v5250
    %vm5281 = vcmask 7168
    %v5282 = vsel %vm5281, %v4755, %v5265
    %v5283 = vsel %vm5281, %v4770, %v5280
    %v5284 = vld [vmem:[%s6] sm:$0x1]
    %v5285 = vadd.f32 %v5282, %v5284
    %v5286 = vadd.f32 %v5283, %v5284
    %v5287 = vld [vmem:[%s7] sm:$0x1]
    %v5288 = vld [vmem:[%s7 + $0x1] sm:$0x1]
    %5290 = vset.pattern.permute.xlu0 0
    %5291 = vperm.xlu0 %5290, %v5285
    %v5292 = vpop.permute.xlu0 %5291
    %5295 = vset.pattern.permute.xlu0 0
    %5296 = vperm.xlu0 %5295, %v5286
    %v5297 = vpop.permute.xlu0 %5296
    %v5299 = vmul.f32 %v5292, %v5287
    %v5300 = vmul.f32 %v5297, %v5287
    %5301 = vset.pattern.permute.xlu0 1
    %5302 = vperm.xlu0 %5301, %v5285
    %v5303 = vpop.permute.xlu0 %5302
    %5305 = vset.pattern.permute.xlu0 1
    %5306 = vperm.xlu0 %5305, %v5286
    %v5307 = vpop.permute.xlu0 %5306
    %v5309 = vmul.f32 %v5303, %v5288
    %v5310 = vmul.f32 %v5307, %v5288
    %v5311 = vadd.f32 %v5299, %v5309
    %v5312 = vadd.f32 %v5300, %v5310
    %v5313 = vld [vmem:[%s8] sm:$0x1]
    %v5314 = vadd.f32 %v5311, %v5313
    %v5315 = vadd.f32 %v5312, %v5313
    %vm5316 = vcmask 8192
    %5317 = vst.msk [vmem:[#allocation4] sm:$0x1] %vm5316, %v5285
    %5318 = vst.msk [vmem:[#allocation4 + $0x1] sm:$0x1] %vm5316, %v5286
    %vm5319 = vcmask 73728
    %5320 = vst.msk [vmem:[#allocation2] sm:$0x1] %vm5319, %v5314
    %5321 = vst.msk [vmem:[#allocation2 + $0x1] sm:$0x1] %vm5319, %v5315
    // Predicated region
    $region38: #{simple_cnn_forward.1} parent=1 // pred_check
      _
    $region39: #{simple_cnn_forward.1} parent=1 // pred_check_branch
      %5323 = sbr.rel (0) target = $region41
    $region40: #{simple_cnn_forward.1} parent=1 // pred_region
      %s5325 = ssub.s32 32, 32
      %5326 = vsyncadd [#allocation3], %s5325
      %s5327 = sshll.u32 [#allocation2], 4
      %s5328 = int_to_ptr.vmem [resolvable:$true] %s5327
      %5333 = dma.vmem_to_hbm [thread:$0]  %s5328, 32, %s9, [#allocation3], 16, 16, 1
    $region41: #{simple_cnn_forward.1} parent=1 // pred_fallthru
      _
    // Predicated region
    $region42: #{simple_cnn_forward.1} parent=1 // pred_check
      _
    $region43: #{simple_cnn_forward.1} parent=1 // pred_check_branch
      %5335 = sbr.rel (0) target = $region45
    $region44: #{simple_cnn_forward.1} parent=1 // pred_region
      %s5337 = ssub.s32 32, 32
      %5338 = vsyncadd [#allocation5], %s5337
      %s5339 = sshll.u32 [#allocation4], 4
      %s5340 = int_to_ptr.vmem [resolvable:$true] %s5339
      %5345 = dma.vmem_to_hbm [thread:$0]  %s5340, 32, %s10, [#allocation5], 16, 16, 1
    $region45: #{simple_cnn_forward.1} parent=1 // pred_fallthru
      _
    // Predicated region
    $region46: #{simple_cnn_forward.1} parent=1 // pred_check
      _
    $region47: #{simple_cnn_forward.1} parent=1 // pred_check_branch
      %5347 = sbr.rel (0) target = $region49
    $region48: #{simple_cnn_forward.1} parent=1 // pred_region
      %5348 = dma.done [#allocation3], 32
    $region49: #{simple_cnn_forward.1} parent=1 // pred_fallthru
      _
    // Predicated region
    $region50: #{simple_cnn_forward.1} parent=1 // pred_check
      _
    $region51: #{simple_cnn_forward.1} parent=1 // pred_check_branch
      %5350 = sbr.rel (0) target = $region53
    $region52: #{simple_cnn_forward.1} parent=1 // pred_region
      %5351 = dma.done [#allocation5], 32
    $region53: #{simple_cnn_forward.1} parent=1 // pred_fallthru
      _
    %5352 = vsyncpa [#allocation3], 1
    %5353 = vsyncpa [#allocation5], 1

</llo_original>
